<compile_context>
chip_gen: v5e
topology: v5e:2x2
jax: 0.10.0
libtpu: 0.0.40
codegen_flags: <defaults>
</compile_context>

<pallas_src>
from functools import partial

import jax
import jax.numpy as jnp
from jax.experimental import pallas as pl
from jax.experimental.pallas import tpu as pltpu

EMBED_DIM = 16
GNN_LAYERS = 3
NUM_RELATIONS = 114
NUM_NODE_ATTR = 10
HIDDEN = 16
TOPK_RATIO = 0.8
NEG_BIG = -1.0e30          # mask value (safer headroom than -3e38)
NODE_TILE = 16             # node tile for the gridded init kernel (toy); prod: 256+


# ----------------------------------------------------------------------------- kernels
def _embed_transform_kernel(ids_oh_ref, ew_ref, h_ref):
    # One MXU matmul per node block: node-id one-hot x (embedding @ packed layer-0
    # relation weights).  Embedding lookup + layer-0 transform reassociated; the
    # folded q/k projection lanes ride along.  bf16 handoff, f32 accumulation.
    h_ref[...] = jnp.dot(ids_oh_ref[...], ew_ref[...],
                         preferred_element_type=jnp.float32).astype(h_ref.dtype)


def _gnn_layer_kernel(last, *refs):
    # last=True  : RGAT aggregation + mean/max pooling only
    # last=False : + TopK selection + next layer relation-packed transform (MXU)
    if last:
        (hs_ref, lz_ref, evalid_ref, onehot_ref, bias_ref,
         oh_gn_ref, oh_ng_ref, cnt_ref, pool_ref) = refs
    else:
        (hs_ref, lz_ref, evalid_ref, onehot_ref, bias_ref,
         oh_gn_ref, oh_ng_ref, cnt_ref,
         w_row_ref, w_col_ref, batch_col_ref, batch_row_ref,
         valid_col_ref, valid_row_ref, k_ref, wp_next_ref,
         pool_ref, valid_next_ref, h_next_ref) = refs

    D = bias_ref.shape[1]
    G = oh_gn_ref.shape[0]

    # ---- softmax-weighted RGAT aggregation (per-dst max shift precomputed in glue)
    hs = hs_ref[...].astype(jnp.float32)                 # (E, D) W_r x_src messages
    p = evalid_ref[...] * jnp.exp(lz_ref[...])           # (E, 1) softmax numerator
    onehot = onehot_ref[...]                             # (N, E) dst one-hot, edge-masked
    num = jnp.dot(onehot, p * hs, preferred_element_type=jnp.float32)   # (N, D)
    den = jnp.dot(onehot, p, preferred_element_type=jnp.float32)        # (N, 1)
    x_new = jnp.where(den > 0.0, num / jnp.maximum(den, 1e-30), 0.0) + bias_ref[...]
    x_new = jnp.maximum(x_new, 0.0)                      # RGATConv + ReLU

    # ---- valid-masked global mean / max pool (no (G, N, D) temporary) ------------
    mean = jnp.dot(oh_gn_ref[...], x_new,
                   preferred_element_type=jnp.float32) / cnt_ref[...]   # (G, D)
    oh_ng = oh_ng_ref[...]                               # (N, G) valid-masked membership
    mx_rows = []
    for g in range(G):                                   # G is small & static
        col = oh_ng[:, g:g + 1]                          # (N, 1)
        # x_new >= 0 post-ReLU and every graph keeps >= 1 valid node, so the 0/1
        # membership mask gives an exact masked max.
        mx_rows.append(jnp.max(x_new * col, axis=0, keepdims=True))
    mx = jnp.concatenate(mx_rows, axis=0)                # (G, D)
    pool_ref[...] = jnp.concatenate([mean, mx], axis=1)  # (G, 2D)

    if not last:
        # ---- TopKPooling: score (col + row via MXU), per-graph rank, keep top-k ---
        score = jnp.tanh(jnp.dot(x_new, w_col_ref[...],
                                 preferred_element_type=jnp.float32))   # (N, 1)
        s_row = jnp.tanh(jax.lax.dot_general(
            w_row_ref[...], x_new, (((1,), (1,)), ((), ())),
            preferred_element_type=jnp.float32))                        # (1, N)
        N = score.shape[0]
        ii = jax.lax.broadcasted_iota(jnp.int32, (N, N), 0)
        jj = jax.lax.broadcasted_iota(jnp.int32, (N, N), 1)
        same = batch_row_ref[...] == batch_col_ref[...]                  # (N, N)
        # "j comes before i" in (score desc, index asc).  score/s_row come from two
        # matmul orientations, so the diagonal is excluded explicitly; exact ties
        # between different nodes are vanishingly unlikely for real-valued scores.
        beats = jnp.logical_or(s_row > score,
                               jnp.logical_and(s_row >= score, jj < ii))
        before = jnp.logical_and(
            jnp.logical_and(same, valid_row_ref[...] > 0.0),
            jnp.logical_and(ii != jj, beats))
        rank = jnp.sum(before.astype(jnp.float32), axis=1, keepdims=True)   # (N, 1)
        sel = jnp.logical_and(valid_col_ref[...] > 0.0,
                              rank < k_ref[...]).astype(jnp.float32)
        valid_next_ref[...] = sel
        # selected nodes scaled by their score, pushed through the NEXT layer's
        # relation-packed transform (incl. folded q/k lanes) on the MXU; bf16 store.
        x_next = x_new * score * sel
        h_next_ref[...] = jnp.dot(x_next, wp_next_ref[...],
                                  preferred_element_type=jnp.float32
                                  ).astype(h_next_ref.dtype)


def _gru_mlp_kernel(x_ref, wr_ref, wz_ref, wn_ref, ur_ref, uz_ref, un_ref,
                    br_ref, bz_ref, bn_ref, cr_ref, cz_ref, cn_ref,
                    w1_ref, b1_ref, w2_ref, b2_ref, out_ref):
    # x: (T, I); per-gate weights (I,H)/(H,H) and (1,H) biases; gate order r, z, n.
    T = x_ref.shape[0]
    x = x_ref[...]
    # input projections for ALL timesteps hoisted out of the recurrence; one matmul
    # per gate keeps every operand 16-lane clean (no 3H lane slicing).
    xr = jnp.dot(x, wr_ref[...], preferred_element_type=jnp.float32) + br_ref[...]
    xz = jnp.dot(x, wz_ref[...], preferred_element_type=jnp.float32) + bz_ref[...]
    xn = jnp.dot(x, wn_ref[...], preferred_element_type=jnp.float32) + bn_ref[...]
    ur, uz, un = ur_ref[...], uz_ref[...], un_ref[...]
    cr, cz, cn = cr_ref[...], cz_ref[...], cn_ref[...]
    h = jnp.zeros((1, ur.shape[0]), jnp.float32)
    h_list = []
    for t in range(T):                                   # T tiny & static -> unrolled
        hr = jnp.dot(h, ur, preferred_element_type=jnp.float32) + cr
        hz = jnp.dot(h, uz, preferred_element_type=jnp.float32) + cz
        hn = jnp.dot(h, un, preferred_element_type=jnp.float32) + cn
        r = jax.nn.sigmoid(xr[t:t + 1, :] + hr)
        z = jax.nn.sigmoid(xz[t:t + 1, :] + hz)
        n = jnp.tanh(xn[t:t + 1, :] + r * hn)
        h = (1.0 - z) * n + z * h
        h_list.append(h)
    rnn = jnp.concatenate(h_list, axis=0)                # (T, H)
    h1 = jnp.maximum(jnp.dot(rnn, w1_ref[...], preferred_element_type=jnp.float32)
                     + b1_ref[...], 0.0)
    out_ref[...] = jnp.maximum(jnp.dot(h1, w2_ref[...], preferred_element_type=jnp.float32)
                               + b2_ref[...], 0.0)


# ----------------------------------------------------------------------------- packing
def _pack_relation_weights(w, q, k):
    # (R, Din, D) + per-relation q/k (R, D) -> (Din, R*(D+2)), lanes padded to 128.
    # Columns per relation: [ W_r | W_r^T q_r | W_r^T k_r ]  (q/k fold).
    aq = jnp.einsum('rio,ro->ri', w, q)[..., None]
    ak = jnp.einsum('rio,ro->ri', w, k)[..., None]
    wpk = jnp.concatenate([w, aq, ak], axis=2)                       # (R, Din, D+2)
    d_in = w.shape[1]
    wp = jnp.transpose(wpk, (1, 0, 2)).reshape(d_in, -1)             # (Din, R*(D+2))
    pad = (-wp.shape[1]) % 128
    if pad:
        wp = jnp.pad(wp, ((0, 0), (0, pad)))
    return wp


# ----------------------------------------------------------------------------- forward
@partial(jax.jit, static_argnums=(6,))
def detect_model_forward(params, x_ids, src, dst, et, batch, num_graphs):
    N = x_ids.shape[0]
    E = src.shape[0]
    D = EMBED_DIM
    R = NUM_RELATIONS
    G = num_graphs
    C = D + 2                                   # packed columns per relation

    # static structural one-hots (built once under jit)
    dst_oh = (jnp.arange(N, dtype=jnp.int32)[:, None] == dst[None, :]).astype(jnp.float32)
    oh_gn = (jnp.arange(G, dtype=jnp.int32)[:, None] == batch[None, :]).astype(jnp.float32)

    gnn = params["gnn"]
    wps = [_pack_relation_weights(gnn[l]["weight"], gnn[l]["q"], gnn[l]["k"])
           for l in range(GNN_LAYERS)]
    RDp = wps[0].shape[1]

    # --- kernel 1: embedding lookup fused (reassociated) with layer-0 transform ----
    emb_w0 = jnp.dot(params["embedding"], wps[0])                    # (A, RDp)
    ids_oh = (x_ids[:, None] == jnp.arange(NUM_NODE_ATTR, dtype=jnp.int32)[None, :]
              ).astype(jnp.float32)
    Np = ((N + NODE_TILE - 1) // NODE_TILE) * NODE_TILE
    ids_oh_p = jnp.pad(ids_oh, ((0, Np - N), (0, 0)))
    H = pl.pallas_call(
        _embed_transform_kernel,
        out_shape=jax.ShapeDtypeStruct((Np, RDp), jnp.bfloat16),
        grid=(Np // NODE_TILE,),
        in_specs=[pl.BlockSpec((NODE_TILE, NUM_NODE_ATTR), lambda i: (i, 0)),
                  pl.BlockSpec((NUM_NODE_ATTR, RDp), lambda i: (0, 0))],
        out_specs=pl.BlockSpec((NODE_TILE, RDp), lambda i: (i, 0)),
        compiler_params=pltpu.CompilerParams(dimension_semantics=("parallel",)),
    )(ids_oh_p, emb_w0)
    H = H[:N]

    # TopK pooling handled with static-shape validity masks (no compaction, no host syncs)
    nvalid = jnp.ones((N, 1), jnp.float32)
    evalid = jnp.ones((E, 1), jnp.float32)
    pools = []
    for l in range(GNN_LAYERS):
        last = (l == GNN_LAYERS - 1)

        # ---- index-based glue: gathers, logits, per-dst softmax shift -------------
        H3 = H[:, :R * C].reshape(N, R, C)
        g_src = H3[src, et]                              # (E, D+2) bf16
        g_dst = H3[dst, et]                              # (E, D+2) bf16
        hs = g_src[:, :D]                                # (E, D) messages W_r x_src
        logit = (g_dst[:, D].astype(jnp.float32)         # q_r . (W_r x_dst)
                 + g_src[:, D + 1].astype(jnp.float32))  # k_r . (W_r x_src)
        logit = jnp.where(logit > 0.0, logit, 0.2 * logit)           # LeakyReLU(0.2)
        lmask = jnp.where(evalid[:, 0] > 0.0, logit, NEG_BIG)
        m_node = jax.ops.segment_max(lmask, dst, num_segments=N)     # per-dst max
        lz = jnp.minimum(logit - m_node[dst], 0.0).reshape(E, 1)

        onehot = dst_oh * evalid[:, 0][None, :]                      # (N, E)
        oh_gn_m = oh_gn * nvalid[:, 0][None, :]                      # (G, N)
        oh_ng_m = oh_gn_m.T                                          # (N, G)
        cnt = jnp.maximum(jnp.sum(oh_gn_m, axis=1, keepdims=True), 1.0)   # (G, 1)
        bias = gnn[l]["bias"].reshape(1, D)

        if not last:
            w = params["pool"][l]                                    # (1, D)
            w_n = w / jnp.maximum(jnp.sqrt(jnp.sum(w * w)), 1e-12)   # pre-normalised
            k_node = jnp.ceil(TOPK_RATIO * cnt)[batch]               # (N, 1)
            batch_col = batch.astype(jnp.float32)[:, None]
            pool, nvalid_new, H = pl.pallas_call(
                partial(_gnn_layer_kernel, False),
                out_shape=(jax.ShapeDtypeStruct((G, 2 * D), jnp.float32),
                           jax.ShapeDtypeStruct((N, 1), jnp.float32),
                           jax.ShapeDtypeStruct((N, RDp), jnp.bfloat16)),
            )(hs, lz, evalid, onehot, bias, oh_gn_m, oh_ng_m, cnt,
              w_n, w_n.reshape(D, 1), batch_col, batch_col.reshape(1, N),
              nvalid, nvalid.reshape(1, N), k_node, wps[l + 1])
            # edges survive only if both endpoints were kept by TopK
            evalid = evalid * nvalid_new[src] * nvalid_new[dst]
            nvalid = nvalid_new
        else:
            pool = pl.pallas_call(
                partial(_gnn_layer_kernel, True),
                out_shape=jax.ShapeDtypeStruct((G, 2 * D), jnp.float32),
            )(hs, lz, evalid, onehot, bias, oh_gn_m, oh_ng_m, cnt)
        pools.append(pool)

    graph_attr = jnp.concatenate(pools, axis=1)                      # (G, 6D)

    gru = params["gru"]
    out = pl.pallas_call(
        _gru_mlp_kernel,
        out_shape=jax.ShapeDtypeStruct((G, 1), jnp.float32),
    )(graph_attr,
      gru["wih"][0], gru["wih"][1], gru["wih"][2],
      gru["whh"][0], gru["whh"][1], gru["whh"][2],
      gru["bih"][0], gru["bih"][1], gru["bih"][2],
      gru["bhh"][0], gru["bhh"][1], gru["bhh"][2],
      params["lin1_w"], params["lin1_b"], params["lin2_w"], params["lin2_b"])
    return out


# ----------------------------------------------------------------------------- params
def init_params(key):
    ks = jax.random.split(key, 20)

    def nrm(k, shape, scale):
        return (scale * jax.random.normal(k, shape)).astype(jnp.float32)

    p = {"embedding": nrm(ks[0], (NUM_NODE_ATTR, EMBED_DIM), 1.0), "gnn": []}
    for l in range(GNN_LAYERS):
        p["gnn"].append({
            "weight": nrm(ks[1 + l], (NUM_RELATIONS, EMBED_DIM, EMBED_DIM), 0.3),
            "q": nrm(ks[4 + l], (NUM_RELATIONS, EMBED_DIM), 0.3),
            "k": nrm(ks[7 + l], (NUM_RELATIONS, EMBED_DIM), 0.3),
            "bias": nrm(ks[10 + l], (EMBED_DIM,), 0.1),
        })
    p["pool"] = [nrm(ks[13 + l], (1, EMBED_DIM), 0.5) for l in range(GNN_LAYERS - 1)]
    rnn_in = EMBED_DIM * GNN_LAYERS * 2
    p["gru"] = {
        "wih": nrm(ks[15], (3, rnn_in, HIDDEN), 0.2),   # gate order r, z, n
        "whh": nrm(ks[16], (3, HIDDEN, HIDDEN), 0.2),
        "bih": nrm(ks[17], (3, 1, HIDDEN), 0.1),
        "bhh": nrm(ks[18], (3, 1, HIDDEN), 0.1),
    }
    kl = jax.random.split(ks[19], 4)
    p["lin1_w"] = nrm(kl[0], (HIDDEN, 4), 0.4)          # (in, out) = torch weight.T
    p["lin1_b"] = nrm(kl[1], (1, 4), 0.1)
    p["lin2_w"] = nrm(kl[2], (4, 1), 0.4)
    p["lin2_b"] = nrm(kl[3], (1, 1), 0.1)
    return p


# ----------------------------------------------------------------------------- main
if __name__ == "__main__":
    key = jax.random.PRNGKey(0)
    k_x, k_e, k_p = jax.random.split(key, 3)

    G, nodes_per_graph = 4, 5
    N = G * nodes_per_graph

    # bidirectional ring edges inside each graph
    src_l, dst_l = [], []
    for g in range(G):
        off = g * nodes_per_graph
        for i in range(nodes_per_graph):
            j = (i + 1) % nodes_per_graph
            src_l += [off + i, off + j]
            dst_l += [off + j, off + i]
    src = jnp.asarray(src_l, jnp.int32)
    dst = jnp.asarray(dst_l, jnp.int32)
    E = int(src.shape[0])

    x_ids = jax.random.randint(k_x, (N,), 0, NUM_NODE_ATTR, dtype=jnp.int32)       # node attrs
    edge_type = jax.random.randint(k_e, (E,), 0, NUM_RELATIONS, dtype=jnp.int32)   # edge_attr
    seq = jnp.repeat(jnp.arange(G, dtype=jnp.int32), nodes_per_graph)              # graph ids

    params = init_params(k_p)

    out = detect_model_forward(params, x_ids, src, dst, edge_type, seq, G)
    jax.block_until_ready(out)
    assert out.shape == (G, 1) and out.dtype == jnp.float32
    print("KERNEL_OK")
</pallas_src>

<mosaic_0001>
module attributes {stable_mosaic.version = 11 : i64} {
  func.func @_embed_transform_kernel(%arg0: i32, %arg1: memref<16x10xf32, #tpu.memory_space<vmem>>, %arg2: memref<10x2176xf32, #tpu.memory_space<vmem>>, %arg3: memref<16x2176xbf16, #tpu.memory_space<vmem>>) attributes {dimension_semantics = [#tpu.dimension_semantics<parallel>], iteration_bounds = array<i64: 2>, scalar_prefetch = 0 : i64, scratch_operands = 0 : i64, tpu.core_type = #tpu.core_type<tc>, window_params = [{transform_indices = @transform_0, window_bounds = array<i64: 16, 10>}, {pipeline_mode = #tpu.pipeline_mode<synchronous>, transform_indices = @transform_1, window_bounds = array<i64: 10, 2176>}, {transform_indices = @transform_2, window_bounds = array<i64: 16, 2176>}]} {
    %c0 = arith.constant 0 : index
    %c0_0 = arith.constant 0 : index
    %0 = vector.load %arg1[%c0, %c0_0] : memref<16x10xf32, #tpu.memory_space<vmem>>, vector<16x10xf32>
    %c0_1 = arith.constant 0 : index
    %c0_2 = arith.constant 0 : index
    %1 = vector.load %arg2[%c0_1, %c0_2] : memref<10x2176xf32, #tpu.memory_space<vmem>>, vector<10x2176xf32>
    %cst = arith.constant dense<0.000000e+00> : vector<16x2176xf32>
    %2 = tpu.matmul %0, %1, %cst {dimension_numbers = #tpu.dot_dimension_numbers<[1], [0], [0], [1], [0, 0, 1, 1], [], []>} : vector<16x10xf32>, vector<10x2176xf32>, vector<16x2176xf32> -> vector<16x2176xf32>
    %3 = arith.truncf %2 : vector<16x2176xf32> to vector<16x2176xbf16>
    %c0_3 = arith.constant 0 : index
    %c0_4 = arith.constant 0 : index
    %4 = vector.load %arg3[%c0_3, %c0_4] : memref<16x2176xbf16, #tpu.memory_space<vmem>>, vector<16x2176xbf16>
    tpu.vector_store %arg3[%c0_3, %c0_4], %3 {strides = array<i32>} : memref<16x2176xbf16, #tpu.memory_space<vmem>>, vector<16x2176xbf16>,
    return
  }
  func.func @transform_0(%arg0: i32) -> (i32, i32) {
    %c0_i32 = arith.constant 0 : i32
    %c0_i32_0 = arith.constant 0 : i32
    return %arg0, %c0_i32 : i32, i32
  }
  func.func @transform_1(%arg0: i32) -> (i32, i32) {
    %c0_i32 = arith.constant 0 : i32
    %c0_i32_0 = arith.constant 0 : i32
    %c0_i32_1 = arith.constant 0 : i32
    return %c0_i32, %c0_i32_0 : i32, i32
  }
  func.func @transform_2(%arg0: i32) -> (i32, i32) {
    %c0_i32 = arith.constant 0 : i32
    %c0_i32_0 = arith.constant 0 : i32
    return %arg0, %c0_i32 : i32, i32
  }
}

module attributes {stable_mosaic.version = 11 : i64} {
  func.func @_gnn_layer_kernel(%arg0: memref<40x16xbf16, #tpu.memory_space<vmem>>, %arg1: memref<40x1xf32, #tpu.memory_space<vmem>>, %arg2: memref<40x1xf32, #tpu.memory_space<vmem>>, %arg3: memref<20x40xf32, #tpu.memory_space<vmem>>, %arg4: memref<1x16xf32, #tpu.memory_space<vmem>>, %arg5: memref<4x20xf32, #tpu.memory_space<vmem>>, %arg6: memref<20x4xf32, #tpu.memory_space<vmem>>, %arg7: memref<4x1xf32, #tpu.memory_space<vmem>>, %arg8: memref<4x32xf32, #tpu.memory_space<vmem>>) attributes {dimension_semantics = [], scalar_prefetch = 0 : i64, scratch_operands = 0 : i64, tpu.core_type = #tpu.core_type<tc>} {
    %c0 = arith.constant 0 : index
    %c0_0 = arith.constant 0 : index
    %0 = vector.load %arg0[%c0, %c0_0] : memref<40x16xbf16, #tpu.memory_space<vmem>>, vector<40x16xbf16>
    %1 = arith.extf %0 : vector<40x16xbf16> to vector<40x16xf32>
    %c0_1 = arith.constant 0 : index
    %c0_2 = arith.constant 0 : index
    %2 = vector.load %arg2[%c0_1, %c0_2] : memref<40x1xf32, #tpu.memory_space<vmem>>, vector<40x1xf32>
    %c0_3 = arith.constant 0 : index
    %c0_4 = arith.constant 0 : index
    %3 = vector.load %arg1[%c0_3, %c0_4] : memref<40x1xf32, #tpu.memory_space<vmem>>, vector<40x1xf32>
    %4 = math.exp %3 : vector<40x1xf32>
    %5 = arith.mulf %2, %4 : vector<40x1xf32>
    %c0_5 = arith.constant 0 : index
    %c0_6 = arith.constant 0 : index
    %6 = vector.load %arg3[%c0_5, %c0_6] : memref<20x40xf32, #tpu.memory_space<vmem>>, vector<20x40xf32>
    %7 = vector.broadcast %5 : vector<40x1xf32> to vector<40x16xf32>
    %8 = arith.mulf %7, %1 : vector<40x16xf32>
    %cst = arith.constant dense<0.000000e+00> : vector<20x16xf32>
    %9 = tpu.matmul %6, %8, %cst {dimension_numbers = #tpu.dot_dimension_numbers<[1], [0], [0], [1], [0, 0, 1, 1], [], []>} : vector<20x40xf32>, vector<40x16xf32>, vector<20x16xf32> -> vector<20x16xf32>
    %cst_7 = arith.constant dense<0.000000e+00> : vector<20x1xf32>
    %10 = tpu.matmul %6, %5, %cst_7 {dimension_numbers = #tpu.dot_dimension_numbers<[1], [0], [0], [1], [0, 0, 1, 1], [], []>} : vector<20x40xf32>, vector<40x1xf32>, vector<20x1xf32> -> vector<20x1xf32>
    %cst_8 = arith.constant 0.000000e+00 : f32
    %11 = vector.broadcast %cst_8 : f32 to vector<20x1xf32>
    %12 = arith.cmpf ogt, %10, %11 : vector<20x1xf32>
    %cst_9 = arith.constant 1.000000e-30 : f32
    %13 = vector.broadcast %cst_9 : f32 to vector<20x1xf32>
    %14 = arith.maximumf %10, %13 : vector<20x1xf32>
    %15 = vector.broadcast %14 : vector<20x1xf32> to vector<20x16xf32>
    %16 = arith.divf %9, %15 : vector<20x16xf32>
    %cst_10 = arith.constant 0.000000e+00 : f32
    %17 = vector.shape_cast %12 : vector<20x1xi1> to vector<20x1xi1>
    %18 = vector.broadcast %17 : vector<20x1xi1> to vector<20x16xi1>
    %19 = vector.broadcast %cst_10 : f32 to vector<20x16xf32>
    %20 = arith.select %18, %16, %19 : vector<20x16xi1>, vector<20x16xf32>
    %c0_11 = arith.constant 0 : index
    %c0_12 = arith.constant 0 : index
    %21 = vector.load %arg4[%c0_11, %c0_12] : memref<1x16xf32, #tpu.memory_space<vmem>>, vector<1x16xf32>
    %22 = vector.broadcast %21 : vector<1x16xf32> to vector<20x16xf32>
    %23 = arith.addf %20, %22 : vector<20x16xf32>
    %cst_13 = arith.constant 0.000000e+00 : f32
    %24 = vector.broadcast %cst_13 : f32 to vector<20x16xf32>
    %25 = arith.maximumf %23, %24 : vector<20x16xf32>
    %c0_14 = arith.constant 0 : index
    %c0_15 = arith.constant 0 : index
    %26 = vector.load %arg5[%c0_14, %c0_15] : memref<4x20xf32, #tpu.memory_space<vmem>>, vector<4x20xf32>
    %cst_16 = arith.constant dense<0.000000e+00> : vector<4x16xf32>
    %27 = tpu.matmul %26, %25, %cst_16 {dimension_numbers = #tpu.dot_dimension_numbers<[1], [0], [0], [1], [0, 0, 1, 1], [], []>} : vector<4x20xf32>, vector<20x16xf32>, vector<4x16xf32> -> vector<4x16xf32>
    %c0_17 = arith.constant 0 : index
    %c0_18 = arith.constant 0 : index
    %28 = vector.load %arg7[%c0_17, %c0_18] : memref<4x1xf32, #tpu.memory_space<vmem>>, vector<4x1xf32>
    %29 = vector.broadcast %28 : vector<4x1xf32> to vector<4x16xf32>
    %30 = arith.divf %27, %29 : vector<4x16xf32>
    %c0_19 = arith.constant 0 : index
    %c0_20 = arith.constant 0 : index
    %31 = vector.load %arg6[%c0_19, %c0_20] : memref<20x4xf32, #tpu.memory_space<vmem>>, vector<20x4xf32>
    %32 = vector.extract_strided_slice %31 {offsets = [0, 0], sizes = [20, 1], strides = [1, 1]} : vector<20x4xf32> to vector<20x1xf32>
    %33 = vector.broadcast %32 : vector<20x1xf32> to vector<20x16xf32>
    %34 = arith.mulf %25, %33 : vector<20x16xf32>
    %cst_21 = arith.constant dense<0xFF800000> : vector<16xf32>
    %35 = vector.multi_reduction <maximumf>, %34, %cst_21 [0] : vector<20x16xf32> to vector<16xf32>
    %36 = vector.shape_cast %35 : vector<16xf32> to vector<1x16xf32>
    %37 = vector.extract_strided_slice %31 {offsets = [0, 1], sizes = [20, 1], strides = [1, 1]} : vector<20x4xf32> to vector<20x1xf32>
    %38 = vector.broadcast %37 : vector<20x1xf32> to vector<20x16xf32>
    %39 = arith.mulf %25, %38 : vector<20x16xf32>
    %cst_22 = arith.constant dense<0xFF800000> : vector<16xf32>
    %40 = vector.multi_reduction <maximumf>, %39, %cst_22 [0] : vector<20x16xf32> to vector<16xf32>
    %41 = vector.shape_cast %40 : vector<16xf32> to vector<1x16xf32>
    %42 = vector.extract_strided_slice %31 {offsets = [0, 2], sizes = [20, 1], strides = [1, 1]} : vector<20x4xf32> to vector<20x1xf32>
    %43 = vector.broadcast %42 : vector<20x1xf32> to vector<20x16xf32>
    %44 = arith.mulf %25, %43 : vector<20x16xf32>
    %cst_23 = arith.constant dense<0xFF800000> : vector<16xf32>
    %45 = vector.multi_reduction <maximumf>, %44, %cst_23 [0] : vector<20x16xf32> to vector<16xf32>
    %46 = vector.shape_cast %45 : vector<16xf32> to vector<1x16xf32>
    %47 = vector.extract_strided_slice %31 {offsets = [0, 3], sizes = [20, 1], strides = [1, 1]} : vector<20x4xf32> to vector<20x1xf32>
    %48 = vector.broadcast %47 : vector<20x1xf32> to vector<20x16xf32>
    %49 = arith.mulf %25, %48 : vector<20x16xf32>
    %cst_24 = arith.constant dense<0xFF800000> : vector<16xf32>
    %50 = vector.multi_reduction <maximumf>, %49, %cst_24 [0] : vector<20x16xf32> to vector<16xf32>
    %51 = vector.shape_cast %50 : vector<16xf32> to vector<1x16xf32>
    %52 = tpu.concatenate %36, %41, %46, %51 in 0 : vector<1x16xf32>, vector<1x16xf32>, vector<1x16xf32>, vector<1x16xf32> -> vector<4x16xf32>
    %53 = tpu.concatenate %30, %52 in 1 : vector<4x16xf32>, vector<4x16xf32> -> vector<4x32xf32>
    %c0_25 = arith.constant 0 : index
    %c0_26 = arith.constant 0 : index
    %54 = vector.load %arg8[%c0_25, %c0_26] : memref<4x32xf32, #tpu.memory_space<vmem>>, vector<4x32xf32>
    tpu.vector_store %arg8[%c0_25, %c0_26], %53 {strides = array<i32>} : memref<4x32xf32, #tpu.memory_space<vmem>>, vector<4x32xf32>,
    return
  }
}

module attributes {stable_mosaic.version = 11 : i64} {
  func.func @_gnn_layer_kernel(%arg0: memref<40x16xbf16, #tpu.memory_space<vmem>>, %arg1: memref<40x1xf32, #tpu.memory_space<vmem>>, %arg2: memref<40x1xf32, #tpu.memory_space<vmem>>, %arg3: memref<20x40xf32, #tpu.memory_space<vmem>>, %arg4: memref<1x16xf32, #tpu.memory_space<vmem>>, %arg5: memref<4x20xf32, #tpu.memory_space<vmem>>, %arg6: memref<20x4xf32, #tpu.memory_space<vmem>>, %arg7: memref<4x1xf32, #tpu.memory_space<vmem>>, %arg8: memref<1x16xf32, #tpu.memory_space<vmem>>, %arg9: memref<16x1xf32, #tpu.memory_space<vmem>>, %arg10: memref<20x1xf32, #tpu.memory_space<vmem>>, %arg11: memref<1x20xf32, #tpu.memory_space<vmem>>, %arg12: memref<20x1xf32, #tpu.memory_space<vmem>>, %arg13: memref<1x20xf32, #tpu.memory_space<vmem>>, %arg14: memref<20x1xf32, #tpu.memory_space<vmem>>, %arg15: memref<16x2176xf32, #tpu.memory_space<vmem>>, %arg16: memref<4x32xf32, #tpu.memory_space<vmem>>, %arg17: memref<20x1xf32, #tpu.memory_space<vmem>>, %arg18: memref<20x2176xbf16, #tpu.memory_space<vmem>>) attributes {dimension_semantics = [], scalar_prefetch = 0 : i64, scratch_operands = 0 : i64, tpu.core_type = #tpu.core_type<tc>} {
    %c0 = arith.constant 0 : index
    %c0_0 = arith.constant 0 : index
    %0 = vector.load %arg0[%c0, %c0_0] : memref<40x16xbf16, #tpu.memory_space<vmem>>, vector<40x16xbf16>
    %1 = arith.extf %0 : vector<40x16xbf16> to vector<40x16xf32>
    %c0_1 = arith.constant 0 : index
    %c0_2 = arith.constant 0 : index
    %2 = vector.load %arg2[%c0_1, %c0_2] : memref<40x1xf32, #tpu.memory_space<vmem>>, vector<40x1xf32>
    %c0_3 = arith.constant 0 : index
    %c0_4 = arith.constant 0 : index
    %3 = vector.load %arg1[%c0_3, %c0_4] : memref<40x1xf32, #tpu.memory_space<vmem>>, vector<40x1xf32>
    %4 = math.exp %3 : vector<40x1xf32>
    %5 = arith.mulf %2, %4 : vector<40x1xf32>
    %c0_5 = arith.constant 0 : index
    %c0_6 = arith.constant 0 : index
    %6 = vector.load %arg3[%c0_5, %c0_6] : memref<20x40xf32, #tpu.memory_space<vmem>>, vector<20x40xf32>
    %7 = vector.broadcast %5 : vector<40x1xf32> to vector<40x16xf32>
    %8 = arith.mulf %7, %1 : vector<40x16xf32>
    %cst = arith.constant dense<0.000000e+00> : vector<20x16xf32>
    %9 = tpu.matmul %6, %8, %cst {dimension_numbers = #tpu.dot_dimension_numbers<[1], [0], [0], [1], [0, 0, 1, 1], [], []>} : vector<20x40xf32>, vector<40x16xf32>, vector<20x16xf32> -> vector<20x16xf32>
    %cst_7 = arith.constant dense<0.000000e+00> : vector<20x1xf32>
    %10 = tpu.matmul %6, %5, %cst_7 {dimension_numbers = #tpu.dot_dimension_numbers<[1], [0], [0], [1], [0, 0, 1, 1], [], []>} : vector<20x40xf32>, vector<40x1xf32>, vector<20x1xf32> -> vector<20x1xf32>
    %cst_8 = arith.constant 0.000000e+00 : f32
    %11 = vector.broadcast %cst_8 : f32 to vector<20x1xf32>
    %12 = arith.cmpf ogt, %10, %11 : vector<20x1xf32>
    %cst_9 = arith.constant 1.000000e-30 : f32
    %13 = vector.broadcast %cst_9 : f32 to vector<20x1xf32>
    %14 = arith.maximumf %10, %13 : vector<20x1xf32>
    %15 = vector.broadcast %14 : vector<20x1xf32> to vector<20x16xf32>
    %16 = arith.divf %9, %15 : vector<20x16xf32>
    %cst_10 = arith.constant 0.000000e+00 : f32
    %17 = vector.shape_cast %12 : vector<20x1xi1> to vector<20x1xi1>
    %18 = vector.broadcast %17 : vector<20x1xi1> to vector<20x16xi1>
    %19 = vector.broadcast %cst_10 : f32 to vector<20x16xf32>
    %20 = arith.select %18, %16, %19 : vector<20x16xi1>, vector<20x16xf32>
    %c0_11 = arith.constant 0 : index
    %c0_12 = arith.constant 0 : index
    %21 = vector.load %arg4[%c0_11, %c0_12] : memref<1x16xf32, #tpu.memory_space<vmem>>, vector<1x16xf32>
    %22 = vector.broadcast %21 : vector<1x16xf32> to vector<20x16xf32>
    %23 = arith.addf %20, %22 : vector<20x16xf32>
    %cst_13 = arith.constant 0.000000e+00 : f32
    %24 = vector.broadcast %cst_13 : f32 to vector<20x16xf32>
    %25 = arith.maximumf %23, %24 : vector<20x16xf32>
    %c0_14 = arith.constant 0 : index
    %c0_15 = arith.constant 0 : index
    %26 = vector.load %arg5[%c0_14, %c0_15] : memref<4x20xf32, #tpu.memory_space<vmem>>, vector<4x20xf32>
    %cst_16 = arith.constant dense<0.000000e+00> : vector<4x16xf32>
    %27 = tpu.matmul %26, %25, %cst_16 {dimension_numbers = #tpu.dot_dimension_numbers<[1], [0], [0], [1], [0, 0, 1, 1], [], []>} : vector<4x20xf32>, vector<20x16xf32>, vector<4x16xf32> -> vector<4x16xf32>
    %c0_17 = arith.constant 0 : index
    %c0_18 = arith.constant 0 : index
    %28 = vector.load %arg7[%c0_17, %c0_18] : memref<4x1xf32, #tpu.memory_space<vmem>>, vector<4x1xf32>
    %29 = vector.broadcast %28 : vector<4x1xf32> to vector<4x16xf32>
    %30 = arith.divf %27, %29 : vector<4x16xf32>
    %c0_19 = arith.constant 0 : index
    %c0_20 = arith.constant 0 : index
    %31 = vector.load %arg6[%c0_19, %c0_20] : memref<20x4xf32, #tpu.memory_space<vmem>>, vector<20x4xf32>
    %32 = vector.extract_strided_slice %31 {offsets = [0, 0], sizes = [20, 1], strides = [1, 1]} : vector<20x4xf32> to vector<20x1xf32>
    %33 = vector.broadcast %32 : vector<20x1xf32> to vector<20x16xf32>
    %34 = arith.mulf %25, %33 : vector<20x16xf32>
    %cst_21 = arith.constant dense<0xFF800000> : vector<16xf32>
    %35 = vector.multi_reduction <maximumf>, %34, %cst_21 [0] : vector<20x16xf32> to vector<16xf32>
    %36 = vector.shape_cast %35 : vector<16xf32> to vector<1x16xf32>
    %37 = vector.extract_strided_slice %31 {offsets = [0, 1], sizes = [20, 1], strides = [1, 1]} : vector<20x4xf32> to vector<20x1xf32>
    %38 = vector.broadcast %37 : vector<20x1xf32> to vector<20x16xf32>
    %39 = arith.mulf %25, %38 : vector<20x16xf32>
    %cst_22 = arith.constant dense<0xFF800000> : vector<16xf32>
    %40 = vector.multi_reduction <maximumf>, %39, %cst_22 [0] : vector<20x16xf32> to vector<16xf32>
    %41 = vector.shape_cast %40 : vector<16xf32> to vector<1x16xf32>
    %42 = vector.extract_strided_slice %31 {offsets = [0, 2], sizes = [20, 1], strides = [1, 1]} : vector<20x4xf32> to vector<20x1xf32>
    %43 = vector.broadcast %42 : vector<20x1xf32> to vector<20x16xf32>
    %44 = arith.mulf %25, %43 : vector<20x16xf32>
    %cst_23 = arith.constant dense<0xFF800000> : vector<16xf32>
    %45 = vector.multi_reduction <maximumf>, %44, %cst_23 [0] : vector<20x16xf32> to vector<16xf32>
    %46 = vector.shape_cast %45 : vector<16xf32> to vector<1x16xf32>
    %47 = vector.extract_strided_slice %31 {offsets = [0, 3], sizes = [20, 1], strides = [1, 1]} : vector<20x4xf32> to vector<20x1xf32>
    %48 = vector.broadcast %47 : vector<20x1xf32> to vector<20x16xf32>
    %49 = arith.mulf %25, %48 : vector<20x16xf32>
    %cst_24 = arith.constant dense<0xFF800000> : vector<16xf32>
    %50 = vector.multi_reduction <maximumf>, %49, %cst_24 [0] : vector<20x16xf32> to vector<16xf32>
    %51 = vector.shape_cast %50 : vector<16xf32> to vector<1x16xf32>
    %52 = tpu.concatenate %36, %41, %46, %51 in 0 : vector<1x16xf32>, vector<1x16xf32>, vector<1x16xf32>, vector<1x16xf32> -> vector<4x16xf32>
    %53 = tpu.concatenate %30, %52 in 1 : vector<4x16xf32>, vector<4x16xf32> -> vector<4x32xf32>
    %c0_25 = arith.constant 0 : index
    %c0_26 = arith.constant 0 : index
    %54 = vector.load %arg16[%c0_25, %c0_26] : memref<4x32xf32, #tpu.memory_space<vmem>>, vector<4x32xf32>
    tpu.vector_store %arg16[%c0_25, %c0_26], %53 {strides = array<i32>} : memref<4x32xf32, #tpu.memory_space<vmem>>, vector<4x32xf32>,
    %c0_27 = arith.constant 0 : index
    %c0_28 = arith.constant 0 : index
    %55 = vector.load %arg9[%c0_27, %c0_28] : memref<16x1xf32, #tpu.memory_space<vmem>>, vector<16x1xf32>
    %cst_29 = arith.constant dense<0.000000e+00> : vector<20x1xf32>
    %56 = tpu.matmul %25, %55, %cst_29 {dimension_numbers = #tpu.dot_dimension_numbers<[1], [0], [0], [1], [0, 0, 1, 1], [], []>} : vector<20x16xf32>, vector<16x1xf32>, vector<20x1xf32> -> vector<20x1xf32>
    %57 = math.tanh %56 : vector<20x1xf32>
    %c0_30 = arith.constant 0 : index
    %c0_31 = arith.constant 0 : index
    %58 = vector.load %arg8[%c0_30, %c0_31] : memref<1x16xf32, #tpu.memory_space<vmem>>, vector<1x16xf32>
    %cst_32 = arith.constant dense<0.000000e+00> : vector<1x20xf32>
    %59 = tpu.matmul %58, %25, %cst_32 {dimension_numbers = #tpu.dot_dimension_numbers<[1], [1], [0], [0], [0, 0, 1, 0], [], []>} : vector<1x16xf32>, vector<20x16xf32>, vector<1x20xf32> -> vector<1x20xf32>
    %60 = math.tanh %59 : vector<1x20xf32>
    %61 = tpu.iota {dimensions = array<i32: 0>} : vector<20x20xi32>
    %62 = tpu.iota {dimensions = array<i32: 1>} : vector<20x20xi32>
    %c0_33 = arith.constant 0 : index
    %c0_34 = arith.constant 0 : index
    %63 = vector.load %arg11[%c0_33, %c0_34] : memref<1x20xf32, #tpu.memory_space<vmem>>, vector<1x20xf32>
    %c0_35 = arith.constant 0 : index
    %c0_36 = arith.constant 0 : index
    %64 = vector.load %arg10[%c0_35, %c0_36] : memref<20x1xf32, #tpu.memory_space<vmem>>, vector<20x1xf32>
    %65 = vector.broadcast %63 : vector<1x20xf32> to vector<20x20xf32>
    %66 = vector.broadcast %64 : vector<20x1xf32> to vector<20x20xf32>
    %67 = arith.cmpf oeq, %65, %66 : vector<20x20xf32>
    %68 = vector.broadcast %60 : vector<1x20xf32> to vector<20x20xf32>
    %69 = vector.broadcast %57 : vector<20x1xf32> to vector<20x20xf32>
    %70 = arith.cmpf ogt, %68, %69 : vector<20x20xf32>
    %71 = vector.broadcast %60 : vector<1x20xf32> to vector<20x20xf32>
    %72 = vector.broadcast %57 : vector<20x1xf32> to vector<20x20xf32>
    %73 = arith.cmpf oge, %71, %72 : vector<20x20xf32>
    %74 = arith.cmpi slt, %62, %61 : vector<20x20xi32>
    %75 = arith.andi %73, %74 : vector<20x20xi1>
    %76 = arith.ori %70, %75 : vector<20x20xi1>
    %c0_37 = arith.constant 0 : index
    %c0_38 = arith.constant 0 : index
    %77 = vector.load %arg13[%c0_37, %c0_38] : memref<1x20xf32, #tpu.memory_space<vmem>>, vector<1x20xf32>
    %cst_39 = arith.constant 0.000000e+00 : f32
    %78 = vector.broadcast %cst_39 : f32 to vector<1x20xf32>
    %79 = arith.cmpf ogt, %77, %78 : vector<1x20xf32>
    %80 = vector.broadcast %79 : vector<1x20xi1> to vector<20x20xi1>
    %81 = arith.andi %67, %80 : vector<20x20xi1>
    %82 = arith.cmpi ne, %61, %62 : vector<20x20xi32>
    %83 = arith.andi %82, %76 : vector<20x20xi1>
    %84 = arith.andi %81, %83 : vector<20x20xi1>
    %85 = arith.extui %84 : vector<20x20xi1> to vector<20x20xi32>
    %86 = arith.sitofp %85 : vector<20x20xi32> to vector<20x20xf32>
    %cst_40 = arith.constant dense<0.000000e+00> : vector<20xf32>
    %87 = vector.multi_reduction <add>, %86, %cst_40 [1] : vector<20x20xf32> to vector<20xf32>
    %88 = vector.shape_cast %87 : vector<20xf32> to vector<20x1xf32>
    %c0_41 = arith.constant 0 : index
    %c0_42 = arith.constant 0 : index
    %89 = vector.load %arg12[%c0_41, %c0_42] : memref<20x1xf32, #tpu.memory_space<vmem>>, vector<20x1xf32>
    %cst_43 = arith.constant 0.000000e+00 : f32
    %90 = vector.broadcast %cst_43 : f32 to vector<20x1xf32>
    %91 = arith.cmpf ogt, %89, %90 : vector<20x1xf32>
    %c0_44 = arith.constant 0 : index
    %c0_45 = arith.constant 0 : index
    %92 = vector.load %arg14[%c0_44, %c0_45] : memref<20x1xf32, #tpu.memory_space<vmem>>, vector<20x1xf32>
    %93 = arith.cmpf olt, %88, %92 : vector<20x1xf32>
    %94 = arith.andi %91, %93 : vector<20x1xi1>
    %95 = arith.extui %94 : vector<20x1xi1> to vector<20x1xi32>
    %96 = arith.sitofp %95 : vector<20x1xi32> to vector<20x1xf32>
    %c0_46 = arith.constant 0 : index
    %c0_47 = arith.constant 0 : index
    %97 = vector.load %arg17[%c0_46, %c0_47] : memref<20x1xf32, #tpu.memory_space<vmem>>, vector<20x1xf32>
    tpu.vector_store %arg17[%c0_46, %c0_47], %96 {strides = array<i32>} : memref<20x1xf32, #tpu.memory_space<vmem>>, vector<20x1xf32>,
    %98 = vector.broadcast %57 : vector<20x1xf32> to vector<20x16xf32>
    %99 = arith.mulf %25, %98 : vector<20x16xf32>
    %100 = vector.broadcast %96 : vector<20x1xf32> to vector<20x16xf32>
    %101 = arith.mulf %99, %100 : vector<20x16xf32>
    %c0_48 = arith.constant 0 : index
    %c0_49 = arith.constant 0 : index
    %102 = vector.load %arg15[%c0_48, %c0_49] : memref<16x2176xf32, #tpu.memory_space<vmem>>, vector<16x2176xf32>
    %cst_50 = arith.constant dense<0.000000e+00> : vector<20x2176xf32>
    %103 = tpu.matmul %101, %102, %cst_50 {dimension_numbers = #tpu.dot_dimension_numbers<[1], [0], [0], [1], [0, 0, 1, 1], [], []>} : vector<20x16xf32>, vector<16x2176xf32>, vector<20x2176xf32> -> vector<20x2176xf32>
    %104 = arith.truncf %103 : vector<20x2176xf32> to vector<20x2176xbf16>
    %c0_51 = arith.constant 0 : index
    %c0_52 = arith.constant 0 : index
    %105 = vector.load %arg18[%c0_51, %c0_52] : memref<20x2176xbf16, #tpu.memory_space<vmem>>, vector<20x2176xbf16>
    tpu.vector_store %arg18[%c0_51, %c0_52], %104 {strides = array<i32>} : memref<20x2176xbf16, #tpu.memory_space<vmem>>, vector<20x2176xbf16>,
    return
  }
}

module attributes {stable_mosaic.version = 11 : i64} {
  func.func @_gru_mlp_kernel(%arg0: memref<4x96xf32, #tpu.memory_space<vmem>>, %arg1: memref<96x16xf32, #tpu.memory_space<vmem>>, %arg2: memref<96x16xf32, #tpu.memory_space<vmem>>, %arg3: memref<96x16xf32, #tpu.memory_space<vmem>>, %arg4: memref<16x16xf32, #tpu.memory_space<vmem>>, %arg5: memref<16x16xf32, #tpu.memory_space<vmem>>, %arg6: memref<16x16xf32, #tpu.memory_space<vmem>>, %arg7: memref<1x16xf32, #tpu.memory_space<vmem>>, %arg8: memref<1x16xf32, #tpu.memory_space<vmem>>, %arg9: memref<1x16xf32, #tpu.memory_space<vmem>>, %arg10: memref<1x16xf32, #tpu.memory_space<vmem>>, %arg11: memref<1x16xf32, #tpu.memory_space<vmem>>, %arg12: memref<1x16xf32, #tpu.memory_space<vmem>>, %arg13: memref<16x4xf32, #tpu.memory_space<vmem>>, %arg14: memref<1x4xf32, #tpu.memory_space<vmem>>, %arg15: memref<4x1xf32, #tpu.memory_space<vmem>>, %arg16: memref<1x1xf32, #tpu.memory_space<vmem>>, %arg17: memref<4x1xf32, #tpu.memory_space<vmem>>) attributes {dimension_semantics = [], scalar_prefetch = 0 : i64, scratch_operands = 0 : i64, tpu.core_type = #tpu.core_type<tc>} {
    %c0 = arith.constant 0 : index
    %c0_0 = arith.constant 0 : index
    %0 = vector.load %arg0[%c0, %c0_0] : memref<4x96xf32, #tpu.memory_space<vmem>>, vector<4x96xf32>
    %c0_1 = arith.constant 0 : index
    %c0_2 = arith.constant 0 : index
    %1 = vector.load %arg1[%c0_1, %c0_2] : memref<96x16xf32, #tpu.memory_space<vmem>>, vector<96x16xf32>
    %cst = arith.constant dense<0.000000e+00> : vector<4x16xf32>
    %2 = tpu.matmul %0, %1, %cst {dimension_numbers = #tpu.dot_dimension_numbers<[1], [0], [0], [1], [0, 0, 1, 1], [], []>} : vector<4x96xf32>, vector<96x16xf32>, vector<4x16xf32> -> vector<4x16xf32>
    %c0_3 = arith.constant 0 : index
    %c0_4 = arith.constant 0 : index
    %3 = vector.load %arg7[%c0_3, %c0_4] : memref<1x16xf32, #tpu.memory_space<vmem>>, vector<1x16xf32>
    %4 = vector.broadcast %3 : vector<1x16xf32> to vector<4x16xf32>
    %5 = arith.addf %2, %4 : vector<4x16xf32>
    %c0_5 = arith.constant 0 : index
    %c0_6 = arith.constant 0 : index
    %6 = vector.load %arg2[%c0_5, %c0_6] : memref<96x16xf32, #tpu.memory_space<vmem>>, vector<96x16xf32>
    %cst_7 = arith.constant dense<0.000000e+00> : vector<4x16xf32>
    %7 = tpu.matmul %0, %6, %cst_7 {dimension_numbers = #tpu.dot_dimension_numbers<[1], [0], [0], [1], [0, 0, 1, 1], [], []>} : vector<4x96xf32>, vector<96x16xf32>, vector<4x16xf32> -> vector<4x16xf32>
    %c0_8 = arith.constant 0 : index
    %c0_9 = arith.constant 0 : index
    %8 = vector.load %arg8[%c0_8, %c0_9] : memref<1x16xf32, #tpu.memory_space<vmem>>, vector<1x16xf32>
    %9 = vector.broadcast %8 : vector<1x16xf32> to vector<4x16xf32>
    %10 = arith.addf %7, %9 : vector<4x16xf32>
    %c0_10 = arith.constant 0 : index
    %c0_11 = arith.constant 0 : index
    %11 = vector.load %arg3[%c0_10, %c0_11] : memref<96x16xf32, #tpu.memory_space<vmem>>, vector<96x16xf32>
    %cst_12 = arith.constant dense<0.000000e+00> : vector<4x16xf32>
    %12 = tpu.matmul %0, %11, %cst_12 {dimension_numbers = #tpu.dot_dimension_numbers<[1], [0], [0], [1], [0, 0, 1, 1], [], []>} : vector<4x96xf32>, vector<96x16xf32>, vector<4x16xf32> -> vector<4x16xf32>
    %c0_13 = arith.constant 0 : index
    %c0_14 = arith.constant 0 : index
    %13 = vector.load %arg9[%c0_13, %c0_14] : memref<1x16xf32, #tpu.memory_space<vmem>>, vector<1x16xf32>
    %14 = vector.broadcast %13 : vector<1x16xf32> to vector<4x16xf32>
    %15 = arith.addf %12, %14 : vector<4x16xf32>
    %c0_15 = arith.constant 0 : index
    %c0_16 = arith.constant 0 : index
    %16 = vector.load %arg4[%c0_15, %c0_16] : memref<16x16xf32, #tpu.memory_space<vmem>>, vector<16x16xf32>
    %c0_17 = arith.constant 0 : index
    %c0_18 = arith.constant 0 : index
    %17 = vector.load %arg5[%c0_17, %c0_18] : memref<16x16xf32, #tpu.memory_space<vmem>>, vector<16x16xf32>
    %c0_19 = arith.constant 0 : index
    %c0_20 = arith.constant 0 : index
    %18 = vector.load %arg6[%c0_19, %c0_20] : memref<16x16xf32, #tpu.memory_space<vmem>>, vector<16x16xf32>
    %c0_21 = arith.constant 0 : index
    %c0_22 = arith.constant 0 : index
    %19 = vector.load %arg10[%c0_21, %c0_22] : memref<1x16xf32, #tpu.memory_space<vmem>>, vector<1x16xf32>
    %c0_23 = arith.constant 0 : index
    %c0_24 = arith.constant 0 : index
    %20 = vector.load %arg11[%c0_23, %c0_24] : memref<1x16xf32, #tpu.memory_space<vmem>>, vector<1x16xf32>
    %c0_25 = arith.constant 0 : index
    %c0_26 = arith.constant 0 : index
    %21 = vector.load %arg12[%c0_25, %c0_26] : memref<1x16xf32, #tpu.memory_space<vmem>>, vector<1x16xf32>
    %cst_27 = arith.constant 0.000000e+00 : f32
    %22 = vector.broadcast %cst_27 : f32 to vector<1x16xf32>
    %cst_28 = arith.constant dense<0.000000e+00> : vector<1x16xf32>
    %23 = tpu.matmul %22, %16, %cst_28 {dimension_numbers = #tpu.dot_dimension_numbers<[1], [0], [0], [1], [0, 0, 1, 1], [], []>} : vector<1x16xf32>, vector<16x16xf32>, vector<1x16xf32> -> vector<1x16xf32>
    %24 = arith.addf %23, %19 : vector<1x16xf32>
    %cst_29 = arith.constant dense<0.000000e+00> : vector<1x16xf32>
    %25 = tpu.matmul %22, %17, %cst_29 {dimension_numbers = #tpu.dot_dimension_numbers<[1], [0], [0], [1], [0, 0, 1, 1], [], []>} : vector<1x16xf32>, vector<16x16xf32>, vector<1x16xf32> -> vector<1x16xf32>
    %26 = arith.addf %25, %20 : vector<1x16xf32>
    %cst_30 = arith.constant dense<0.000000e+00> : vector<1x16xf32>
    %27 = tpu.matmul %22, %18, %cst_30 {dimension_numbers = #tpu.dot_dimension_numbers<[1], [0], [0], [1], [0, 0, 1, 1], [], []>} : vector<1x16xf32>, vector<16x16xf32>, vector<1x16xf32> -> vector<1x16xf32>
    %28 = arith.addf %27, %21 : vector<1x16xf32>
    %29 = vector.extract_strided_slice %5 {offsets = [0, 0], sizes = [1, 16], strides = [1, 1]} : vector<4x16xf32> to vector<1x16xf32>
    %30 = arith.addf %29, %24 : vector<1x16xf32>
    %31 = arith.negf %30 : vector<1x16xf32>
    %32 = math.exp %31 : vector<1x16xf32>
    %cst_31 = arith.constant 1.000000e+00 : f32
    %33 = vector.broadcast %cst_31 : f32 to vector<1x16xf32>
    %34 = arith.addf %33, %32 : vector<1x16xf32>
    %35 = arith.divf %33, %34 : vector<1x16xf32>
    %36 = vector.extract_strided_slice %10 {offsets = [0, 0], sizes = [1, 16], strides = [1, 1]} : vector<4x16xf32> to vector<1x16xf32>
    %37 = arith.addf %36, %26 : vector<1x16xf32>
    %38 = arith.negf %37 : vector<1x16xf32>
    %39 = math.exp %38 : vector<1x16xf32>
    %cst_32 = arith.constant 1.000000e+00 : f32
    %40 = vector.broadcast %cst_32 : f32 to vector<1x16xf32>
    %41 = arith.addf %40, %39 : vector<1x16xf32>
    %42 = arith.divf %40, %41 : vector<1x16xf32>
    %43 = vector.extract_strided_slice %15 {offsets = [0, 0], sizes = [1, 16], strides = [1, 1]} : vector<4x16xf32> to vector<1x16xf32>
    %44 = arith.mulf %35, %28 : vector<1x16xf32>
    %45 = arith.addf %43, %44 : vector<1x16xf32>
    %46 = math.tanh %45 : vector<1x16xf32>
    %cst_33 = arith.constant 1.000000e+00 : f32
    %47 = vector.broadcast %cst_33 : f32 to vector<1x16xf32>
    %48 = arith.subf %47, %42 : vector<1x16xf32>
    %49 = arith.mulf %48, %46 : vector<1x16xf32>
    %50 = arith.mulf %42, %22 : vector<1x16xf32>
    %51 = arith.addf %49, %50 : vector<1x16xf32>
    %cst_34 = arith.constant dense<0.000000e+00> : vector<1x16xf32>
    %52 = tpu.matmul %51, %16, %cst_34 {dimension_numbers = #tpu.dot_dimension_numbers<[1], [0], [0], [1], [0, 0, 1, 1], [], []>} : vector<1x16xf32>, vector<16x16xf32>, vector<1x16xf32> -> vector<1x16xf32>
    %53 = arith.addf %52, %19 : vector<1x16xf32>
    %cst_35 = arith.constant dense<0.000000e+00> : vector<1x16xf32>
    %54 = tpu.matmul %51, %17, %cst_35 {dimension_numbers = #tpu.dot_dimension_numbers<[1], [0], [0], [1], [0, 0, 1, 1], [], []>} : vector<1x16xf32>, vector<16x16xf32>, vector<1x16xf32> -> vector<1x16xf32>
    %55 = arith.addf %54, %20 : vector<1x16xf32>
    %cst_36 = arith.constant dense<0.000000e+00> : vector<1x16xf32>
    %56 = tpu.matmul %51, %18, %cst_36 {dimension_numbers = #tpu.dot_dimension_numbers<[1], [0], [0], [1], [0, 0, 1, 1], [], []>} : vector<1x16xf32>, vector<16x16xf32>, vector<1x16xf32> -> vector<1x16xf32>
    %57 = arith.addf %56, %21 : vector<1x16xf32>
    %58 = vector.extract_strided_slice %5 {offsets = [1, 0], sizes = [1, 16], strides = [1, 1]} : vector<4x16xf32> to vector<1x16xf32>
    %59 = arith.addf %58, %53 : vector<1x16xf32>
    %60 = arith.negf %59 : vector<1x16xf32>
    %61 = math.exp %60 : vector<1x16xf32>
    %cst_37 = arith.constant 1.000000e+00 : f32
    %62 = vector.broadcast %cst_37 : f32 to vector<1x16xf32>
    %63 = arith.addf %62, %61 : vector<1x16xf32>
    %64 = arith.divf %62, %63 : vector<1x16xf32>
    %65 = vector.extract_strided_slice %10 {offsets = [1, 0], sizes = [1, 16], strides = [1, 1]} : vector<4x16xf32> to vector<1x16xf32>
    %66 = arith.addf %65, %55 : vector<1x16xf32>
    %67 = arith.negf %66 : vector<1x16xf32>
    %68 = math.exp %67 : vector<1x16xf32>
    %cst_38 = arith.constant 1.000000e+00 : f32
    %69 = vector.broadcast %cst_38 : f32 to vector<1x16xf32>
    %70 = arith.addf %69, %68 : vector<1x16xf32>
    %71 = arith.divf %69, %70 : vector<1x16xf32>
    %72 = vector.extract_strided_slice %15 {offsets = [1, 0], sizes = [1, 16], strides = [1, 1]} : vector<4x16xf32> to vector<1x16xf32>
    %73 = arith.mulf %64, %57 : vector<1x16xf32>
    %74 = arith.addf %72, %73 : vector<1x16xf32>
    %75 = math.tanh %74 : vector<1x16xf32>
    %cst_39 = arith.constant 1.000000e+00 : f32
    %76 = vector.broadcast %cst_39 : f32 to vector<1x16xf32>
    %77 = arith.subf %76, %71 : vector<1x16xf32>
    %78 = arith.mulf %77, %75 : vector<1x16xf32>
    %79 = arith.mulf %71, %51 : vector<1x16xf32>
    %80 = arith.addf %78, %79 : vector<1x16xf32>
    %cst_40 = arith.constant dense<0.000000e+00> : vector<1x16xf32>
    %81 = tpu.matmul %80, %16, %cst_40 {dimension_numbers = #tpu.dot_dimension_numbers<[1], [0], [0], [1], [0, 0, 1, 1], [], []>} : vector<1x16xf32>, vector<16x16xf32>, vector<1x16xf32> -> vector<1x16xf32>
    %82 = arith.addf %81, %19 : vector<1x16xf32>
    %cst_41 = arith.constant dense<0.000000e+00> : vector<1x16xf32>
    %83 = tpu.matmul %80, %17, %cst_41 {dimension_numbers = #tpu.dot_dimension_numbers<[1], [0], [0], [1], [0, 0, 1, 1], [], []>} : vector<1x16xf32>, vector<16x16xf32>, vector<1x16xf32> -> vector<1x16xf32>
    %84 = arith.addf %83, %20 : vector<1x16xf32>
    %cst_42 = arith.constant dense<0.000000e+00> : vector<1x16xf32>
    %85 = tpu.matmul %80, %18, %cst_42 {dimension_numbers = #tpu.dot_dimension_numbers<[1], [0], [0], [1], [0, 0, 1, 1], [], []>} : vector<1x16xf32>, vector<16x16xf32>, vector<1x16xf32> -> vector<1x16xf32>
    %86 = arith.addf %85, %21 : vector<1x16xf32>
    %87 = vector.extract_strided_slice %5 {offsets = [2, 0], sizes = [1, 16], strides = [1, 1]} : vector<4x16xf32> to vector<1x16xf32>
    %88 = arith.addf %87, %82 : vector<1x16xf32>
    %89 = arith.negf %88 : vector<1x16xf32>
    %90 = math.exp %89 : vector<1x16xf32>
    %cst_43 = arith.constant 1.000000e+00 : f32
    %91 = vector.broadcast %cst_43 : f32 to vector<1x16xf32>
    %92 = arith.addf %91, %90 : vector<1x16xf32>
    %93 = arith.divf %91, %92 : vector<1x16xf32>
    %94 = vector.extract_strided_slice %10 {offsets = [2, 0], sizes = [1, 16], strides = [1, 1]} : vector<4x16xf32> to vector<1x16xf32>
    %95 = arith.addf %94, %84 : vector<1x16xf32>
    %96 = arith.negf %95 : vector<1x16xf32>
    %97 = math.exp %96 : vector<1x16xf32>
    %cst_44 = arith.constant 1.000000e+00 : f32
    %98 = vector.broadcast %cst_44 : f32 to vector<1x16xf32>
    %99 = arith.addf %98, %97 : vector<1x16xf32>
    %100 = arith.divf %98, %99 : vector<1x16xf32>
    %101 = vector.extract_strided_slice %15 {offsets = [2, 0], sizes = [1, 16], strides = [1, 1]} : vector<4x16xf32> to vector<1x16xf32>
    %102 = arith.mulf %93, %86 : vector<1x16xf32>
    %103 = arith.addf %101, %102 : vector<1x16xf32>
    %104 = math.tanh %103 : vector<1x16xf32>
    %cst_45 = arith.constant 1.000000e+00 : f32
    %105 = vector.broadcast %cst_45 : f32 to vector<1x16xf32>
    %106 = arith.subf %105, %100 : vector<1x16xf32>
    %107 = arith.mulf %106, %104 : vector<1x16xf32>
    %108 = arith.mulf %100, %80 : vector<1x16xf32>
    %109 = arith.addf %107, %108 : vector<1x16xf32>
    %cst_46 = arith.constant dense<0.000000e+00> : vector<1x16xf32>
    %110 = tpu.matmul %109, %16, %cst_46 {dimension_numbers = #tpu.dot_dimension_numbers<[1], [0], [0], [1], [0, 0, 1, 1], [], []>} : vector<1x16xf32>, vector<16x16xf32>, vector<1x16xf32> -> vector<1x16xf32>
    %111 = arith.addf %110, %19 : vector<1x16xf32>
    %cst_47 = arith.constant dense<0.000000e+00> : vector<1x16xf32>
    %112 = tpu.matmul %109, %17, %cst_47 {dimension_numbers = #tpu.dot_dimension_numbers<[1], [0], [0], [1], [0, 0, 1, 1], [], []>} : vector<1x16xf32>, vector<16x16xf32>, vector<1x16xf32> -> vector<1x16xf32>
    %113 = arith.addf %112, %20 : vector<1x16xf32>
    %cst_48 = arith.constant dense<0.000000e+00> : vector<1x16xf32>
    %114 = tpu.matmul %109, %18, %cst_48 {dimension_numbers = #tpu.dot_dimension_numbers<[1], [0], [0], [1], [0, 0, 1, 1], [], []>} : vector<1x16xf32>, vector<16x16xf32>, vector<1x16xf32> -> vector<1x16xf32>
    %115 = arith.addf %114, %21 : vector<1x16xf32>
    %116 = vector.extract_strided_slice %5 {offsets = [3, 0], sizes = [1, 16], strides = [1, 1]} : vector<4x16xf32> to vector<1x16xf32>
    %117 = arith.addf %116, %111 : vector<1x16xf32>
    %118 = arith.negf %117 : vector<1x16xf32>
    %119 = math.exp %118 : vector<1x16xf32>
    %cst_49 = arith.constant 1.000000e+00 : f32
    %120 = vector.broadcast %cst_49 : f32 to vector<1x16xf32>
    %121 = arith.addf %120, %119 : vector<1x16xf32>
    %122 = arith.divf %120, %121 : vector<1x16xf32>
    %123 = vector.extract_strided_slice %10 {offsets = [3, 0], sizes = [1, 16], strides = [1, 1]} : vector<4x16xf32> to vector<1x16xf32>
    %124 = arith.addf %123, %113 : vector<1x16xf32>
    %125 = arith.negf %124 : vector<1x16xf32>
    %126 = math.exp %125 : vector<1x16xf32>
    %cst_50 = arith.constant 1.000000e+00 : f32
    %127 = vector.broadcast %cst_50 : f32 to vector<1x16xf32>
    %128 = arith.addf %127, %126 : vector<1x16xf32>
    %129 = arith.divf %127, %128 : vector<1x16xf32>
    %130 = vector.extract_strided_slice %15 {offsets = [3, 0], sizes = [1, 16], strides = [1, 1]} : vector<4x16xf32> to vector<1x16xf32>
    %131 = arith.mulf %122, %115 : vector<1x16xf32>
    %132 = arith.addf %130, %131 : vector<1x16xf32>
    %133 = math.tanh %132 : vector<1x16xf32>
    %cst_51 = arith.constant 1.000000e+00 : f32
    %134 = vector.broadcast %cst_51 : f32 to vector<1x16xf32>
    %135 = arith.subf %134, %129 : vector<1x16xf32>
    %136 = arith.mulf %135, %133 : vector<1x16xf32>
    %137 = arith.mulf %129, %109 : vector<1x16xf32>
    %138 = arith.addf %136, %137 : vector<1x16xf32>
    %139 = tpu.concatenate %51, %80, %109, %138 in 0 : vector<1x16xf32>, vector<1x16xf32>, vector<1x16xf32>, vector<1x16xf32> -> vector<4x16xf32>
    %c0_52 = arith.constant 0 : index
    %c0_53 = arith.constant 0 : index
    %140 = vector.load %arg13[%c0_52, %c0_53] : memref<16x4xf32, #tpu.memory_space<vmem>>, vector<16x4xf32>
    %cst_54 = arith.constant dense<0.000000e+00> : vector<4x4xf32>
    %141 = tpu.matmul %139, %140, %cst_54 {dimension_numbers = #tpu.dot_dimension_numbers<[1], [0], [0], [1], [0, 0, 1, 1], [], []>} : vector<4x16xf32>, vector<16x4xf32>, vector<4x4xf32> -> vector<4x4xf32>
    %c0_55 = arith.constant 0 : index
    %c0_56 = arith.constant 0 : index
    %142 = vector.load %arg14[%c0_55, %c0_56] : memref<1x4xf32, #tpu.memory_space<vmem>>, vector<1x4xf32>
    %143 = vector.broadcast %142 : vector<1x4xf32> to vector<4x4xf32>
    %144 = arith.addf %141, %143 : vector<4x4xf32>
    %cst_57 = arith.constant 0.000000e+00 : f32
    %145 = vector.broadcast %cst_57 : f32 to vector<4x4xf32>
    %146 = arith.maximumf %144, %145 : vector<4x4xf32>
    %c0_58 = arith.constant 0 : index
    %c0_59 = arith.constant 0 : index
    %147 = vector.load %arg15[%c0_58, %c0_59] : memref<4x1xf32, #tpu.memory_space<vmem>>, vector<4x1xf32>
    %cst_60 = arith.constant dense<0.000000e+00> : vector<4x1xf32>
    %148 = tpu.matmul %146, %147, %cst_60 {dimension_numbers = #tpu.dot_dimension_numbers<[1], [0], [0], [1], [0, 0, 1, 1], [], []>} : vector<4x4xf32>, vector<4x1xf32>, vector<4x1xf32> -> vector<4x1xf32>
    %c0_61 = arith.constant 0 : index
    %c0_62 = arith.constant 0 : index
    %149 = vector.load %arg16[%c0_61, %c0_62] : memref<1x1xf32, #tpu.memory_space<vmem>>, vector<1x1xf32>
    %150 = vector.broadcast %149 : vector<1x1xf32> to vector<4x1xf32>
    %151 = arith.addf %148, %150 : vector<4x1xf32>
    %cst_63 = arith.constant 0.000000e+00 : f32
    %152 = vector.broadcast %cst_63 : f32 to vector<4x1xf32>
    %153 = arith.maximumf %151, %152 : vector<4x1xf32>
    %c0_64 = arith.constant 0 : index
    %c0_65 = arith.constant 0 : index
    %154 = vector.load %arg17[%c0_64, %c0_65] : memref<4x1xf32, #tpu.memory_space<vmem>>, vector<4x1xf32>
    tpu.vector_store %arg17[%c0_64, %c0_65], %153 {strides = array<i32>} : memref<4x1xf32, #tpu.memory_space<vmem>>, vector<4x1xf32>,
    return
  }
}

</mosaic_0001>

<llo_original>
// kernel: detect_model_forward.5
$region0: #{detect_model_forward.5}
  #allocation0 [shape = 'u32[]', space=smem, size = 0x4, offset = 0x4, fixed_abs, tag = 'smem constant byte address 0x4 - core index']
  #allocation1 [shape = 'u32[72,128]{1,0:T(1,128)}', space=vmem, size = 0x9000, scoped, tag = 'internal scratch']
  %s0 = inlined_call_operand.vmem [shape: f32[32,10], index: 0, kind: input, shape index: {}]
  %s1 = inlined_call_operand.vmem [shape: f32[10,2176], index: 1, kind: input, shape index: {}]
  %s2 = inlined_call_operand.vmem [shape: bf16[32,2176], index: 2, kind: output, shape index: {}]
  %s3 = sld [smem:[#allocation0]]
  $region41: #{detect_model_forward.5} parent=0
    _
  %s5 = ssub.s32 1, %s3
  %s6 = scalar_select 0, %s5, %s3
  loop: start=0, step=1, limit=4
  $region2: #{detect_model_forward.5} parent=0 // loop_pre_header
    _
  $region3: #{detect_model_forward.5} parent=0 // loop_header
    %s8 = sphi 0, %s12
    %p9 = scmp.ge.s32.totalorder %s8, 4
    %s18 = sphi 0, %s20
    %s21 = sphi 0, %s18
    %s22 = sphi 0, %s21
    %s38 = sphi 0, %s22
    %s42 = sphi 0, %s42
    %s44 = sphi 0, %s42
    %s45 = sphi 0, %s44
    %s59 = sphi 0, %s45
    %s65 = sphi 0, %s67
    %s68 = sphi 0, %s65
    %s69 = sphi 0, %s68
    %s85 = sphi 0, %s69
  $region4: #{detect_model_forward.5} parent=0 // loop_header_branch
    %11 = sbr.rel (%p9) target = $region8
  $region5: #{detect_model_forward.5} parent=0 // loop_body
    %s13 = ssub.s32 %s8, 1
    %s14 = ssub.s32 %s8, 2
    %s15 = sadd.s32 %s8, 1
    %s16 = ssub.s32 %s8, %s15
    %p17 = scmp.eq.s32.totalorder %s16, 0
    %s19 = sadd.s32 %s18, 1
    %s20 = scalar_select %p17, %s18, %s19
    %p23 = pneg %p17
    %p24 = scmp.eq.s32.totalorder %s8, 1
    %p25 = por %p23, %p24
    %p26 = scmp.ne.s32.totalorder %s18, %s21
    %p27 = scmp.eq.s32.totalorder %s8, 0
    %p28 = por %p26, %p27
    %p29 = scmp.ne.s32.totalorder %s18, %s21
    %p30 = scmp.eq.s32.totalorder %s13, 1
    %p31 = por %p29, %p30
    %p32 = scmp.ne.s32.totalorder %s21, %s22
    %p33 = scmp.eq.s32.totalorder %s13, 0
    %p34 = por %p32, %p33
    %p35 = scmp.ne.s32.totalorder %s21, %s22
    %p36 = scmp.eq.s32.totalorder %s14, 1
    %p37 = por %p35, %p36
    %p39 = scmp.ne.s32.totalorder %s22, %s38
    %p40 = scmp.eq.s32.totalorder %s14, 0
    %p41 = por %p39, %p40
    %s43 = sadd.s32 %s42, 1
    %p46 = scmp.eq.s32.totalorder %s8, 1
    %p47 = scmp.ne.s32.totalorder %s42, %s44
    %p48 = scmp.eq.s32.totalorder %s8, 0
    %p49 = por %p47, %p48
    %p50 = scmp.ne.s32.totalorder %s42, %s44
    %p51 = scmp.eq.s32.totalorder %s13, 1
    %p52 = por %p50, %p51
    %p53 = scmp.ne.s32.totalorder %s44, %s45
    %p54 = scmp.eq.s32.totalorder %s13, 0
    %p55 = por %p53, %p54
    %p56 = scmp.ne.s32.totalorder %s44, %s45
    %p57 = scmp.eq.s32.totalorder %s14, 1
    %p58 = por %p56, %p57
    %p60 = scmp.ne.s32.totalorder %s45, %s59
    %p61 = scmp.eq.s32.totalorder %s14, 0
    %p62 = por %p60, %p61
    %s63 = ssub.s32 %s8, %s15
    %p64 = scmp.eq.s32.totalorder %s63, 0
    %s66 = sadd.s32 %s65, 1
    %s67 = scalar_select %p64, %s65, %s66
    %p70 = pneg %p64
    %p71 = scmp.eq.s32.totalorder %s8, 1
    %p72 = por %p70, %p71
    %p73 = scmp.ne.s32.totalorder %s65, %s68
    %p74 = scmp.eq.s32.totalorder %s8, 0
    %p75 = por %p73, %p74
    %p76 = scmp.ne.s32.totalorder %s65, %s68
    %p77 = scmp.eq.s32.totalorder %s13, 1
    %p78 = por %p76, %p77
    %p79 = scmp.ne.s32.totalorder %s68, %s69
    %p80 = scmp.eq.s32.totalorder %s13, 0
    %p81 = por %p79, %p80
    %p82 = scmp.ne.s32.totalorder %s68, %s69
    %p83 = scmp.eq.s32.totalorder %s14, 1
    %p84 = por %p82, %p83
    %p86 = scmp.ne.s32.totalorder %s69, %s85
    %p87 = scmp.eq.s32.totalorder %s14, 0
    %p88 = por %p86, %p87
    %p89 = scmp.le.s32.totalorder 1, %s8
    %p90 = scmp.lt.s32.totalorder %s8, 3
    %p91 = pnand %p89, %p90
    %p92 = pneg %p91
    // Predicated region
    $region9: #{detect_model_forward.5} parent=5 // pred_check
      _
    $region10: #{detect_model_forward.5} parent=5 // pred_check_branch
      %94 = sbr.rel (%p91) target = $region12
    $region11: #{detect_model_forward.5} parent=5 // pred_region
      %s95 = ssub.s32 %s8, 1
      // Predicated region
      $region13: #{detect_model_forward.5} parent=11 // pred_check
        %p96 = pneg %p55
      $region14: #{detect_model_forward.5} parent=11 // pred_check_branch
        %98 = sbr.rel (%p96) target = $region16
      $region15: #{detect_model_forward.5} parent=11 // pred_region
        _
      $region16: #{detect_model_forward.5} parent=11 // pred_fallthru
        _
    $region12: #{detect_model_forward.5} parent=5 // pred_fallthru
      _
    %p99 = scmp.lt.s32.totalorder %s8, 2
    // Predicated region
    $region17: #{detect_model_forward.5} parent=5 // pred_check
      %p100 = pneg %p99
    $region18: #{detect_model_forward.5} parent=5 // pred_check_branch
      %102 = sbr.rel (%p100) target = $region20
    $region19: #{detect_model_forward.5} parent=5 // pred_region
      // Predicated region
      $region21: #{detect_model_forward.5} parent=19 // pred_check
        %p103 = pneg %p28
      $region22: #{detect_model_forward.5} parent=19 // pred_check_branch
        %105 = sbr.rel (%p103) target = $region24
      $region23: #{detect_model_forward.5} parent=19 // pred_region
        %s106 = smul.u32 2, %s8
        %p107 = scmp.lt.s32.totalorder %s106, 3
        %s108 = scalar_select %p107, %s106, 3
        %s109 = smul.addr %s108, 8
        %s110 = scalar_lea.vmem %s0, %s109
        %s111 = smul.u32 2, %s8
      $region24: #{detect_model_forward.5} parent=19 // pred_fallthru
        _
    $region20: #{detect_model_forward.5} parent=5 // pred_fallthru
      _
    %p112 = scmp.le.s32.totalorder 1, %s8
    %p113 = scmp.lt.s32.totalorder %s8, 3
    %p114 = pnand %p112, %p113
    %p115 = pneg %p114
    // Predicated region
    $region25: #{detect_model_forward.5} parent=5 // pred_check
      _
    $region26: #{detect_model_forward.5} parent=5 // pred_check_branch
      %117 = sbr.rel (%p114) target = $region28
    $region27: #{detect_model_forward.5} parent=5 // pred_region
      %s118 = ssub.s32 %s8, 1
      %s119 = smul.u32 2, %s13
      %p120 = scmp.lt.s32.totalorder %s119, 3
      %s121 = scalar_select %p120, %s119, 3
      %s122 = smul.addr %s121, 8
      %s123 = scalar_lea.vmem %s0, %s122
      %p124 = pneg %p34
      %p125 = pneg %p31
      %p126 = pneg %p55
      %p127 = pneg %p52
      %p128 = pneg %p81
      %p129 = pneg %p78
      %s130 = smul.u32 2, %s13
      %p131 = scmp.lt.s32.totalorder %s130, 3
      %s132 = scalar_select %p131, %s130, 3
      %s133 = smul.addr %s132, 17
      %s134 = smul.addr %s133, 4
      %s135 = scalar_lea.vmem %s2, %s134
      %s136 = smul.u32 2, %s13
      %p137 = scmp.lt.s32.totalorder %s136, 3
      %s138 = scalar_select %p137, %s136, 3
      %s139 = smul.addr %s138, 8
      %s140 = scalar_lea.vmem %s0, %s139
      %s141 = smul.u32 2, %s13
      %s142 = smul.u32 2, %s13
      %p143 = scmp.lt.s32.totalorder %s142, 3
      %s144 = scalar_select %p143, %s142, 3
      %s145 = smul.addr %s144, 17
      %s146 = smul.addr %s145, 4
      %s147 = scalar_lea.vmem %s2, %s146
      %s148 = smul.u32 2, %s13
      %v149 = vld [vmem:[%s140] sm:$0xff]
      %v150 = vld [vmem:[%s140 + $0x8] sm:$0xff]
      %v151 = vld [vmem:[%s1] sm:$0xff]
      %v152 = vld [vmem:[%s1 + $0x8] sm:$0xff]
      %v153 = vld [vmem:[%s1 + $0x10] sm:$0xff]
      %v154 = vld [vmem:[%s1 + $0x18] sm:$0xff]
      %v155 = vld [vmem:[%s1 + $0x20] sm:$0xff]
      %v156 = vld [vmem:[%s1 + $0x28] sm:$0xff]
      %v157 = vld [vmem:[%s1 + $0x30] sm:$0xff]
      %v158 = vld [vmem:[%s1 + $0x38] sm:$0xff]
      %v159 = vld [vmem:[%s1 + $0x40] sm:$0xff]
      %v160 = vld [vmem:[%s1 + $0x48] sm:$0xff]
      %v161 = vld [vmem:[%s1 + $0x50] sm:$0xff]
      %v162 = vld [vmem:[%s1 + $0x58] sm:$0xff]
      %v163 = vld [vmem:[%s1 + $0x60] sm:$0xff]
      %v164 = vld [vmem:[%s1 + $0x68] sm:$0xff]
      %v165 = vld [vmem:[%s1 + $0x70] sm:$0xff]
      %v166 = vld [vmem:[%s1 + $0x78] sm:$0xff]
      %v167 = vld [vmem:[%s1 + $0x80] sm:$0xff]
      %v168 = vld [vmem:[%s1 + $0x88] sm:$0x3]
      %v169 = vld [vmem:[%s1 + $0x90] sm:$0x3]
      %v170 = vld [vmem:[%s1 + $0x98] sm:$0x3]
      %v171 = vld [vmem:[%s1 + $0xa0] sm:$0x3]
      %v172 = vld [vmem:[%s1 + $0xa8] sm:$0x3]
      %v173 = vld [vmem:[%s1 + $0xb0] sm:$0x3]
      %v174 = vld [vmem:[%s1 + $0xb8] sm:$0x3]
      %v175 = vld [vmem:[%s1 + $0xc0] sm:$0x3]
      %v176 = vld [vmem:[%s1 + $0xc8] sm:$0x3]
      %v177 = vld [vmem:[%s1 + $0xd0] sm:$0x3]
      %v178 = vld [vmem:[%s1 + $0xd8] sm:$0x3]
      %v179 = vld [vmem:[%s1 + $0xe0] sm:$0x3]
      %v180 = vld [vmem:[%s1 + $0xe8] sm:$0x3]
      %v181 = vld [vmem:[%s1 + $0xf0] sm:$0x3]
      %v182 = vld [vmem:[%s1 + $0xf8] sm:$0x3]
      %v183 = vld [vmem:[%s1 + $0x100] sm:$0x3]
      %v184 = vld [vmem:[%s1 + $0x108] sm:$0x3]
      %vm185 = vcmask 80896
      %v187 = vsel %vm185, %v149, 0
      %v190 = vsel %vm185, %v150, 0
      %vm192 = vcmask 1041408
      %v194 = vsel %vm192, %v168, 0
      %v197 = vsel %vm192, %v169, 0
      %v200 = vsel %vm192, %v170, 0
      %v203 = vsel %vm192, %v171, 0
      %v206 = vsel %vm192, %v172, 0
      %v209 = vsel %vm192, %v173, 0
      %v212 = vsel %vm192, %v174, 0
      %v215 = vsel %vm192, %v175, 0
      %v218 = vsel %vm192, %v176, 0
      %v221 = vsel %vm192, %v177, 0
      %v224 = vsel %vm192, %v178, 0
      %v227 = vsel %vm192, %v179, 0
      %v230 = vsel %vm192, %v180, 0
      %v233 = vsel %vm192, %v181, 0
      %v236 = vsel %vm192, %v182, 0
      %v239 = vsel %vm192, %v183, 0
      %v242 = vsel %vm192, %v184, 0
      %244 = vmatpush.msra.mxu0 0.0
      %245 = vmatpush.msra.mxu0 0.0
      %246 = vmatpush.msra.mxu0 0.0
      %247 = vmatpush.msra.mxu0 0.0
      %248 = vmatpush.msra.mxu0 0.0
      %249 = vmatpush.msra.mxu0 0.0
      %250 = vmatpush.msra.mxu0 0.0
      %251 = vmatpush.msra.mxu0 0.0
      %252 = vmatpush.msra.mxu0 0.0
      %253 = vmatpush.msra.mxu0 0.0
      %254 = vmatpush.msra.mxu0 0.0
      %255 = vmatpush.msra.mxu0 0.0
      %256 = vmatpush.msra.mxu0 0.0
      %257 = vmatpush.msra.mxu0 0.0
      %258 = vmatpush.msra.mxu0 %v194
      %259 = vmatpush.msra.mxu0 %v151
      %260 = vmatmul.f32.gmra.mxu0 %v187
      %v261 = vpop.f32.mrf.mxu0
      %v262 = vadd.f32 0.0, %v261
      %263 = vmatmul.f32.gmra.mxu0 %v190
      %v264 = vpop.f32.mrf.mxu0
      %v265 = vadd.f32 0.0, %v264
      %266 = vdwg.mxu0
      %267 = vmatpush.msra.mxu0 0.0
      %268 = vmatpush.msra.mxu0 0.0
      %269 = vmatpush.msra.mxu0 0.0
      %270 = vmatpush.msra.mxu0 0.0
      %271 = vmatpush.msra.mxu0 0.0
      %272 = vmatpush.msra.mxu0 0.0
      %273 = vmatpush.msra.mxu0 0.0
      %274 = vmatpush.msra.mxu0 0.0
      %275 = vmatpush.msra.mxu0 0.0
      %276 = vmatpush.msra.mxu0 0.0
      %277 = vmatpush.msra.mxu0 0.0
      %278 = vmatpush.msra.mxu0 0.0
      %279 = vmatpush.msra.mxu0 0.0
      %280 = vmatpush.msra.mxu0 0.0
      %281 = vmatpush.msra.mxu0 %v197
      %282 = vmatpush.msra.mxu0 %v152
      %283 = vmatmul.f32.gmra.mxu0 %v187
      %v284 = vpop.f32.mrf.mxu0
      %v285 = vadd.f32 0.0, %v284
      %286 = vmatmul.f32.gmra.mxu0 %v190
      %v287 = vpop.f32.mrf.mxu0
      %v288 = vadd.f32 0.0, %v287
      %289 = vdwg.mxu0
      %290 = vmatpush.msra.mxu0 0.0
      %291 = vmatpush.msra.mxu0 0.0
      %292 = vmatpush.msra.mxu0 0.0
      %293 = vmatpush.msra.mxu0 0.0
      %294 = vmatpush.msra.mxu0 0.0
      %295 = vmatpush.msra.mxu0 0.0
      %296 = vmatpush.msra.mxu0 0.0
      %297 = vmatpush.msra.mxu0 0.0
      %298 = vmatpush.msra.mxu0 0.0
      %299 = vmatpush.msra.mxu0 0.0
      %300 = vmatpush.msra.mxu0 0.0
      %301 = vmatpush.msra.mxu0 0.0
      %302 = vmatpush.msra.mxu0 0.0
      %303 = vmatpush.msra.mxu0 0.0
      %304 = vmatpush.msra.mxu0 %v200
      %305 = vmatpush.msra.mxu0 %v153
      %306 = vmatmul.f32.gmra.mxu0 %v187
      %v307 = vpop.f32.mrf.mxu0
      %v308 = vadd.f32 0.0, %v307
      %309 = vmatmul.f32.gmra.mxu0 %v190
      %v310 = vpop.f32.mrf.mxu0
      %v311 = vadd.f32 0.0, %v310
      %312 = vdwg.mxu0
      %313 = vmatpush.msra.mxu0 0.0
      %314 = vmatpush.msra.mxu0 0.0
      %315 = vmatpush.msra.mxu0 0.0
      %316 = vmatpush.msra.mxu0 0.0
      %317 = vmatpush.msra.mxu0 0.0
      %318 = vmatpush.msra.mxu0 0.0
      %319 = vmatpush.msra.mxu0 0.0
      %320 = vmatpush.msra.mxu0 0.0
      %321 = vmatpush.msra.mxu0 0.0
      %322 = vmatpush.msra.mxu0 0.0
      %323 = vmatpush.msra.mxu0 0.0
      %324 = vmatpush.msra.mxu0 0.0
      %325 = vmatpush.msra.mxu0 0.0
      %326 = vmatpush.msra.mxu0 0.0
      %327 = vmatpush.msra.mxu0 %v203
      %328 = vmatpush.msra.mxu0 %v154
      %329 = vmatmul.f32.gmra.mxu0 %v187
      %v330 = vpop.f32.mrf.mxu0
      %v331 = vadd.f32 0.0, %v330
      %332 = vmatmul.f32.gmra.mxu0 %v190
      %v333 = vpop.f32.mrf.mxu0
      %v334 = vadd.f32 0.0, %v333
      %335 = vdwg.mxu0
      %336 = vmatpush.msra.mxu0 0.0
      %337 = vmatpush.msra.mxu0 0.0
      %338 = vmatpush.msra.mxu0 0.0
      %339 = vmatpush.msra.mxu0 0.0
      %340 = vmatpush.msra.mxu0 0.0
      %341 = vmatpush.msra.mxu0 0.0
      %342 = vmatpush.msra.mxu0 0.0
      %343 = vmatpush.msra.mxu0 0.0
      %344 = vmatpush.msra.mxu0 0.0
      %345 = vmatpush.msra.mxu0 0.0
      %346 = vmatpush.msra.mxu0 0.0
      %347 = vmatpush.msra.mxu0 0.0
      %348 = vmatpush.msra.mxu0 0.0
      %349 = vmatpush.msra.mxu0 0.0
      %350 = vmatpush.msra.mxu0 %v206
      %351 = vmatpush.msra.mxu0 %v155
      %352 = vmatmul.f32.gmra.mxu0 %v187
      %v353 = vpop.f32.mrf.mxu0
      %v354 = vadd.f32 0.0, %v353
      %355 = vmatmul.f32.gmra.mxu0 %v190
      %v356 = vpop.f32.mrf.mxu0
      %v357 = vadd.f32 0.0, %v356
      %358 = vdwg.mxu0
      %359 = vmatpush.msra.mxu0 0.0
      %360 = vmatpush.msra.mxu0 0.0
      %361 = vmatpush.msra.mxu0 0.0
      %362 = vmatpush.msra.mxu0 0.0
      %363 = vmatpush.msra.mxu0 0.0
      %364 = vmatpush.msra.mxu0 0.0
      %365 = vmatpush.msra.mxu0 0.0
      %366 = vmatpush.msra.mxu0 0.0
      %367 = vmatpush.msra.mxu0 0.0
      %368 = vmatpush.msra.mxu0 0.0
      %369 = vmatpush.msra.mxu0 0.0
      %370 = vmatpush.msra.mxu0 0.0
      %371 = vmatpush.msra.mxu0 0.0
      %372 = vmatpush.msra.mxu0 0.0
      %373 = vmatpush.msra.mxu0 %v209
      %374 = vmatpush.msra.mxu0 %v156
      %375 = vmatmul.f32.gmra.mxu0 %v187
      %v376 = vpop.f32.mrf.mxu0
      %v377 = vadd.f32 0.0, %v376
      %378 = vmatmul.f32.gmra.mxu0 %v190
      %v379 = vpop.f32.mrf.mxu0
      %v380 = vadd.f32 0.0, %v379
      %381 = vdwg.mxu0
      %382 = vmatpush.msra.mxu0 0.0
      %383 = vmatpush.msra.mxu0 0.0
      %384 = vmatpush.msra.mxu0 0.0
      %385 = vmatpush.msra.mxu0 0.0
      %386 = vmatpush.msra.mxu0 0.0
      %387 = vmatpush.msra.mxu0 0.0
      %388 = vmatpush.msra.mxu0 0.0
      %389 = vmatpush.msra.mxu0 0.0
      %390 = vmatpush.msra.mxu0 0.0
      %391 = vmatpush.msra.mxu0 0.0
      %392 = vmatpush.msra.mxu0 0.0
      %393 = vmatpush.msra.mxu0 0.0
      %394 = vmatpush.msra.mxu0 0.0
      %395 = vmatpush.msra.mxu0 0.0
      %396 = vmatpush.msra.mxu0 %v212
      %397 = vmatpush.msra.mxu0 %v157
      %398 = vmatmul.f32.gmra.mxu0 %v187
      %v399 = vpop.f32.mrf.mxu0
      %v400 = vadd.f32 0.0, %v399
      %401 = vmatmul.f32.gmra.mxu0 %v190
      %v402 = vpop.f32.mrf.mxu0
      %v403 = vadd.f32 0.0, %v402
      %404 = vdwg.mxu0
      %405 = vmatpush.msra.mxu0 0.0
      %406 = vmatpush.msra.mxu0 0.0
      %407 = vmatpush.msra.mxu0 0.0
      %408 = vmatpush.msra.mxu0 0.0
      %409 = vmatpush.msra.mxu0 0.0
      %410 = vmatpush.msra.mxu0 0.0
      %411 = vmatpush.msra.mxu0 0.0
      %412 = vmatpush.msra.mxu0 0.0
      %413 = vmatpush.msra.mxu0 0.0
      %414 = vmatpush.msra.mxu0 0.0
      %415 = vmatpush.msra.mxu0 0.0
      %416 = vmatpush.msra.mxu0 0.0
      %417 = vmatpush.msra.mxu0 0.0
      %418 = vmatpush.msra.mxu0 0.0
      %419 = vmatpush.msra.mxu0 %v215
      %420 = vmatpush.msra.mxu0 %v158
      %421 = vmatmul.f32.gmra.mxu0 %v187
      %v422 = vpop.f32.mrf.mxu0
      %v423 = vadd.f32 0.0, %v422
      %424 = vmatmul.f32.gmra.mxu0 %v190
      %v425 = vpop.f32.mrf.mxu0
      %v426 = vadd.f32 0.0, %v425
      %427 = vdwg.mxu0
      %428 = vmatpush.msra.mxu0 0.0
      %429 = vmatpush.msra.mxu0 0.0
      %430 = vmatpush.msra.mxu0 0.0
      %431 = vmatpush.msra.mxu0 0.0
      %432 = vmatpush.msra.mxu0 0.0
      %433 = vmatpush.msra.mxu0 0.0
      %434 = vmatpush.msra.mxu0 0.0
      %435 = vmatpush.msra.mxu0 0.0
      %436 = vmatpush.msra.mxu0 0.0
      %437 = vmatpush.msra.mxu0 0.0
      %438 = vmatpush.msra.mxu0 0.0
      %439 = vmatpush.msra.mxu0 0.0
      %440 = vmatpush.msra.mxu0 0.0
      %441 = vmatpush.msra.mxu0 0.0
      %442 = vmatpush.msra.mxu0 %v218
      %443 = vmatpush.msra.mxu0 %v159
      %444 = vmatmul.f32.gmra.mxu0 %v187
      %v445 = vpop.f32.mrf.mxu0
      %v446 = vadd.f32 0.0, %v445
      %447 = vmatmul.f32.gmra.mxu0 %v190
      %v448 = vpop.f32.mrf.mxu0
      %v449 = vadd.f32 0.0, %v448
      %450 = vdwg.mxu0
      %451 = vmatpush.msra.mxu0 0.0
      %452 = vmatpush.msra.mxu0 0.0
      %453 = vmatpush.msra.mxu0 0.0
      %454 = vmatpush.msra.mxu0 0.0
      %455 = vmatpush.msra.mxu0 0.0
      %456 = vmatpush.msra.mxu0 0.0
      %457 = vmatpush.msra.mxu0 0.0
      %458 = vmatpush.msra.mxu0 0.0
      %459 = vmatpush.msra.mxu0 0.0
      %460 = vmatpush.msra.mxu0 0.0
      %461 = vmatpush.msra.mxu0 0.0
      %462 = vmatpush.msra.mxu0 0.0
      %463 = vmatpush.msra.mxu0 0.0
      %464 = vmatpush.msra.mxu0 0.0
      %465 = vmatpush.msra.mxu0 %v221
      %466 = vmatpush.msra.mxu0 %v160
      %467 = vmatmul.f32.gmra.mxu0 %v187
      %v468 = vpop.f32.mrf.mxu0
      %v469 = vadd.f32 0.0, %v468
      %470 = vmatmul.f32.gmra.mxu0 %v190
      %v471 = vpop.f32.mrf.mxu0
      %v472 = vadd.f32 0.0, %v471
      %473 = vdwg.mxu0
      %474 = vmatpush.msra.mxu0 0.0
      %475 = vmatpush.msra.mxu0 0.0
      %476 = vmatpush.msra.mxu0 0.0
      %477 = vmatpush.msra.mxu0 0.0
      %478 = vmatpush.msra.mxu0 0.0
      %479 = vmatpush.msra.mxu0 0.0
      %480 = vmatpush.msra.mxu0 0.0
      %481 = vmatpush.msra.mxu0 0.0
      %482 = vmatpush.msra.mxu0 0.0
      %483 = vmatpush.msra.mxu0 0.0
      %484 = vmatpush.msra.mxu0 0.0
      %485 = vmatpush.msra.mxu0 0.0
      %486 = vmatpush.msra.mxu0 0.0
      %487 = vmatpush.msra.mxu0 0.0
      %488 = vmatpush.msra.mxu0 %v224
      %489 = vmatpush.msra.mxu0 %v161
      %490 = vmatmul.f32.gmra.mxu0 %v187
      %v491 = vpop.f32.mrf.mxu0
      %v492 = vadd.f32 0.0, %v491
      %493 = vmatmul.f32.gmra.mxu0 %v190
      %v494 = vpop.f32.mrf.mxu0
      %v495 = vadd.f32 0.0, %v494
      %496 = vdwg.mxu0
      %497 = vmatpush.msra.mxu0 0.0
      %498 = vmatpush.msra.mxu0 0.0
      %499 = vmatpush.msra.mxu0 0.0
      %500 = vmatpush.msra.mxu0 0.0
      %501 = vmatpush.msra.mxu0 0.0
      %502 = vmatpush.msra.mxu0 0.0
      %503 = vmatpush.msra.mxu0 0.0
      %504 = vmatpush.msra.mxu0 0.0
      %505 = vmatpush.msra.mxu0 0.0
      %506 = vmatpush.msra.mxu0 0.0
      %507 = vmatpush.msra.mxu0 0.0
      %508 = vmatpush.msra.mxu0 0.0
      %509 = vmatpush.msra.mxu0 0.0
      %510 = vmatpush.msra.mxu0 0.0
      %511 = vmatpush.msra.mxu0 %v227
      %512 = vmatpush.msra.mxu0 %v162
      %513 = vmatmul.f32.gmra.mxu0 %v187
      %v514 = vpop.f32.mrf.mxu0
      %v515 = vadd.f32 0.0, %v514
      %516 = vmatmul.f32.gmra.mxu0 %v190
      %v517 = vpop.f32.mrf.mxu0
      %v518 = vadd.f32 0.0, %v517
      %519 = vdwg.mxu0
      %520 = vmatpush.msra.mxu0 0.0
      %521 = vmatpush.msra.mxu0 0.0
      %522 = vmatpush.msra.mxu0 0.0
      %523 = vmatpush.msra.mxu0 0.0
      %524 = vmatpush.msra.mxu0 0.0
      %525 = vmatpush.msra.mxu0 0.0
      %526 = vmatpush.msra.mxu0 0.0
      %527 = vmatpush.msra.mxu0 0.0
      %528 = vmatpush.msra.mxu0 0.0
      %529 = vmatpush.msra.mxu0 0.0
      %530 = vmatpush.msra.mxu0 0.0
      %531 = vmatpush.msra.mxu0 0.0
      %532 = vmatpush.msra.mxu0 0.0
      %533 = vmatpush.msra.mxu0 0.0
      %534 = vmatpush.msra.mxu0 %v230
      %535 = vmatpush.msra.mxu0 %v163
      %536 = vmatmul.f32.gmra.mxu0 %v187
      %v537 = vpop.f32.mrf.mxu0
      %v538 = vadd.f32 0.0, %v537
      %539 = vmatmul.f32.gmra.mxu0 %v190
      %v540 = vpop.f32.mrf.mxu0
      %v541 = vadd.f32 0.0, %v540
      %542 = vdwg.mxu0
      %543 = vmatpush.msra.mxu0 0.0
      %544 = vmatpush.msra.mxu0 0.0
      %545 = vmatpush.msra.mxu0 0.0
      %546 = vmatpush.msra.mxu0 0.0
      %547 = vmatpush.msra.mxu0 0.0
      %548 = vmatpush.msra.mxu0 0.0
      %549 = vmatpush.msra.mxu0 0.0
      %550 = vmatpush.msra.mxu0 0.0
      %551 = vmatpush.msra.mxu0 0.0
      %552 = vmatpush.msra.mxu0 0.0
      %553 = vmatpush.msra.mxu0 0.0
      %554 = vmatpush.msra.mxu0 0.0
      %555 = vmatpush.msra.mxu0 0.0
      %556 = vmatpush.msra.mxu0 0.0
      %557 = vmatpush.msra.mxu0 %v233
      %558 = vmatpush.msra.mxu0 %v164
      %559 = vmatmul.f32.gmra.mxu0 %v187
      %v560 = vpop.f32.mrf.mxu0
      %v561 = vadd.f32 0.0, %v560
      %562 = vmatmul.f32.gmra.mxu0 %v190
      %v563 = vpop.f32.mrf.mxu0
      %v564 = vadd.f32 0.0, %v563
      %565 = vdwg.mxu0
      %566 = vmatpush.msra.mxu0 0.0
      %567 = vmatpush.msra.mxu0 0.0
      %568 = vmatpush.msra.mxu0 0.0
      %569 = vmatpush.msra.mxu0 0.0
      %570 = vmatpush.msra.mxu0 0.0
      %571 = vmatpush.msra.mxu0 0.0
      %572 = vmatpush.msra.mxu0 0.0
      %573 = vmatpush.msra.mxu0 0.0
      %574 = vmatpush.msra.mxu0 0.0
      %575 = vmatpush.msra.mxu0 0.0
      %576 = vmatpush.msra.mxu0 0.0
      %577 = vmatpush.msra.mxu0 0.0
      %578 = vmatpush.msra.mxu0 0.0
      %579 = vmatpush.msra.mxu0 0.0
      %580 = vmatpush.msra.mxu0 %v236
      %581 = vmatpush.msra.mxu0 %v165
      %582 = vmatmul.f32.gmra.mxu0 %v187
      %v583 = vpop.f32.mrf.mxu0
      %v584 = vadd.f32 0.0, %v583
      %585 = vmatmul.f32.gmra.mxu0 %v190
      %v586 = vpop.f32.mrf.mxu0
      %v587 = vadd.f32 0.0, %v586
      %588 = vdwg.mxu0
      %589 = vmatpush.msra.mxu0 0.0
      %590 = vmatpush.msra.mxu0 0.0
      %591 = vmatpush.msra.mxu0 0.0
      %592 = vmatpush.msra.mxu0 0.0
      %593 = vmatpush.msra.mxu0 0.0
      %594 = vmatpush.msra.mxu0 0.0
      %595 = vmatpush.msra.mxu0 0.0
      %596 = vmatpush.msra.mxu0 0.0
      %597 = vmatpush.msra.mxu0 0.0
      %598 = vmatpush.msra.mxu0 0.0
      %599 = vmatpush.msra.mxu0 0.0
      %600 = vmatpush.msra.mxu0 0.0
      %601 = vmatpush.msra.mxu0 0.0
      %602 = vmatpush.msra.mxu0 0.0
      %603 = vmatpush.msra.mxu0 %v239
      %604 = vmatpush.msra.mxu0 %v166
      %605 = vmatmul.f32.gmra.mxu0 %v187
      %v606 = vpop.f32.mrf.mxu0
      %v607 = vadd.f32 0.0, %v606
      %608 = vmatmul.f32.gmra.mxu0 %v190
      %v609 = vpop.f32.mrf.mxu0
      %v610 = vadd.f32 0.0, %v609
      %611 = vdwg.mxu0
      %612 = vmatpush.msra.mxu0 0.0
      %613 = vmatpush.msra.mxu0 0.0
      %614 = vmatpush.msra.mxu0 0.0
      %615 = vmatpush.msra.mxu0 0.0
      %616 = vmatpush.msra.mxu0 0.0
      %617 = vmatpush.msra.mxu0 0.0
      %618 = vmatpush.msra.mxu0 0.0
      %619 = vmatpush.msra.mxu0 0.0
      %620 = vmatpush.msra.mxu0 0.0
      %621 = vmatpush.msra.mxu0 0.0
      %622 = vmatpush.msra.mxu0 0.0
      %623 = vmatpush.msra.mxu0 0.0
      %624 = vmatpush.msra.mxu0 0.0
      %625 = vmatpush.msra.mxu0 0.0
      %626 = vmatpush.msra.mxu0 %v242
      %627 = vmatpush.msra.mxu0 %v167
      %628 = vmatmul.f32.gmra.mxu0 %v187
      %v629 = vpop.f32.mrf.mxu0
      %v630 = vadd.f32 0.0, %v629
      %631 = vmatmul.f32.gmra.mxu0 %v190
      %v632 = vpop.f32.mrf.mxu0
      %v633 = vadd.f32 0.0, %v632
      %634 = vdwg.mxu0
      %v635 = vpack.c.bf16 %v285, %v262
      %v636 = vpack.c.bf16 %v331, %v308
      %v637 = vpack.c.bf16 %v377, %v354
      %v638 = vpack.c.bf16 %v423, %v400
      %v639 = vpack.c.bf16 %v469, %v446
      %v640 = vpack.c.bf16 %v515, %v492
      %v641 = vpack.c.bf16 %v561, %v538
      %v642 = vpack.c.bf16 %v607, %v584
      %v643 = vpack.c.bf16 %v630, %v630
      %v644 = vpack.c.bf16 %v288, %v265
      %v645 = vpack.c.bf16 %v334, %v311
      %v646 = vpack.c.bf16 %v380, %v357
      %v647 = vpack.c.bf16 %v426, %v403
      %v648 = vpack.c.bf16 %v472, %v449
      %v649 = vpack.c.bf16 %v518, %v495
      %v650 = vpack.c.bf16 %v564, %v541
      %v651 = vpack.c.bf16 %v610, %v587
      %v652 = vpack.c.bf16 %v633, %v633
      %653 = vst [vmem:[%s147] sm:$0xff] %v635
      %654 = vst [vmem:[%s147 + $0x8] sm:$0xff] %v636
      %655 = vst [vmem:[%s147 + $0x10] sm:$0xff] %v637
      %656 = vst [vmem:[%s147 + $0x18] sm:$0xff] %v638
      %657 = vst [vmem:[%s147 + $0x20] sm:$0xff] %v639
      %658 = vst [vmem:[%s147 + $0x28] sm:$0xff] %v640
      %659 = vst [vmem:[%s147 + $0x30] sm:$0xff] %v641
      %660 = vst [vmem:[%s147 + $0x38] sm:$0xff] %v642
      %661 = vst [vmem:[%s147 + $0x40] sm:$0xf] %v643
      %662 = vst [vmem:[%s147 + $0x44] sm:$0xff] %v644
      %663 = vst [vmem:[%s147 + $0x4c] sm:$0xff] %v645
      %664 = vst [vmem:[%s147 + $0x54] sm:$0xff] %v646
      %665 = vst [vmem:[%s147 + $0x5c] sm:$0xff] %v647
      %666 = vst [vmem:[%s147 + $0x64] sm:$0xff] %v648
      %667 = vst [vmem:[%s147 + $0x6c] sm:$0xff] %v649
      %668 = vst [vmem:[%s147 + $0x74] sm:$0xff] %v650
      %669 = vst [vmem:[%s147 + $0x7c] sm:$0xff] %v651
      %670 = vst [vmem:[%s147 + $0x84] sm:$0xf] %v652
      %s671 = smul.u32 2, %s13
      %p672 = scmp.lt.s32.totalorder %s671, 3
      %s673 = scalar_select %p672, %s671, 3
      %s674 = smul.addr %s673, 17
      %s675 = smul.addr %s674, 4
      %s676 = scalar_lea.vmem %s2, %s675
      // Predicated region
      $region29: #{detect_model_forward.5} parent=27 // pred_check
        %p677 = pneg %p78
      $region30: #{detect_model_forward.5} parent=27 // pred_check_branch
        %679 = sbr.rel (%p677) target = $region32
      $region31: #{detect_model_forward.5} parent=27 // pred_region
        %s680 = smul.u32 2, %s13
      $region32: #{detect_model_forward.5} parent=27 // pred_fallthru
        _
    $region28: #{detect_model_forward.5} parent=5 // pred_fallthru
      _
    %p681 = scmp.le.s32.totalorder 2, %s8
    // Predicated region
    $region33: #{detect_model_forward.5} parent=5 // pred_check
      %p682 = pneg %p681
    $region34: #{detect_model_forward.5} parent=5 // pred_check_branch
      %684 = sbr.rel (%p682) target = $region36
    $region35: #{detect_model_forward.5} parent=5 // pred_region
      %s685 = ssub.s32 %s8, 2
      // Predicated region
      $region37: #{detect_model_forward.5} parent=35 // pred_check
        %p686 = pneg %p84
      $region38: #{detect_model_forward.5} parent=35 // pred_check_branch
        %688 = sbr.rel (%p686) target = $region40
      $region39: #{detect_model_forward.5} parent=35 // pred_region
        %s689 = smul.u32 2, %s14
        %p690 = scmp.lt.s32.totalorder %s689, 3
        %s691 = scalar_select %p690, %s689, 3
        %s692 = smul.addr %s691, 17
        %s693 = smul.addr %s692, 4
        %s694 = scalar_lea.vmem %s2, %s693
      $region40: #{detect_model_forward.5} parent=35 // pred_fallthru
        _
    $region36: #{detect_model_forward.5} parent=5 // pred_fallthru
      _
  $region6: #{detect_model_forward.5} parent=0 // loop_footer
    %s12 = sadd.s32 1, %s8
  $region7: #{detect_model_forward.5} parent=0 // loop_footer_branch
    %7 = sbr.rel target = $region3
  $region8: #{detect_model_forward.5} parent=0 // loop_exit
    _

// kernel: mul.42
$region0: #{mul.42}
  #allocation0 [shape = 's32[1]{0}', space=sflag, size = 0x4, scoped, tag = 'scoped memory for mul.42']
  %s0 = inlined_call_operand.vmem [shape: f32[40,1], index: 0, kind: input, shape index: {}]
  %s1 = inlined_call_operand.vmem [shape: f32[40,1], index: 1, kind: input, shape index: {}]
  %s2 = inlined_call_operand.vmem [shape: f32[40,1], index: 2, kind: output, shape index: {}]
  %v3 = vld [vmem:[%s0] sm:$0xff]
  %v4 = vld [vmem:[%s1] sm:$0xff]
  %5 = xla_tuple %v3, %v4
  %6 = xla_tuple %5
  %v7 = vmul.f32 %v3, %v4
  %8 = xla_tuple %v7
  %9 = vst [vmem:[%s2] sm:$0xff] %v7
  %s10 = scalar_lea.vmem %s0, 8
  %v11 = vld [vmem:[%s10] sm:$0xff]
  %s12 = scalar_lea.vmem %s1, 8
  %v13 = vld [vmem:[%s12] sm:$0xff]
  %14 = xla_tuple %v11, %v13
  %15 = xla_tuple %14
  %v16 = vmul.f32 %v11, %v13
  %17 = xla_tuple %v16
  %s18 = scalar_lea.vmem %s2, 8
  %19 = vst [vmem:[%s18] sm:$0xff] %v16
  %s20 = scalar_lea.vmem %s0, 16
  %v21 = vld [vmem:[%s20] sm:$0xff]
  %s22 = scalar_lea.vmem %s1, 16
  %v23 = vld [vmem:[%s22] sm:$0xff]
  %24 = xla_tuple %v21, %v23
  %25 = xla_tuple %24
  %v26 = vmul.f32 %v21, %v23
  %27 = xla_tuple %v26
  %s28 = scalar_lea.vmem %s2, 16
  %29 = vst [vmem:[%s28] sm:$0xff] %v26
  %s30 = scalar_lea.vmem %s0, 24
  %v31 = vld [vmem:[%s30] sm:$0xff]
  %s32 = scalar_lea.vmem %s1, 24
  %v33 = vld [vmem:[%s32] sm:$0xff]
  %34 = xla_tuple %v31, %v33
  %35 = xla_tuple %34
  %v36 = vmul.f32 %v31, %v33
  %37 = xla_tuple %v36
  %s38 = scalar_lea.vmem %s2, 24
  %39 = vst [vmem:[%s38] sm:$0xff] %v36
  %s40 = scalar_lea.vmem %s0, 32
  %v41 = vld [vmem:[%s40] sm:$0xff]
  %s42 = scalar_lea.vmem %s1, 32
  %v43 = vld [vmem:[%s42] sm:$0xff]
  %44 = xla_tuple %v41, %v43
  %45 = xla_tuple %44
  %v46 = vmul.f32 %v41, %v43
  %47 = xla_tuple %v46
  %s48 = scalar_lea.vmem %s2, 32
  %49 = vst [vmem:[%s48] sm:$0xff] %v46

// kernel: detect_model_forward.8
$region0: #{detect_model_forward.8}
  #allocation0 [shape = 'u32[]', space=smem, size = 0x4, offset = 0x4, fixed_abs, tag = 'smem constant byte address 0x4 - core index']
  #allocation1 [shape = 'u32[72,128]{1,0:T(1,128)}', space=vmem, size = 0x9000, scoped, tag = 'internal scratch']
  %s0 = inlined_call_operand.vmem [shape: bf16[40,16], index: 0, kind: input, shape index: {}]
  %s1 = inlined_call_operand.vmem [shape: f32[40,1], index: 1, kind: input, shape index: {}]
  %s2 = inlined_call_operand.vmem [shape: f32[40,1], index: 2, kind: input, shape index: {}]
  %s3 = inlined_call_operand.vmem [shape: f32[20,40], index: 3, kind: input, shape index: {}]
  %s4 = inlined_call_operand.vmem [shape: f32[1,16], index: 4, kind: input, shape index: {}]
  %s5 = inlined_call_operand.vmem [shape: f32[4,20], index: 5, kind: input, shape index: {}]
  %s6 = inlined_call_operand.vmem [shape: f32[20,4], index: 6, kind: input, shape index: {}]
  %s7 = inlined_call_operand.vmem [shape: f32[4,1], index: 7, kind: input, shape index: {}]
  %s8 = inlined_call_operand.vmem [shape: f32[4,32], index: 8, kind: output, shape index: {}]
  %s9 = sld [smem:[#allocation0]]
  $region42: #{detect_model_forward.8} parent=0
    _
  %s11 = ssub.s32 1, %s9
  %s12 = scalar_select 0, %s11, %s9
  // Predicated region
  $region2: #{detect_model_forward.8} parent=0 // pred_check
    _
  $region3: #{detect_model_forward.8} parent=0 // pred_check_branch
    %14 = sbr.rel (0) target = $region5
  $region4: #{detect_model_forward.8} parent=0 // pred_region
    _
  $region5: #{detect_model_forward.8} parent=0 // pred_fallthru
    _
  // Predicated region
  $region6: #{detect_model_forward.8} parent=0 // pred_check
    _
  $region7: #{detect_model_forward.8} parent=0 // pred_check_branch
    %16 = sbr.rel (0) target = $region9
  $region8: #{detect_model_forward.8} parent=0 // pred_region
    _
  $region9: #{detect_model_forward.8} parent=0 // pred_fallthru
    _
  // Predicated region
  $region10: #{detect_model_forward.8} parent=0 // pred_check
    _
  $region11: #{detect_model_forward.8} parent=0 // pred_check_branch
    %18 = sbr.rel (0) target = $region13
  $region12: #{detect_model_forward.8} parent=0 // pred_region
    _
  $region13: #{detect_model_forward.8} parent=0 // pred_fallthru
    _
  // Predicated region
  $region14: #{detect_model_forward.8} parent=0 // pred_check
    _
  $region15: #{detect_model_forward.8} parent=0 // pred_check_branch
    %20 = sbr.rel (0) target = $region17
  $region16: #{detect_model_forward.8} parent=0 // pred_region
    _
  $region17: #{detect_model_forward.8} parent=0 // pred_fallthru
    _
  // Predicated region
  $region18: #{detect_model_forward.8} parent=0 // pred_check
    _
  $region19: #{detect_model_forward.8} parent=0 // pred_check_branch
    %22 = sbr.rel (0) target = $region21
  $region20: #{detect_model_forward.8} parent=0 // pred_region
    _
  $region21: #{detect_model_forward.8} parent=0 // pred_fallthru
    _
  // Predicated region
  $region22: #{detect_model_forward.8} parent=0 // pred_check
    _
  $region23: #{detect_model_forward.8} parent=0 // pred_check_branch
    %24 = sbr.rel (0) target = $region25
  $region24: #{detect_model_forward.8} parent=0 // pred_region
    _
  $region25: #{detect_model_forward.8} parent=0 // pred_fallthru
    _
  // Predicated region
  $region26: #{detect_model_forward.8} parent=0 // pred_check
    _
  $region27: #{detect_model_forward.8} parent=0 // pred_check_branch
    %26 = sbr.rel (0) target = $region29
  $region28: #{detect_model_forward.8} parent=0 // pred_region
    _
  $region29: #{detect_model_forward.8} parent=0 // pred_fallthru
    _
  // Predicated region
  $region30: #{detect_model_forward.8} parent=0 // pred_check
    _
  $region31: #{detect_model_forward.8} parent=0 // pred_check_branch
    %28 = sbr.rel (0) target = $region33
  $region32: #{detect_model_forward.8} parent=0 // pred_region
    _
  $region33: #{detect_model_forward.8} parent=0 // pred_fallthru
    _
  %v29 = vld [vmem:[%s0] sm:$0xf]
  %v30 = vld [vmem:[%s0 + $0x4] sm:$0xf]
  %v31 = vld [vmem:[%s0 + $0x8] sm:$0xf]
  %v32 = vld [vmem:[%s0 + $0xc] sm:$0xf]
  %v33 = vld [vmem:[%s0 + $0x10] sm:$0xf]
  %v34 = vunpack.c.l.bf16 %v29
  %v35 = vunpack.c.l.bf16 %v30
  %v36 = vunpack.c.l.bf16 %v31
  %v37 = vunpack.c.l.bf16 %v32
  %v38 = vunpack.c.l.bf16 %v33
  %v39 = vld [vmem:[%s2] sm:$0xff]
  %v40 = vld [vmem:[%s2 + $0x8] sm:$0xff]
  %v41 = vld [vmem:[%s2 + $0x10] sm:$0xff]
  %v42 = vld [vmem:[%s2 + $0x18] sm:$0xff]
  %v43 = vld [vmem:[%s2 + $0x20] sm:$0xff]
  %v44 = vld [vmem:[%s1] sm:$0xff]
  %v45 = vld [vmem:[%s1 + $0x8] sm:$0xff]
  %v46 = vld [vmem:[%s1 + $0x10] sm:$0xff]
  %v47 = vld [vmem:[%s1 + $0x18] sm:$0xff]
  %v48 = vld [vmem:[%s1 + $0x20] sm:$0xff]
  %v49 = vmul.f32 %v44, 1.442695
  %v50 = vpow.pop %v49
  %v51 = vmul.f32 %v45, 1.442695
  %v52 = vpow.pop %v51
  %v53 = vmul.f32 %v46, 1.442695
  %v54 = vpow.pop %v53
  %v55 = vmul.f32 %v47, 1.442695
  %v56 = vpow.pop %v55
  %v57 = vmul.f32 %v48, 1.442695
  %v58 = vpow.pop %v57
  %v59 = vmul.f32 %v39, %v50
  %v60 = vmul.f32 %v40, %v52
  %v61 = vmul.f32 %v41, %v54
  %v62 = vmul.f32 %v42, %v56
  %v63 = vmul.f32 %v43, %v58
  %v64 = vld [vmem:[%s3] sm:$0xff]
  %v65 = vld [vmem:[%s3 + $0x8] sm:$0xff]
  %v66 = vld [vmem:[%s3 + $0x10] sm:$0xf]
  %68 = vset.pattern.permute.xlu0 0
  %69 = vperm.xlu0 %68, %v59
  %v70 = vpop.permute.xlu0 %69
  %73 = vset.pattern.permute.xlu0 0
  %74 = vperm.xlu0 %73, %v60
  %v75 = vpop.permute.xlu0 %74
  %78 = vset.pattern.permute.xlu0 0
  %79 = vperm.xlu0 %78, %v61
  %v80 = vpop.permute.xlu0 %79
  %83 = vset.pattern.permute.xlu0 0
  %84 = vperm.xlu0 %83, %v62
  %v85 = vpop.permute.xlu0 %84
  %88 = vset.pattern.permute.xlu0 0
  %89 = vperm.xlu0 %88, %v63
  %v90 = vpop.permute.xlu0 %89
  %v92 = vmul.f32 %v70, %v34
  %v93 = vmul.f32 %v75, %v35
  %v94 = vmul.f32 %v80, %v36
  %v95 = vmul.f32 %v85, %v37
  %v96 = vmul.f32 %v90, %v38
  %vm97 = vcmask 326656
  %v99 = vsel %vm97, %v64, 0
  %v102 = vsel %vm97, %v65, 0
  %v105 = vsel %vm97, %v66, 0
  %107 = vmatpush.msra.mxu0 0.0
  %108 = vmatpush.msra.mxu0 0.0
  %109 = vmatpush.msra.mxu0 0.0
  %110 = vmatpush.msra.mxu0 0.0
  %111 = vmatpush.msra.mxu0 0.0
  %112 = vmatpush.msra.mxu0 0.0
  %113 = vmatpush.msra.mxu0 0.0
  %114 = vmatpush.msra.mxu0 0.0
  %115 = vmatpush.msra.mxu0 0.0
  %116 = vmatpush.msra.mxu0 0.0
  %117 = vmatpush.msra.mxu0 0.0
  %118 = vmatpush.msra.mxu0 %v96
  %119 = vmatpush.msra.mxu0 %v95
  %120 = vmatpush.msra.mxu0 %v94
  %121 = vmatpush.msra.mxu0 %v93
  %122 = vmatpush.msra.mxu0 %v92
  %123 = vmatmul.f32.gmra.mxu0 %v99
  %v124 = vpop.f32.mrf.mxu0
  %v125 = vadd.f32 0.0, %v124
  %126 = vmatmul.f32.gmra.mxu0 %v102
  %v127 = vpop.f32.mrf.mxu0
  %v128 = vadd.f32 0.0, %v127
  %129 = vmatmul.f32.gmra.mxu0 %v105
  %v130 = vpop.f32.mrf.mxu0
  %v131 = vadd.f32 0.0, %v130
  %132 = vdwg.mxu0
  %133 = vmatpush.msra.mxu0 0.0
  %134 = vmatpush.msra.mxu0 0.0
  %135 = vmatpush.msra.mxu0 0.0
  %136 = vmatpush.msra.mxu0 0.0
  %137 = vmatpush.msra.mxu0 0.0
  %138 = vmatpush.msra.mxu0 0.0
  %139 = vmatpush.msra.mxu0 0.0
  %140 = vmatpush.msra.mxu0 0.0
  %141 = vmatpush.msra.mxu0 0.0
  %142 = vmatpush.msra.mxu0 0.0
  %143 = vmatpush.msra.mxu0 0.0
  %144 = vmatpush.msra.mxu0 %v63
  %145 = vmatpush.msra.mxu0 %v62
  %146 = vmatpush.msra.mxu0 %v61
  %147 = vmatpush.msra.mxu0 %v60
  %148 = vmatpush.msra.mxu0 %v59
  %149 = vmatmul.f32.gmra.mxu0 %v99
  %v150 = vpop.f32.mrf.mxu0
  %v151 = vadd.f32 0.0, %v150
  %152 = vmatmul.f32.gmra.mxu0 %v102
  %v153 = vpop.f32.mrf.mxu0
  %v154 = vadd.f32 0.0, %v153
  %155 = vmatmul.f32.gmra.mxu0 %v105
  %v156 = vpop.f32.mrf.mxu0
  %v157 = vadd.f32 0.0, %v156
  %158 = vdwg.mxu0
  %vm159 = vcmp.gt.f32.partialorder %v151, 0.0
  %vm160 = vcmp.gt.f32.partialorder %v154, 0.0
  %vm161 = vcmp.gt.f32.partialorder %v157, 0.0
  %v162 = vmax.f32 %v151, 1e-30
  %v163 = vmax.f32 %v154, 1e-30
  %v164 = vmax.f32 %v157, 1e-30
  %166 = vset.pattern.permute.xlu0 0
  %167 = vperm.xlu0 %166, %v162
  %v168 = vpop.permute.xlu0 %167
  %171 = vset.pattern.permute.xlu0 0
  %172 = vperm.xlu0 %171, %v163
  %v173 = vpop.permute.xlu0 %172
  %176 = vset.pattern.permute.xlu0 0
  %177 = vperm.xlu0 %176, %v164
  %v178 = vpop.permute.xlu0 %177
  %v180 = vrcp.pop %v168
  %v181 = vmul.f32 %v168, %v180
  %v182 = vsub.f32 1.0, %v181
  %v183 = vmul.f32 %v180, %v182
  %v184 = vadd.f32 %v180, %v183
  %vm185 = vweird.f32 %v168
  %vm186 = vweird.f32 %v180
  %vm187 = vmor %vm185, %vm186
  %v188 = vsel %vm187, %v180, %v184
  %v189 = vand.u32 2147483647, %v168
  %vm190 = vcmp.eq.f32.partialorder %v189, 8.507059e+37
  %v191 = vand.u32 %v168, 2147483648
  %v192 = vor.u32 1.1754944e-38, %v191
  %v193 = vsel %vm190, %v192, %v188
  %v194 = vmul.f32 %v125, %v193
  %v195 = vrcp.pop %v173
  %v196 = vmul.f32 %v173, %v195
  %v197 = vsub.f32 1.0, %v196
  %v198 = vmul.f32 %v195, %v197
  %v199 = vadd.f32 %v195, %v198
  %vm200 = vweird.f32 %v173
  %vm201 = vweird.f32 %v195
  %vm202 = vmor %vm200, %vm201
  %v203 = vsel %vm202, %v195, %v199
  %v204 = vand.u32 2147483647, %v173
  %vm205 = vcmp.eq.f32.partialorder %v204, 8.507059e+37
  %v206 = vand.u32 %v173, 2147483648
  %v207 = vor.u32 1.1754944e-38, %v206
  %v208 = vsel %vm205, %v207, %v203
  %v209 = vmul.f32 %v128, %v208
  %v210 = vrcp.pop %v178
  %v211 = vmul.f32 %v178, %v210
  %v212 = vsub.f32 1.0, %v211
  %v213 = vmul.f32 %v210, %v212
  %v214 = vadd.f32 %v210, %v213
  %vm215 = vweird.f32 %v178
  %vm216 = vweird.f32 %v210
  %vm217 = vmor %vm215, %vm216
  %v218 = vsel %vm217, %v210, %v214
  %v219 = vand.u32 2147483647, %v178
  %vm220 = vcmp.eq.f32.partialorder %v219, 8.507059e+37
  %v221 = vand.u32 %v178, 2147483648
  %v222 = vor.u32 1.1754944e-38, %v221
  %v223 = vsel %vm220, %v222, %v218
  %v224 = vmul.f32 %v131, %v223
  %v225 = vsel %vm159, 1, 0
  %v226 = vsel %vm160, 1, 0
  %v227 = vsel %vm161, 1, 0
  %228 = vset.pattern.permute.xlu0 0
  %229 = vperm.xlu0 %228, %v225
  %v230 = vpop.permute.xlu0 %229
  %231 = vset.pattern.permute.xlu0 0
  %232 = vperm.xlu0 %231, %v226
  %v233 = vpop.permute.xlu0 %232
  %234 = vset.pattern.permute.xlu0 0
  %235 = vperm.xlu0 %234, %v227
  %v236 = vpop.permute.xlu0 %235
  %vm237 = vcmp.eq.s32.totalorder %v230, 1
  %vm238 = vcmp.eq.s32.totalorder %v233, 1
  %vm239 = vcmp.eq.s32.totalorder %v236, 1
  %v240 = vsel %vm237, %v194, 0.0
  %v241 = vsel %vm238, %v209, 0.0
  %v242 = vsel %vm239, %v224, 0.0
  %v243 = vld [vmem:[%s4] sm:$0x1]
  %v245 = vperm.slane %v243, 0
  %v247 = vadd.f32 %v240, %v245
  %v248 = vadd.f32 %v241, %v245
  %v249 = vadd.f32 %v242, %v245
  %v250 = vmax.f32 %v247, 0.0
  %v251 = vmax.f32 %v248, 0.0
  %v252 = vmax.f32 %v249, 0.0
  %v253 = vld [vmem:[%s5] sm:$0xf]
  %vm254 = vcmask 162816
  %v256 = vsel %vm254, %v253, 0
  %vm258 = vcmask 1043456
  %v260 = vsel %vm258, %v252, 0
  %262 = vmatpush.msra.mxu0 0.0
  %263 = vmatpush.msra.mxu0 0.0
  %264 = vmatpush.msra.mxu0 0.0
  %265 = vmatpush.msra.mxu0 0.0
  %266 = vmatpush.msra.mxu0 0.0
  %267 = vmatpush.msra.mxu0 0.0
  %268 = vmatpush.msra.mxu0 0.0
  %269 = vmatpush.msra.mxu0 0.0
  %270 = vmatpush.msra.mxu0 0.0
  %271 = vmatpush.msra.mxu0 0.0
  %272 = vmatpush.msra.mxu0 0.0
  %273 = vmatpush.msra.mxu0 0.0
  %274 = vmatpush.msra.mxu0 0.0
  %275 = vmatpush.msra.mxu0 %v260
  %276 = vmatpush.msra.mxu0 %v251
  %277 = vmatpush.msra.mxu0 %v250
  %278 = vmatmul.f32.gmra.mxu0 %v256
  %v279 = vpop.f32.mrf.mxu0
  %v280 = vadd.f32 0.0, %v279
  %281 = vdwg.mxu0
  %v282 = vld [vmem:[%s7] sm:$0xf]
  %284 = vset.pattern.permute.xlu0 0
  %285 = vperm.xlu0 %284, %v282
  %v286 = vpop.permute.xlu0 %285
  %v288 = vrcp.pop %v286
  %v289 = vmul.f32 %v286, %v288
  %v290 = vsub.f32 1.0, %v289
  %v291 = vmul.f32 %v288, %v290
  %v292 = vadd.f32 %v288, %v291
  %vm293 = vweird.f32 %v286
  %vm294 = vweird.f32 %v288
  %vm295 = vmor %vm293, %vm294
  %v296 = vsel %vm295, %v288, %v292
  %v297 = vand.u32 2147483647, %v286
  %vm298 = vcmp.eq.f32.partialorder %v297, 8.507059e+37
  %v299 = vand.u32 %v286, 2147483648
  %v300 = vor.u32 1.1754944e-38, %v299
  %v301 = vsel %vm298, %v300, %v296
  %v302 = vmul.f32 %v280, %v301
  %v303 = vld [vmem:[%s6] sm:$0xff]
  %v304 = vld [vmem:[%s6 + $0x8] sm:$0xff]
  %v305 = vld [vmem:[%s6 + $0x10] sm:$0xf]
  %307 = vset.pattern.permute.xlu0 0
  %308 = vperm.xlu0 %307, %v303
  %v309 = vpop.permute.xlu0 %308
  %312 = vset.pattern.permute.xlu0 0
  %313 = vperm.xlu0 %312, %v304
  %v314 = vpop.permute.xlu0 %313
  %317 = vset.pattern.permute.xlu0 0
  %318 = vperm.xlu0 %317, %v305
  %v319 = vpop.permute.xlu0 %318
  %v321 = vmul.f32 %v250, %v309
  %v322 = vmul.f32 %v251, %v314
  %v323 = vmul.f32 %v252, %v319
  %vm324 = vcmask 130048
  %v325 = vsel %vm324, %v321, -inf
  %v326 = vsel %vm324, %v322, -inf
  %vm327 = vcmask 125952
  %v328 = vsel %vm327, %v323, -inf
  %v329 = vmax.f32 %v325, %v326
  %v330 = vmax.f32 %v329, %v328
  %v331 = vrot.slane %v330, 4
  %v332 = vmax.f32 %v330, %v331
  %v333 = vrot.slane %v332, 2
  %v334 = vmax.f32 %v332, %v333
  %v335 = vrot.slane %v334, 1
  %v336 = vmax.f32 %v334, %v335
  %337 = vset.pattern.permute.xlu0 1
  %338 = vperm.xlu0 %337, %v303
  %v339 = vpop.permute.xlu0 %338
  %341 = vset.pattern.permute.xlu0 1
  %342 = vperm.xlu0 %341, %v304
  %v343 = vpop.permute.xlu0 %342
  %345 = vset.pattern.permute.xlu0 1
  %346 = vperm.xlu0 %345, %v305
  %v347 = vpop.permute.xlu0 %346
  %v349 = vmul.f32 %v250, %v339
  %v350 = vmul.f32 %v251, %v343
  %v351 = vmul.f32 %v252, %v347
  %v352 = vsel %vm324, %v349, -inf
  %v353 = vsel %vm324, %v350, -inf
  %v354 = vsel %vm327, %v351, -inf
  %v355 = vmax.f32 %v352, %v353
  %v356 = vmax.f32 %v355, %v354
  %v357 = vrot.slane %v356, 4
  %v358 = vmax.f32 %v356, %v357
  %v359 = vrot.slane %v358, 2
  %v360 = vmax.f32 %v358, %v359
  %v361 = vrot.slane %v360, 1
  %v362 = vmax.f32 %v360, %v361
  %363 = vset.pattern.permute.xlu0 2
  %364 = vperm.xlu0 %363, %v303
  %v365 = vpop.permute.xlu0 %364
  %367 = vset.pattern.permute.xlu0 2
  %368 = vperm.xlu0 %367, %v304
  %v369 = vpop.permute.xlu0 %368
  %371 = vset.pattern.permute.xlu0 2
  %372 = vperm.xlu0 %371, %v305
  %v373 = vpop.permute.xlu0 %372
  %v375 = vmul.f32 %v250, %v365
  %v376 = vmul.f32 %v251, %v369
  %v377 = vmul.f32 %v252, %v373
  %v378 = vsel %vm324, %v375, -inf
  %v379 = vsel %vm324, %v376, -inf
  %v380 = vsel %vm327, %v377, -inf
  %v381 = vmax.f32 %v378, %v379
  %v382 = vmax.f32 %v381, %v380
  %v383 = vrot.slane %v382, 4
  %v384 = vmax.f32 %v382, %v383
  %v385 = vrot.slane %v384, 2
  %v386 = vmax.f32 %v384, %v385
  %v387 = vrot.slane %v386, 1
  %v388 = vmax.f32 %v386, %v387
  %389 = vset.pattern.permute.xlu0 3
  %390 = vperm.xlu0 %389, %v303
  %v391 = vpop.permute.xlu0 %390
  %393 = vset.pattern.permute.xlu0 3
  %394 = vperm.xlu0 %393, %v304
  %v395 = vpop.permute.xlu0 %394
  %397 = vset.pattern.permute.xlu0 3
  %398 = vperm.xlu0 %397, %v305
  %v399 = vpop.permute.xlu0 %398
  %v401 = vmul.f32 %v250, %v391
  %v402 = vmul.f32 %v251, %v395
  %v403 = vmul.f32 %v252, %v399
  %v404 = vsel %vm324, %v401, -inf
  %v405 = vsel %vm324, %v402, -inf
  %v406 = vsel %vm327, %v403, -inf
  %v407 = vmax.f32 %v404, %v405
  %v408 = vmax.f32 %v407, %v406
  %v409 = vrot.slane %v408, 4
  %v410 = vmax.f32 %v408, %v409
  %v411 = vrot.slane %v410, 2
  %v412 = vmax.f32 %v410, %v411
  %v413 = vrot.slane %v412, 1
  %v414 = vmax.f32 %v412, %v413
  %vm415 = vcmask 1040384
  %v416 = vsel %vm415, %v336, %v362
  %vm417 = vcmask 1041408
  %v418 = vsel %vm417, %v416, %v388
  %vm419 = vcmask 1042432
  %v420 = vsel %vm419, %v418, %v414
  %422 = vrot.lane.b32.xlu0 %v420, 16
  %v423 = vpop.permute.xlu0 %422
  %v425 = vsel %vm324, %v302, %v423
  %vm426 = vcmask 257024
  %427 = vst.msk [vmem:[%s8] sm:$0xf] %vm426, %v425
  // Predicated region
  $region34: #{detect_model_forward.8} parent=0 // pred_check
    _
  $region35: #{detect_model_forward.8} parent=0 // pred_check_branch
    %429 = sbr.rel (0) target = $region37
  $region36: #{detect_model_forward.8} parent=0 // pred_region
    _
  $region37: #{detect_model_forward.8} parent=0 // pred_fallthru
    _
  // Predicated region
  $region38: #{detect_model_forward.8} parent=0 // pred_check
    _
  $region39: #{detect_model_forward.8} parent=0 // pred_check_branch
    %431 = sbr.rel (0) target = $region41
  $region40: #{detect_model_forward.8} parent=0 // pred_region
    _
  $region41: #{detect_model_forward.8} parent=0 // pred_fallthru
    _

// kernel: detect_model_forward.6
$region0: #{detect_model_forward.6}
  #allocation0 [shape = 'u32[]', space=smem, size = 0x4, offset = 0x4, fixed_abs, tag = 'smem constant byte address 0x4 - core index']
  #allocation1 [shape = 'u32[72,128]{1,0:T(1,128)}', space=vmem, size = 0x9000, scoped, tag = 'internal scratch']
  %s0 = inlined_call_operand.vmem [shape: bf16[40,16], index: 0, kind: input, shape index: {}]
  %s1 = inlined_call_operand.vmem [shape: f32[40,1], index: 1, kind: input, shape index: {}]
  %s2 = inlined_call_operand.vmem [shape: f32[40,1], index: 2, kind: input, shape index: {}]
  %s3 = inlined_call_operand.vmem [shape: f32[20,40], index: 3, kind: input, shape index: {}]
  %s4 = inlined_call_operand.vmem [shape: f32[1,16], index: 4, kind: input, shape index: {}]
  %s5 = inlined_call_operand.vmem [shape: f32[4,20], index: 5, kind: input, shape index: {}]
  %s6 = inlined_call_operand.vmem [shape: f32[20,4], index: 6, kind: input, shape index: {}]
  %s7 = inlined_call_operand.vmem [shape: f32[4,1], index: 7, kind: input, shape index: {}]
  %s8 = inlined_call_operand.vmem [shape: f32[1,16], index: 8, kind: input, shape index: {}]
  %s9 = inlined_call_operand.vmem [shape: f32[16,1], index: 9, kind: input, shape index: {}]
  %s10 = inlined_call_operand.vmem [shape: f32[20,1], index: 10, kind: input, shape index: {}]
  %s11 = inlined_call_operand.vmem [shape: f32[1,20], index: 11, kind: input, shape index: {}]
  %s12 = inlined_call_operand.vmem [shape: f32[20,1], index: 12, kind: input, shape index: {}]
  %s13 = inlined_call_operand.vmem [shape: f32[1,20], index: 13, kind: input, shape index: {}]
  %s14 = inlined_call_operand.vmem [shape: f32[20,1], index: 14, kind: input, shape index: {}]
  %s15 = inlined_call_operand.vmem [shape: f32[16,2176], index: 15, kind: input, shape index: {}]
  %s16 = inlined_call_operand.vmem [shape: f32[4,32], index: 16, kind: output, shape index: {0}]
  %s17 = inlined_call_operand.vmem [shape: f32[20,1], index: 17, kind: output, shape index: {1}]
  %s18 = inlined_call_operand.vmem [shape: bf16[20,2176], index: 18, kind: output, shape index: {2}]
  %19 = xla_tuple %s16, %s17, %s18
  %s20 = sld [smem:[#allocation0]]
  $region90: #{detect_model_forward.6} parent=0
    _
  %s22 = ssub.s32 1, %s20
  %s23 = scalar_select 0, %s22, %s20
  // Predicated region
  $region2: #{detect_model_forward.6} parent=0 // pred_check
    _
  $region3: #{detect_model_forward.6} parent=0 // pred_check_branch
    %25 = sbr.rel (0) target = $region5
  $region4: #{detect_model_forward.6} parent=0 // pred_region
    _
  $region5: #{detect_model_forward.6} parent=0 // pred_fallthru
    _
  // Predicated region
  $region6: #{detect_model_forward.6} parent=0 // pred_check
    _
  $region7: #{detect_model_forward.6} parent=0 // pred_check_branch
    %27 = sbr.rel (0) target = $region9
  $region8: #{detect_model_forward.6} parent=0 // pred_region
    _
  $region9: #{detect_model_forward.6} parent=0 // pred_fallthru
    _
  // Predicated region
  $region10: #{detect_model_forward.6} parent=0 // pred_check
    _
  $region11: #{detect_model_forward.6} parent=0 // pred_check_branch
    %29 = sbr.rel (0) target = $region13
  $region12: #{detect_model_forward.6} parent=0 // pred_region
    _
  $region13: #{detect_model_forward.6} parent=0 // pred_fallthru
    _
  // Predicated region
  $region14: #{detect_model_forward.6} parent=0 // pred_check
    _
  $region15: #{detect_model_forward.6} parent=0 // pred_check_branch
    %31 = sbr.rel (0) target = $region17
  $region16: #{detect_model_forward.6} parent=0 // pred_region
    _
  $region17: #{detect_model_forward.6} parent=0 // pred_fallthru
    _
  // Predicated region
  $region18: #{detect_model_forward.6} parent=0 // pred_check
    _
  $region19: #{detect_model_forward.6} parent=0 // pred_check_branch
    %33 = sbr.rel (0) target = $region21
  $region20: #{detect_model_forward.6} parent=0 // pred_region
    _
  $region21: #{detect_model_forward.6} parent=0 // pred_fallthru
    _
  // Predicated region
  $region22: #{detect_model_forward.6} parent=0 // pred_check
    _
  $region23: #{detect_model_forward.6} parent=0 // pred_check_branch
    %35 = sbr.rel (0) target = $region25
  $region24: #{detect_model_forward.6} parent=0 // pred_region
    _
  $region25: #{detect_model_forward.6} parent=0 // pred_fallthru
    _
  // Predicated region
  $region26: #{detect_model_forward.6} parent=0 // pred_check
    _
  $region27: #{detect_model_forward.6} parent=0 // pred_check_branch
    %37 = sbr.rel (0) target = $region29
  $region28: #{detect_model_forward.6} parent=0 // pred_region
    _
  $region29: #{detect_model_forward.6} parent=0 // pred_fallthru
    _
  // Predicated region
  $region30: #{detect_model_forward.6} parent=0 // pred_check
    _
  $region31: #{detect_model_forward.6} parent=0 // pred_check_branch
    %39 = sbr.rel (0) target = $region33
  $region32: #{detect_model_forward.6} parent=0 // pred_region
    _
  $region33: #{detect_model_forward.6} parent=0 // pred_fallthru
    _
  // Predicated region
  $region34: #{detect_model_forward.6} parent=0 // pred_check
    _
  $region35: #{detect_model_forward.6} parent=0 // pred_check_branch
    %41 = sbr.rel (0) target = $region37
  $region36: #{detect_model_forward.6} parent=0 // pred_region
    _
  $region37: #{detect_model_forward.6} parent=0 // pred_fallthru
    _
  // Predicated region
  $region38: #{detect_model_forward.6} parent=0 // pred_check
    _
  $region39: #{detect_model_forward.6} parent=0 // pred_check_branch
    %43 = sbr.rel (0) target = $region41
  $region40: #{detect_model_forward.6} parent=0 // pred_region
    _
  $region41: #{detect_model_forward.6} parent=0 // pred_fallthru
    _
  // Predicated region
  $region42: #{detect_model_forward.6} parent=0 // pred_check
    _
  $region43: #{detect_model_forward.6} parent=0 // pred_check_branch
    %45 = sbr.rel (0) target = $region45
  $region44: #{detect_model_forward.6} parent=0 // pred_region
    _
  $region45: #{detect_model_forward.6} parent=0 // pred_fallthru
    _
  // Predicated region
  $region46: #{detect_model_forward.6} parent=0 // pred_check
    _
  $region47: #{detect_model_forward.6} parent=0 // pred_check_branch
    %47 = sbr.rel (0) target = $region49
  $region48: #{detect_model_forward.6} parent=0 // pred_region
    _
  $region49: #{detect_model_forward.6} parent=0 // pred_fallthru
    _
  // Predicated region
  $region50: #{detect_model_forward.6} parent=0 // pred_check
    _
  $region51: #{detect_model_forward.6} parent=0 // pred_check_branch
    %49 = sbr.rel (0) target = $region53
  $region52: #{detect_model_forward.6} parent=0 // pred_region
    _
  $region53: #{detect_model_forward.6} parent=0 // pred_fallthru
    _
  // Predicated region
  $region54: #{detect_model_forward.6} parent=0 // pred_check
    _
  $region55: #{detect_model_forward.6} parent=0 // pred_check_branch
    %51 = sbr.rel (0) target = $region57
  $region56: #{detect_model_forward.6} parent=0 // pred_region
    _
  $region57: #{detect_model_forward.6} parent=0 // pred_fallthru
    _
  // Predicated region
  $region58: #{detect_model_forward.6} parent=0 // pred_check
    _
  $region59: #{detect_model_forward.6} parent=0 // pred_check_branch
    %53 = sbr.rel (0) target = $region61
  $region60: #{detect_model_forward.6} parent=0 // pred_region
    _
  $region61: #{detect_model_forward.6} parent=0 // pred_fallthru
    _
  // Predicated region
  $region62: #{detect_model_forward.6} parent=0 // pred_check
    _
  $region63: #{detect_model_forward.6} parent=0 // pred_check_branch
    %55 = sbr.rel (0) target = $region65
  $region64: #{detect_model_forward.6} parent=0 // pred_region
    _
  $region65: #{detect_model_forward.6} parent=0 // pred_fallthru
    _
  %v56 = vld [vmem:[%s0] sm:$0xf]
  %v57 = vld [vmem:[%s0 + $0x4] sm:$0xf]
  %v58 = vld [vmem:[%s0 + $0x8] sm:$0xf]
  %v59 = vld [vmem:[%s0 + $0xc] sm:$0xf]
  %v60 = vld [vmem:[%s0 + $0x10] sm:$0xf]
  %v61 = vunpack.c.l.bf16 %v56
  %v62 = vunpack.c.l.bf16 %v57
  %v63 = vunpack.c.l.bf16 %v58
  %v64 = vunpack.c.l.bf16 %v59
  %v65 = vunpack.c.l.bf16 %v60
  %v66 = vld [vmem:[%s2] sm:$0xff]
  %v67 = vld [vmem:[%s2 + $0x8] sm:$0xff]
  %v68 = vld [vmem:[%s2 + $0x10] sm:$0xff]
  %v69 = vld [vmem:[%s2 + $0x18] sm:$0xff]
  %v70 = vld [vmem:[%s2 + $0x20] sm:$0xff]
  %v71 = vld [vmem:[%s1] sm:$0xff]
  %v72 = vld [vmem:[%s1 + $0x8] sm:$0xff]
  %v73 = vld [vmem:[%s1 + $0x10] sm:$0xff]
  %v74 = vld [vmem:[%s1 + $0x18] sm:$0xff]
  %v75 = vld [vmem:[%s1 + $0x20] sm:$0xff]
  %v76 = vmul.f32 %v71, 1.442695
  %v77 = vpow.pop %v76
  %v78 = vmul.f32 %v72, 1.442695
  %v79 = vpow.pop %v78
  %v80 = vmul.f32 %v73, 1.442695
  %v81 = vpow.pop %v80
  %v82 = vmul.f32 %v74, 1.442695
  %v83 = vpow.pop %v82
  %v84 = vmul.f32 %v75, 1.442695
  %v85 = vpow.pop %v84
  %v86 = vmul.f32 %v66, %v77
  %v87 = vmul.f32 %v67, %v79
  %v88 = vmul.f32 %v68, %v81
  %v89 = vmul.f32 %v69, %v83
  %v90 = vmul.f32 %v70, %v85
  %v91 = vld [vmem:[%s3] sm:$0xff]
  %v92 = vld [vmem:[%s3 + $0x8] sm:$0xff]
  %v93 = vld [vmem:[%s3 + $0x10] sm:$0xf]
  %95 = vset.pattern.permute.xlu0 0
  %96 = vperm.xlu0 %95, %v86
  %v97 = vpop.permute.xlu0 %96
  %100 = vset.pattern.permute.xlu0 0
  %101 = vperm.xlu0 %100, %v87
  %v102 = vpop.permute.xlu0 %101
  %105 = vset.pattern.permute.xlu0 0
  %106 = vperm.xlu0 %105, %v88
  %v107 = vpop.permute.xlu0 %106
  %110 = vset.pattern.permute.xlu0 0
  %111 = vperm.xlu0 %110, %v89
  %v112 = vpop.permute.xlu0 %111
  %115 = vset.pattern.permute.xlu0 0
  %116 = vperm.xlu0 %115, %v90
  %v117 = vpop.permute.xlu0 %116
  %v119 = vmul.f32 %v97, %v61
  %v120 = vmul.f32 %v102, %v62
  %v121 = vmul.f32 %v107, %v63
  %v122 = vmul.f32 %v112, %v64
  %v123 = vmul.f32 %v117, %v65
  %vm124 = vcmask 326656
  %v126 = vsel %vm124, %v91, 0
  %v129 = vsel %vm124, %v92, 0
  %v132 = vsel %vm124, %v93, 0
  %134 = vmatpush.msra.mxu0 0.0
  %135 = vmatpush.msra.mxu0 0.0
  %136 = vmatpush.msra.mxu0 0.0
  %137 = vmatpush.msra.mxu0 0.0
  %138 = vmatpush.msra.mxu0 0.0
  %139 = vmatpush.msra.mxu0 0.0
  %140 = vmatpush.msra.mxu0 0.0
  %141 = vmatpush.msra.mxu0 0.0
  %142 = vmatpush.msra.mxu0 0.0
  %143 = vmatpush.msra.mxu0 0.0
  %144 = vmatpush.msra.mxu0 0.0
  %145 = vmatpush.msra.mxu0 %v123
  %146 = vmatpush.msra.mxu0 %v122
  %147 = vmatpush.msra.mxu0 %v121
  %148 = vmatpush.msra.mxu0 %v120
  %149 = vmatpush.msra.mxu0 %v119
  %150 = vmatmul.f32.gmra.mxu0 %v126
  %v151 = vpop.f32.mrf.mxu0
  %v152 = vadd.f32 0.0, %v151
  %153 = vmatmul.f32.gmra.mxu0 %v129
  %v154 = vpop.f32.mrf.mxu0
  %v155 = vadd.f32 0.0, %v154
  %156 = vmatmul.f32.gmra.mxu0 %v132
  %v157 = vpop.f32.mrf.mxu0
  %v158 = vadd.f32 0.0, %v157
  %159 = vdwg.mxu0
  %160 = vmatpush.msra.mxu0 0.0
  %161 = vmatpush.msra.mxu0 0.0
  %162 = vmatpush.msra.mxu0 0.0
  %163 = vmatpush.msra.mxu0 0.0
  %164 = vmatpush.msra.mxu0 0.0
  %165 = vmatpush.msra.mxu0 0.0
  %166 = vmatpush.msra.mxu0 0.0
  %167 = vmatpush.msra.mxu0 0.0
  %168 = vmatpush.msra.mxu0 0.0
  %169 = vmatpush.msra.mxu0 0.0
  %170 = vmatpush.msra.mxu0 0.0
  %171 = vmatpush.msra.mxu0 %v90
  %172 = vmatpush.msra.mxu0 %v89
  %173 = vmatpush.msra.mxu0 %v88
  %174 = vmatpush.msra.mxu0 %v87
  %175 = vmatpush.msra.mxu0 %v86
  %176 = vmatmul.f32.gmra.mxu0 %v126
  %v177 = vpop.f32.mrf.mxu0
  %v178 = vadd.f32 0.0, %v177
  %179 = vmatmul.f32.gmra.mxu0 %v129
  %v180 = vpop.f32.mrf.mxu0
  %v181 = vadd.f32 0.0, %v180
  %182 = vmatmul.f32.gmra.mxu0 %v132
  %v183 = vpop.f32.mrf.mxu0
  %v184 = vadd.f32 0.0, %v183
  %185 = vdwg.mxu0
  %vm186 = vcmp.gt.f32.partialorder %v178, 0.0
  %vm187 = vcmp.gt.f32.partialorder %v181, 0.0
  %vm188 = vcmp.gt.f32.partialorder %v184, 0.0
  %v189 = vmax.f32 %v178, 1e-30
  %v190 = vmax.f32 %v181, 1e-30
  %v191 = vmax.f32 %v184, 1e-30
  %193 = vset.pattern.permute.xlu0 0
  %194 = vperm.xlu0 %193, %v189
  %v195 = vpop.permute.xlu0 %194
  %198 = vset.pattern.permute.xlu0 0
  %199 = vperm.xlu0 %198, %v190
  %v200 = vpop.permute.xlu0 %199
  %203 = vset.pattern.permute.xlu0 0
  %204 = vperm.xlu0 %203, %v191
  %v205 = vpop.permute.xlu0 %204
  %v207 = vrcp.pop %v195
  %v208 = vmul.f32 %v195, %v207
  %v209 = vsub.f32 1.0, %v208
  %v210 = vmul.f32 %v207, %v209
  %v211 = vadd.f32 %v207, %v210
  %vm212 = vweird.f32 %v195
  %vm213 = vweird.f32 %v207
  %vm214 = vmor %vm212, %vm213
  %v215 = vsel %vm214, %v207, %v211
  %v216 = vand.u32 2147483647, %v195
  %vm217 = vcmp.eq.f32.partialorder %v216, 8.507059e+37
  %v218 = vand.u32 %v195, 2147483648
  %v219 = vor.u32 1.1754944e-38, %v218
  %v220 = vsel %vm217, %v219, %v215
  %v221 = vmul.f32 %v152, %v220
  %v222 = vrcp.pop %v200
  %v223 = vmul.f32 %v200, %v222
  %v224 = vsub.f32 1.0, %v223
  %v225 = vmul.f32 %v222, %v224
  %v226 = vadd.f32 %v222, %v225
  %vm227 = vweird.f32 %v200
  %vm228 = vweird.f32 %v222
  %vm229 = vmor %vm227, %vm228
  %v230 = vsel %vm229, %v222, %v226
  %v231 = vand.u32 2147483647, %v200
  %vm232 = vcmp.eq.f32.partialorder %v231, 8.507059e+37
  %v233 = vand.u32 %v200, 2147483648
  %v234 = vor.u32 1.1754944e-38, %v233
  %v235 = vsel %vm232, %v234, %v230
  %v236 = vmul.f32 %v155, %v235
  %v237 = vrcp.pop %v205
  %v238 = vmul.f32 %v205, %v237
  %v239 = vsub.f32 1.0, %v238
  %v240 = vmul.f32 %v237, %v239
  %v241 = vadd.f32 %v237, %v240
  %vm242 = vweird.f32 %v205
  %vm243 = vweird.f32 %v237
  %vm244 = vmor %vm242, %vm243
  %v245 = vsel %vm244, %v237, %v241
  %v246 = vand.u32 2147483647, %v205
  %vm247 = vcmp.eq.f32.partialorder %v246, 8.507059e+37
  %v248 = vand.u32 %v205, 2147483648
  %v249 = vor.u32 1.1754944e-38, %v248
  %v250 = vsel %vm247, %v249, %v245
  %v251 = vmul.f32 %v158, %v250
  %v252 = vsel %vm186, 1, 0
  %v253 = vsel %vm187, 1, 0
  %v254 = vsel %vm188, 1, 0
  %255 = vset.pattern.permute.xlu0 0
  %256 = vperm.xlu0 %255, %v252
  %v257 = vpop.permute.xlu0 %256
  %258 = vset.pattern.permute.xlu0 0
  %259 = vperm.xlu0 %258, %v253
  %v260 = vpop.permute.xlu0 %259
  %261 = vset.pattern.permute.xlu0 0
  %262 = vperm.xlu0 %261, %v254
  %v263 = vpop.permute.xlu0 %262
  %vm264 = vcmp.eq.s32.totalorder %v257, 1
  %vm265 = vcmp.eq.s32.totalorder %v260, 1
  %vm266 = vcmp.eq.s32.totalorder %v263, 1
  %v267 = vsel %vm264, %v221, 0.0
  %v268 = vsel %vm265, %v236, 0.0
  %v269 = vsel %vm266, %v251, 0.0
  %v270 = vld [vmem:[%s4] sm:$0x1]
  %v272 = vperm.slane %v270, 0
  %v274 = vadd.f32 %v267, %v272
  %v275 = vadd.f32 %v268, %v272
  %v276 = vadd.f32 %v269, %v272
  %v277 = vmax.f32 %v274, 0.0
  %v278 = vmax.f32 %v275, 0.0
  %v279 = vmax.f32 %v276, 0.0
  %v280 = vld [vmem:[%s5] sm:$0xf]
  %vm281 = vcmask 162816
  %v283 = vsel %vm281, %v280, 0
  %vm285 = vcmask 1043456
  %v287 = vsel %vm285, %v279, 0
  %289 = vmatpush.msra.mxu0 0.0
  %290 = vmatpush.msra.mxu0 0.0
  %291 = vmatpush.msra.mxu0 0.0
  %292 = vmatpush.msra.mxu0 0.0
  %293 = vmatpush.msra.mxu0 0.0
  %294 = vmatpush.msra.mxu0 0.0
  %295 = vmatpush.msra.mxu0 0.0
  %296 = vmatpush.msra.mxu0 0.0
  %297 = vmatpush.msra.mxu0 0.0
  %298 = vmatpush.msra.mxu0 0.0
  %299 = vmatpush.msra.mxu0 0.0
  %300 = vmatpush.msra.mxu0 0.0
  %301 = vmatpush.msra.mxu0 0.0
  %302 = vmatpush.msra.mxu0 %v287
  %303 = vmatpush.msra.mxu0 %v278
  %304 = vmatpush.msra.mxu0 %v277
  %305 = vmatmul.f32.gmra.mxu0 %v283
  %v306 = vpop.f32.mrf.mxu0
  %v307 = vadd.f32 0.0, %v306
  %308 = vdwg.mxu0
  %v309 = vld [vmem:[%s7] sm:$0xf]
  %311 = vset.pattern.permute.xlu0 0
  %312 = vperm.xlu0 %311, %v309
  %v313 = vpop.permute.xlu0 %312
  %v315 = vrcp.pop %v313
  %v316 = vmul.f32 %v313, %v315
  %v317 = vsub.f32 1.0, %v316
  %v318 = vmul.f32 %v315, %v317
  %v319 = vadd.f32 %v315, %v318
  %vm320 = vweird.f32 %v313
  %vm321 = vweird.f32 %v315
  %vm322 = vmor %vm320, %vm321
  %v323 = vsel %vm322, %v315, %v319
  %v324 = vand.u32 2147483647, %v313
  %vm325 = vcmp.eq.f32.partialorder %v324, 8.507059e+37
  %v326 = vand.u32 %v313, 2147483648
  %v327 = vor.u32 1.1754944e-38, %v326
  %v328 = vsel %vm325, %v327, %v323
  %v329 = vmul.f32 %v307, %v328
  %v330 = vld [vmem:[%s6] sm:$0xff]
  %v331 = vld [vmem:[%s6 + $0x8] sm:$0xff]
  %v332 = vld [vmem:[%s6 + $0x10] sm:$0xf]
  %334 = vset.pattern.permute.xlu0 0
  %335 = vperm.xlu0 %334, %v330
  %v336 = vpop.permute.xlu0 %335
  %339 = vset.pattern.permute.xlu0 0
  %340 = vperm.xlu0 %339, %v331
  %v341 = vpop.permute.xlu0 %340
  %344 = vset.pattern.permute.xlu0 0
  %345 = vperm.xlu0 %344, %v332
  %v346 = vpop.permute.xlu0 %345
  %v348 = vmul.f32 %v277, %v336
  %v349 = vmul.f32 %v278, %v341
  %v350 = vmul.f32 %v279, %v346
  %vm351 = vcmask 130048
  %v352 = vsel %vm351, %v348, -inf
  %v353 = vsel %vm351, %v349, -inf
  %vm354 = vcmask 125952
  %v355 = vsel %vm354, %v350, -inf
  %v356 = vmax.f32 %v352, %v353
  %v357 = vmax.f32 %v356, %v355
  %v358 = vrot.slane %v357, 4
  %v359 = vmax.f32 %v357, %v358
  %v360 = vrot.slane %v359, 2
  %v361 = vmax.f32 %v359, %v360
  %v362 = vrot.slane %v361, 1
  %v363 = vmax.f32 %v361, %v362
  %364 = vset.pattern.permute.xlu0 1
  %365 = vperm.xlu0 %364, %v330
  %v366 = vpop.permute.xlu0 %365
  %368 = vset.pattern.permute.xlu0 1
  %369 = vperm.xlu0 %368, %v331
  %v370 = vpop.permute.xlu0 %369
  %372 = vset.pattern.permute.xlu0 1
  %373 = vperm.xlu0 %372, %v332
  %v374 = vpop.permute.xlu0 %373
  %v376 = vmul.f32 %v277, %v366
  %v377 = vmul.f32 %v278, %v370
  %v378 = vmul.f32 %v279, %v374
  %v379 = vsel %vm351, %v376, -inf
  %v380 = vsel %vm351, %v377, -inf
  %v381 = vsel %vm354, %v378, -inf
  %v382 = vmax.f32 %v379, %v380
  %v383 = vmax.f32 %v382, %v381
  %v384 = vrot.slane %v383, 4
  %v385 = vmax.f32 %v383, %v384
  %v386 = vrot.slane %v385, 2
  %v387 = vmax.f32 %v385, %v386
  %v388 = vrot.slane %v387, 1
  %v389 = vmax.f32 %v387, %v388
  %390 = vset.pattern.permute.xlu0 2
  %391 = vperm.xlu0 %390, %v330
  %v392 = vpop.permute.xlu0 %391
  %394 = vset.pattern.permute.xlu0 2
  %395 = vperm.xlu0 %394, %v331
  %v396 = vpop.permute.xlu0 %395
  %398 = vset.pattern.permute.xlu0 2
  %399 = vperm.xlu0 %398, %v332
  %v400 = vpop.permute.xlu0 %399
  %v402 = vmul.f32 %v277, %v392
  %v403 = vmul.f32 %v278, %v396
  %v404 = vmul.f32 %v279, %v400
  %v405 = vsel %vm351, %v402, -inf
  %v406 = vsel %vm351, %v403, -inf
  %v407 = vsel %vm354, %v404, -inf
  %v408 = vmax.f32 %v405, %v406
  %v409 = vmax.f32 %v408, %v407
  %v410 = vrot.slane %v409, 4
  %v411 = vmax.f32 %v409, %v410
  %v412 = vrot.slane %v411, 2
  %v413 = vmax.f32 %v411, %v412
  %v414 = vrot.slane %v413, 1
  %v415 = vmax.f32 %v413, %v414
  %416 = vset.pattern.permute.xlu0 3
  %417 = vperm.xlu0 %416, %v330
  %v418 = vpop.permute.xlu0 %417
  %420 = vset.pattern.permute.xlu0 3
  %421 = vperm.xlu0 %420, %v331
  %v422 = vpop.permute.xlu0 %421
  %424 = vset.pattern.permute.xlu0 3
  %425 = vperm.xlu0 %424, %v332
  %v426 = vpop.permute.xlu0 %425
  %v428 = vmul.f32 %v277, %v418
  %v429 = vmul.f32 %v278, %v422
  %v430 = vmul.f32 %v279, %v426
  %v431 = vsel %vm351, %v428, -inf
  %v432 = vsel %vm351, %v429, -inf
  %v433 = vsel %vm354, %v430, -inf
  %v434 = vmax.f32 %v431, %v432
  %v435 = vmax.f32 %v434, %v433
  %v436 = vrot.slane %v435, 4
  %v437 = vmax.f32 %v435, %v436
  %v438 = vrot.slane %v437, 2
  %v439 = vmax.f32 %v437, %v438
  %v440 = vrot.slane %v439, 1
  %v441 = vmax.f32 %v439, %v440
  %vm442 = vcmask 1040384
  %v443 = vsel %vm442, %v363, %v389
  %vm444 = vcmask 1041408
  %v445 = vsel %vm444, %v443, %v415
  %vm446 = vcmask 1042432
  %v447 = vsel %vm446, %v445, %v441
  %449 = vrot.lane.b32.xlu0 %v447, 16
  %v450 = vpop.permute.xlu0 %449
  %v452 = vsel %vm351, %v329, %v450
  %vm453 = vcmask 257024
  %454 = vst.msk [vmem:[%s16] sm:$0xf] %vm453, %v452
  %v455 = vld [vmem:[%s9] sm:$0xff]
  %v456 = vld [vmem:[%s9 + $0x8] sm:$0xff]
  %v458 = vsel %vm351, %v277, 0
  %v461 = vsel %vm351, %v278, 0
  %v463 = vsel %vm351, %v279, 0
  %465 = vmatpush.msra.mxu0 0.0
  %466 = vmatpush.msra.mxu0 0.0
  %467 = vmatpush.msra.mxu0 0.0
  %468 = vmatpush.msra.mxu0 0.0
  %469 = vmatpush.msra.mxu0 0.0
  %470 = vmatpush.msra.mxu0 0.0
  %471 = vmatpush.msra.mxu0 0.0
  %472 = vmatpush.msra.mxu0 0.0
  %473 = vmatpush.msra.mxu0 0.0
  %474 = vmatpush.msra.mxu0 0.0
  %475 = vmatpush.msra.mxu0 0.0
  %476 = vmatpush.msra.mxu0 0.0
  %477 = vmatpush.msra.mxu0 0.0
  %478 = vmatpush.msra.mxu0 0.0
  %479 = vmatpush.msra.mxu0 %v456
  %480 = vmatpush.msra.mxu0 %v455
  %481 = vmatmul.f32.gmra.mxu0 %v458
  %v482 = vpop.f32.mrf.mxu0
  %v483 = vadd.f32 0.0, %v482
  %484 = vmatmul.f32.gmra.mxu0 %v461
  %v485 = vpop.f32.mrf.mxu0
  %v486 = vadd.f32 0.0, %v485
  %487 = vmatmul.f32.gmra.mxu0 %v463
  %v488 = vpop.f32.mrf.mxu0
  %v489 = vadd.f32 0.0, %v488
  %490 = vdwg.mxu0
  %v491 = vtanh.pop %v483
  %v492 = vtanh.pop %v486
  %v493 = vtanh.pop %v489
  %v494 = vld [vmem:[%s8] sm:$0x1]
  %v496 = vsel %vm351, %v494, 0
  %498 = vmatpush.xpose.msra.mxu0 0.0
  %499 = vmatpush.xpose.msra.mxu0 0.0
  %500 = vmatpush.xpose.msra.mxu0 0.0
  %501 = vmatpush.xpose.msra.mxu0 0.0
  %502 = vmatpush.xpose.msra.mxu0 0.0
  %503 = vmatpush.xpose.msra.mxu0 0.0
  %504 = vmatpush.xpose.msra.mxu0 0.0
  %505 = vmatpush.xpose.msra.mxu0 0.0
  %506 = vmatpush.xpose.msra.mxu0 0.0
  %507 = vmatpush.xpose.msra.mxu0 0.0
  %508 = vmatpush.xpose.msra.mxu0 0.0
  %509 = vmatpush.xpose.msra.mxu0 0.0
  %510 = vmatpush.xpose.msra.mxu0 0.0
  %511 = vmatpush.xpose.msra.mxu0 %v463
  %512 = vmatpush.xpose.msra.mxu0 %v461
  %513 = vmatpush.xpose.msra.mxu0 %v458
  %514 = vmatmul.f32.gmra.mxu0 %v496
  %v515 = vpop.f32.mrf.mxu0
  %v516 = vadd.f32 0.0, %v515
  %517 = vdwg.mxu0
  %v518 = vtanh.pop %v516
  %v519 = vlaneseq
  %v520 = vshrl.u32 %v519, 7
  %v521 = vadd.s32 %v520, 8
  %v522 = vadd.s32 %v520, 16
  %v523 = vlaneseq
  %v524 = vand.u32 %v523, 127
  %v525 = vld [vmem:[%s11] sm:$0x1]
  %v526 = vld [vmem:[%s10] sm:$0xff]
  %v527 = vld [vmem:[%s10 + $0x8] sm:$0xff]
  %v528 = vld [vmem:[%s10 + $0x10] sm:$0xf]
  %v530 = vperm.slane %v525, 0
  %533 = vset.pattern.permute.xlu0 0
  %534 = vperm.xlu0 %533, %v526
  %v535 = vpop.permute.xlu0 %534
  %538 = vset.pattern.permute.xlu0 0
  %539 = vperm.xlu0 %538, %v527
  %v540 = vpop.permute.xlu0 %539
  %543 = vset.pattern.permute.xlu0 0
  %544 = vperm.xlu0 %543, %v528
  %v545 = vpop.permute.xlu0 %544
  %vm547 = vcmp.eq.f32.partialorder %v530, %v535
  %vm548 = vcmp.eq.f32.partialorder %v530, %v540
  %vm549 = vcmp.eq.f32.partialorder %v530, %v545
  %v550 = vperm.slane %v518, 0
  %552 = vset.pattern.permute.xlu0 0
  %553 = vperm.xlu0 %552, %v491
  %v554 = vpop.permute.xlu0 %553
  %557 = vset.pattern.permute.xlu0 0
  %558 = vperm.xlu0 %557, %v492
  %v559 = vpop.permute.xlu0 %558
  %562 = vset.pattern.permute.xlu0 0
  %563 = vperm.xlu0 %562, %v493
  %v564 = vpop.permute.xlu0 %563
  %vm566 = vcmp.gt.f32.partialorder %v550, %v554
  %vm567 = vcmp.gt.f32.partialorder %v550, %v559
  %vm568 = vcmp.gt.f32.partialorder %v550, %v564
  %vm569 = vcmp.ge.f32.partialorder %v550, %v554
  %vm570 = vcmp.ge.f32.partialorder %v550, %v559
  %vm571 = vcmp.ge.f32.partialorder %v550, %v564
  %vm572 = vcmp.lt.s32.totalorder %v524, %v520
  %vm573 = vcmp.lt.s32.totalorder %v524, %v521
  %vm574 = vcmp.lt.s32.totalorder %v524, %v522
  %vm575 = vmand %vm569, %vm572
  %vm576 = vmand %vm570, %vm573
  %vm577 = vmand %vm571, %vm574
  %vm578 = vmor %vm566, %vm575
  %vm579 = vmor %vm567, %vm576
  %vm580 = vmor %vm568, %vm577
  %v581 = vld [vmem:[%s13] sm:$0x1]
  %vm582 = vcmp.gt.f32.partialorder %v581, 0.0
  %v583 = vsel %vm582, 1, 0
  %v584 = vperm.slane %v583, 0
  %vm585 = vcmp.eq.s32.totalorder %v584, 1
  %vm586 = vmand %vm547, %vm585
  %vm587 = vmand %vm548, %vm585
  %vm588 = vmand %vm549, %vm585
  %vm589 = vcmp.ne.s32.totalorder %v520, %v524
  %vm590 = vcmp.ne.s32.totalorder %v521, %v524
  %vm591 = vcmp.ne.s32.totalorder %v522, %v524
  %vm592 = vmand %vm589, %vm578
  %vm593 = vmand %vm590, %vm579
  %vm594 = vmand %vm591, %vm580
  %vm595 = vmand %vm586, %vm592
  %vm596 = vmand %vm587, %vm593
  %vm597 = vmand %vm588, %vm594
  %v598 = vsel %vm595, 1, 0
  %v599 = vsel %vm596, 1, 0
  %v600 = vsel %vm597, 1, 0
  %v601 = vcvt.s32.f32 %v598
  %v602 = vcvt.s32.f32 %v599
  %v603 = vcvt.s32.f32 %v600
  %v604 = vsel %vm281, %v601, 0.0
  %605 = vadd.xlane.f32.xlu0 %v604
  %v606 = vpop.xlane.xlu0 %605
  %v607 = vsel %vm281, %v602, 0.0
  %608 = vadd.xlane.f32.xlu0 %v607
  %v609 = vpop.xlane.xlu0 %608
  %vm610 = vcmask 158720
  %v611 = vsel %vm610, %v603, 0.0
  %612 = vadd.xlane.f32.xlu0 %v611
  %v613 = vpop.xlane.xlu0 %612
  %v614 = vld [vmem:[%s12] sm:$0xff]
  %v615 = vld [vmem:[%s12 + $0x8] sm:$0xff]
  %v616 = vld [vmem:[%s12 + $0x10] sm:$0xf]
  %vm617 = vcmp.gt.f32.partialorder %v614, 0.0
  %vm618 = vcmp.gt.f32.partialorder %v615, 0.0
  %vm619 = vcmp.gt.f32.partialorder %v616, 0.0
  %v620 = vld [vmem:[%s14] sm:$0xff]
  %v621 = vld [vmem:[%s14 + $0x8] sm:$0xff]
  %v622 = vld [vmem:[%s14 + $0x10] sm:$0xf]
  %vm623 = vcmp.lt.f32.partialorder %v606, %v620
  %vm624 = vcmp.lt.f32.partialorder %v609, %v621
  %vm625 = vcmp.lt.f32.partialorder %v613, %v622
  %vm626 = vmand %vm617, %vm623
  %vm627 = vmand %vm618, %vm624
  %vm628 = vmand %vm619, %vm625
  %v629 = vsel %vm626, 1, 0
  %v630 = vsel %vm627, 1, 0
  %v631 = vsel %vm628, 1, 0
  %v632 = vcvt.s32.f32 %v629
  %v633 = vcvt.s32.f32 %v630
  %v634 = vcvt.s32.f32 %v631
  %vm635 = vcmask 7168
  %636 = vst.msk [vmem:[%s17] sm:$0xff] %vm635, %v632
  %637 = vst.msk [vmem:[%s17 + $0x8] sm:$0xff] %vm635, %v633
  %vm638 = vcmask 3072
  %639 = vst.msk [vmem:[%s17 + $0x10] sm:$0xf] %vm638, %v634
  %v640 = vmul.f32 %v277, %v554
  %v641 = vmul.f32 %v278, %v559
  %v642 = vmul.f32 %v279, %v564
  %644 = vset.pattern.permute.xlu0 0
  %645 = vperm.xlu0 %644, %v632
  %v646 = vpop.permute.xlu0 %645
  %649 = vset.pattern.permute.xlu0 0
  %650 = vperm.xlu0 %649, %v633
  %v651 = vpop.permute.xlu0 %650
  %654 = vset.pattern.permute.xlu0 0
  %655 = vperm.xlu0 %654, %v634
  %v656 = vpop.permute.xlu0 %655
  %v658 = vmul.f32 %v640, %v646
  %v659 = vmul.f32 %v641, %v651
  %v660 = vmul.f32 %v642, %v656
  %v661 = vld [vmem:[%s15] sm:$0xff]
  %v662 = vld [vmem:[%s15 + $0x8] sm:$0xff]
  %v663 = vld [vmem:[%s15 + $0x10] sm:$0xff]
  %v664 = vld [vmem:[%s15 + $0x18] sm:$0xff]
  %v665 = vld [vmem:[%s15 + $0x20] sm:$0xff]
  %v666 = vld [vmem:[%s15 + $0x28] sm:$0xff]
  %v667 = vld [vmem:[%s15 + $0x30] sm:$0xff]
  %v668 = vld [vmem:[%s15 + $0x38] sm:$0xff]
  %v669 = vld [vmem:[%s15 + $0x40] sm:$0xff]
  %v670 = vld [vmem:[%s15 + $0x48] sm:$0xff]
  %v671 = vld [vmem:[%s15 + $0x50] sm:$0xff]
  %v672 = vld [vmem:[%s15 + $0x58] sm:$0xff]
  %v673 = vld [vmem:[%s15 + $0x60] sm:$0xff]
  %v674 = vld [vmem:[%s15 + $0x68] sm:$0xff]
  %v675 = vld [vmem:[%s15 + $0x70] sm:$0xff]
  %v676 = vld [vmem:[%s15 + $0x78] sm:$0xff]
  %v677 = vld [vmem:[%s15 + $0x80] sm:$0xff]
  %v678 = vld [vmem:[%s15 + $0x88] sm:$0xff]
  %v679 = vld [vmem:[%s15 + $0x90] sm:$0xff]
  %v680 = vld [vmem:[%s15 + $0x98] sm:$0xff]
  %v681 = vld [vmem:[%s15 + $0xa0] sm:$0xff]
  %v682 = vld [vmem:[%s15 + $0xa8] sm:$0xff]
  %v683 = vld [vmem:[%s15 + $0xb0] sm:$0xff]
  %v684 = vld [vmem:[%s15 + $0xb8] sm:$0xff]
  %v685 = vld [vmem:[%s15 + $0xc0] sm:$0xff]
  %v686 = vld [vmem:[%s15 + $0xc8] sm:$0xff]
  %v687 = vld [vmem:[%s15 + $0xd0] sm:$0xff]
  %v688 = vld [vmem:[%s15 + $0xd8] sm:$0xff]
  %v689 = vld [vmem:[%s15 + $0xe0] sm:$0xff]
  %v690 = vld [vmem:[%s15 + $0xe8] sm:$0xff]
  %v691 = vld [vmem:[%s15 + $0xf0] sm:$0xff]
  %v692 = vld [vmem:[%s15 + $0xf8] sm:$0xff]
  %v693 = vld [vmem:[%s15 + $0x100] sm:$0xff]
  %v694 = vld [vmem:[%s15 + $0x108] sm:$0xff]
  %v696 = vsel %vm351, %v658, 0
  %v699 = vsel %vm351, %v659, 0
  %v702 = vsel %vm351, %v660, 0
  %704 = vmatpush.msra.mxu0 0.0
  %705 = vmatpush.msra.mxu0 0.0
  %706 = vmatpush.msra.mxu0 0.0
  %707 = vmatpush.msra.mxu0 0.0
  %708 = vmatpush.msra.mxu0 0.0
  %709 = vmatpush.msra.mxu0 0.0
  %710 = vmatpush.msra.mxu0 0.0
  %711 = vmatpush.msra.mxu0 0.0
  %712 = vmatpush.msra.mxu0 0.0
  %713 = vmatpush.msra.mxu0 0.0
  %714 = vmatpush.msra.mxu0 0.0
  %715 = vmatpush.msra.mxu0 0.0
  %716 = vmatpush.msra.mxu0 0.0
  %717 = vmatpush.msra.mxu0 0.0
  %718 = vmatpush.msra.mxu0 %v678
  %719 = vmatpush.msra.mxu0 %v661
  %720 = vmatmul.f32.gmra.mxu0 %v696
  %v721 = vpop.f32.mrf.mxu0
  %v722 = vadd.f32 0.0, %v721
  %723 = vmatmul.f32.gmra.mxu0 %v699
  %v724 = vpop.f32.mrf.mxu0
  %v725 = vadd.f32 0.0, %v724
  %726 = vmatmul.f32.gmra.mxu0 %v702
  %v727 = vpop.f32.mrf.mxu0
  %v728 = vadd.f32 0.0, %v727
  %729 = vdwg.mxu0
  %730 = vmatpush.msra.mxu0 0.0
  %731 = vmatpush.msra.mxu0 0.0
  %732 = vmatpush.msra.mxu0 0.0
  %733 = vmatpush.msra.mxu0 0.0
  %734 = vmatpush.msra.mxu0 0.0
  %735 = vmatpush.msra.mxu0 0.0
  %736 = vmatpush.msra.mxu0 0.0
  %737 = vmatpush.msra.mxu0 0.0
  %738 = vmatpush.msra.mxu0 0.0
  %739 = vmatpush.msra.mxu0 0.0
  %740 = vmatpush.msra.mxu0 0.0
  %741 = vmatpush.msra.mxu0 0.0
  %742 = vmatpush.msra.mxu0 0.0
  %743 = vmatpush.msra.mxu0 0.0
  %744 = vmatpush.msra.mxu0 %v679
  %745 = vmatpush.msra.mxu0 %v662
  %746 = vmatmul.f32.gmra.mxu0 %v696
  %v747 = vpop.f32.mrf.mxu0
  %v748 = vadd.f32 0.0, %v747
  %749 = vmatmul.f32.gmra.mxu0 %v699
  %v750 = vpop.f32.mrf.mxu0
  %v751 = vadd.f32 0.0, %v750
  %752 = vmatmul.f32.gmra.mxu0 %v702
  %v753 = vpop.f32.mrf.mxu0
  %v754 = vadd.f32 0.0, %v753
  %755 = vdwg.mxu0
  %756 = vmatpush.msra.mxu0 0.0
  %757 = vmatpush.msra.mxu0 0.0
  %758 = vmatpush.msra.mxu0 0.0
  %759 = vmatpush.msra.mxu0 0.0
  %760 = vmatpush.msra.mxu0 0.0
  %761 = vmatpush.msra.mxu0 0.0
  %762 = vmatpush.msra.mxu0 0.0
  %763 = vmatpush.msra.mxu0 0.0
  %764 = vmatpush.msra.mxu0 0.0
  %765 = vmatpush.msra.mxu0 0.0
  %766 = vmatpush.msra.mxu0 0.0
  %767 = vmatpush.msra.mxu0 0.0
  %768 = vmatpush.msra.mxu0 0.0
  %769 = vmatpush.msra.mxu0 0.0
  %770 = vmatpush.msra.mxu0 %v680
  %771 = vmatpush.msra.mxu0 %v663
  %772 = vmatmul.f32.gmra.mxu0 %v696
  %v773 = vpop.f32.mrf.mxu0
  %v774 = vadd.f32 0.0, %v773
  %775 = vmatmul.f32.gmra.mxu0 %v699
  %v776 = vpop.f32.mrf.mxu0
  %v777 = vadd.f32 0.0, %v776
  %778 = vmatmul.f32.gmra.mxu0 %v702
  %v779 = vpop.f32.mrf.mxu0
  %v780 = vadd.f32 0.0, %v779
  %781 = vdwg.mxu0
  %782 = vmatpush.msra.mxu0 0.0
  %783 = vmatpush.msra.mxu0 0.0
  %784 = vmatpush.msra.mxu0 0.0
  %785 = vmatpush.msra.mxu0 0.0
  %786 = vmatpush.msra.mxu0 0.0
  %787 = vmatpush.msra.mxu0 0.0
  %788 = vmatpush.msra.mxu0 0.0
  %789 = vmatpush.msra.mxu0 0.0
  %790 = vmatpush.msra.mxu0 0.0
  %791 = vmatpush.msra.mxu0 0.0
  %792 = vmatpush.msra.mxu0 0.0
  %793 = vmatpush.msra.mxu0 0.0
  %794 = vmatpush.msra.mxu0 0.0
  %795 = vmatpush.msra.mxu0 0.0
  %796 = vmatpush.msra.mxu0 %v681
  %797 = vmatpush.msra.mxu0 %v664
  %798 = vmatmul.f32.gmra.mxu0 %v696
  %v799 = vpop.f32.mrf.mxu0
  %v800 = vadd.f32 0.0, %v799
  %801 = vmatmul.f32.gmra.mxu0 %v699
  %v802 = vpop.f32.mrf.mxu0
  %v803 = vadd.f32 0.0, %v802
  %804 = vmatmul.f32.gmra.mxu0 %v702
  %v805 = vpop.f32.mrf.mxu0
  %v806 = vadd.f32 0.0, %v805
  %807 = vdwg.mxu0
  %808 = vmatpush.msra.mxu0 0.0
  %809 = vmatpush.msra.mxu0 0.0
  %810 = vmatpush.msra.mxu0 0.0
  %811 = vmatpush.msra.mxu0 0.0
  %812 = vmatpush.msra.mxu0 0.0
  %813 = vmatpush.msra.mxu0 0.0
  %814 = vmatpush.msra.mxu0 0.0
  %815 = vmatpush.msra.mxu0 0.0
  %816 = vmatpush.msra.mxu0 0.0
  %817 = vmatpush.msra.mxu0 0.0
  %818 = vmatpush.msra.mxu0 0.0
  %819 = vmatpush.msra.mxu0 0.0
  %820 = vmatpush.msra.mxu0 0.0
  %821 = vmatpush.msra.mxu0 0.0
  %822 = vmatpush.msra.mxu0 %v682
  %823 = vmatpush.msra.mxu0 %v665
  %824 = vmatmul.f32.gmra.mxu0 %v696
  %v825 = vpop.f32.mrf.mxu0
  %v826 = vadd.f32 0.0, %v825
  %827 = vmatmul.f32.gmra.mxu0 %v699
  %v828 = vpop.f32.mrf.mxu0
  %v829 = vadd.f32 0.0, %v828
  %830 = vmatmul.f32.gmra.mxu0 %v702
  %v831 = vpop.f32.mrf.mxu0
  %v832 = vadd.f32 0.0, %v831
  %833 = vdwg.mxu0
  %834 = vmatpush.msra.mxu0 0.0
  %835 = vmatpush.msra.mxu0 0.0
  %836 = vmatpush.msra.mxu0 0.0
  %837 = vmatpush.msra.mxu0 0.0
  %838 = vmatpush.msra.mxu0 0.0
  %839 = vmatpush.msra.mxu0 0.0
  %840 = vmatpush.msra.mxu0 0.0
  %841 = vmatpush.msra.mxu0 0.0
  %842 = vmatpush.msra.mxu0 0.0
  %843 = vmatpush.msra.mxu0 0.0
  %844 = vmatpush.msra.mxu0 0.0
  %845 = vmatpush.msra.mxu0 0.0
  %846 = vmatpush.msra.mxu0 0.0
  %847 = vmatpush.msra.mxu0 0.0
  %848 = vmatpush.msra.mxu0 %v683
  %849 = vmatpush.msra.mxu0 %v666
  %850 = vmatmul.f32.gmra.mxu0 %v696
  %v851 = vpop.f32.mrf.mxu0
  %v852 = vadd.f32 0.0, %v851
  %853 = vmatmul.f32.gmra.mxu0 %v699
  %v854 = vpop.f32.mrf.mxu0
  %v855 = vadd.f32 0.0, %v854
  %856 = vmatmul.f32.gmra.mxu0 %v702
  %v857 = vpop.f32.mrf.mxu0
  %v858 = vadd.f32 0.0, %v857
  %859 = vdwg.mxu0
  %860 = vmatpush.msra.mxu0 0.0
  %861 = vmatpush.msra.mxu0 0.0
  %862 = vmatpush.msra.mxu0 0.0
  %863 = vmatpush.msra.mxu0 0.0
  %864 = vmatpush.msra.mxu0 0.0
  %865 = vmatpush.msra.mxu0 0.0
  %866 = vmatpush.msra.mxu0 0.0
  %867 = vmatpush.msra.mxu0 0.0
  %868 = vmatpush.msra.mxu0 0.0
  %869 = vmatpush.msra.mxu0 0.0
  %870 = vmatpush.msra.mxu0 0.0
  %871 = vmatpush.msra.mxu0 0.0
  %872 = vmatpush.msra.mxu0 0.0
  %873 = vmatpush.msra.mxu0 0.0
  %874 = vmatpush.msra.mxu0 %v684
  %875 = vmatpush.msra.mxu0 %v667
  %876 = vmatmul.f32.gmra.mxu0 %v696
  %v877 = vpop.f32.mrf.mxu0
  %v878 = vadd.f32 0.0, %v877
  %879 = vmatmul.f32.gmra.mxu0 %v699
  %v880 = vpop.f32.mrf.mxu0
  %v881 = vadd.f32 0.0, %v880
  %882 = vmatmul.f32.gmra.mxu0 %v702
  %v883 = vpop.f32.mrf.mxu0
  %v884 = vadd.f32 0.0, %v883
  %885 = vdwg.mxu0
  %886 = vmatpush.msra.mxu0 0.0
  %887 = vmatpush.msra.mxu0 0.0
  %888 = vmatpush.msra.mxu0 0.0
  %889 = vmatpush.msra.mxu0 0.0
  %890 = vmatpush.msra.mxu0 0.0
  %891 = vmatpush.msra.mxu0 0.0
  %892 = vmatpush.msra.mxu0 0.0
  %893 = vmatpush.msra.mxu0 0.0
  %894 = vmatpush.msra.mxu0 0.0
  %895 = vmatpush.msra.mxu0 0.0
  %896 = vmatpush.msra.mxu0 0.0
  %897 = vmatpush.msra.mxu0 0.0
  %898 = vmatpush.msra.mxu0 0.0
  %899 = vmatpush.msra.mxu0 0.0
  %900 = vmatpush.msra.mxu0 %v685
  %901 = vmatpush.msra.mxu0 %v668
  %902 = vmatmul.f32.gmra.mxu0 %v696
  %v903 = vpop.f32.mrf.mxu0
  %v904 = vadd.f32 0.0, %v903
  %905 = vmatmul.f32.gmra.mxu0 %v699
  %v906 = vpop.f32.mrf.mxu0
  %v907 = vadd.f32 0.0, %v906
  %908 = vmatmul.f32.gmra.mxu0 %v702
  %v909 = vpop.f32.mrf.mxu0
  %v910 = vadd.f32 0.0, %v909
  %911 = vdwg.mxu0
  %912 = vmatpush.msra.mxu0 0.0
  %913 = vmatpush.msra.mxu0 0.0
  %914 = vmatpush.msra.mxu0 0.0
  %915 = vmatpush.msra.mxu0 0.0
  %916 = vmatpush.msra.mxu0 0.0
  %917 = vmatpush.msra.mxu0 0.0
  %918 = vmatpush.msra.mxu0 0.0
  %919 = vmatpush.msra.mxu0 0.0
  %920 = vmatpush.msra.mxu0 0.0
  %921 = vmatpush.msra.mxu0 0.0
  %922 = vmatpush.msra.mxu0 0.0
  %923 = vmatpush.msra.mxu0 0.0
  %924 = vmatpush.msra.mxu0 0.0
  %925 = vmatpush.msra.mxu0 0.0
  %926 = vmatpush.msra.mxu0 %v686
  %927 = vmatpush.msra.mxu0 %v669
  %928 = vmatmul.f32.gmra.mxu0 %v696
  %v929 = vpop.f32.mrf.mxu0
  %v930 = vadd.f32 0.0, %v929
  %931 = vmatmul.f32.gmra.mxu0 %v699
  %v932 = vpop.f32.mrf.mxu0
  %v933 = vadd.f32 0.0, %v932
  %934 = vmatmul.f32.gmra.mxu0 %v702
  %v935 = vpop.f32.mrf.mxu0
  %v936 = vadd.f32 0.0, %v935
  %937 = vdwg.mxu0
  %938 = vmatpush.msra.mxu0 0.0
  %939 = vmatpush.msra.mxu0 0.0
  %940 = vmatpush.msra.mxu0 0.0
  %941 = vmatpush.msra.mxu0 0.0
  %942 = vmatpush.msra.mxu0 0.0
  %943 = vmatpush.msra.mxu0 0.0
  %944 = vmatpush.msra.mxu0 0.0
  %945 = vmatpush.msra.mxu0 0.0
  %946 = vmatpush.msra.mxu0 0.0
  %947 = vmatpush.msra.mxu0 0.0
  %948 = vmatpush.msra.mxu0 0.0
  %949 = vmatpush.msra.mxu0 0.0
  %950 = vmatpush.msra.mxu0 0.0
  %951 = vmatpush.msra.mxu0 0.0
  %952 = vmatpush.msra.mxu0 %v687
  %953 = vmatpush.msra.mxu0 %v670
  %954 = vmatmul.f32.gmra.mxu0 %v696
  %v955 = vpop.f32.mrf.mxu0
  %v956 = vadd.f32 0.0, %v955
  %957 = vmatmul.f32.gmra.mxu0 %v699
  %v958 = vpop.f32.mrf.mxu0
  %v959 = vadd.f32 0.0, %v958
  %960 = vmatmul.f32.gmra.mxu0 %v702
  %v961 = vpop.f32.mrf.mxu0
  %v962 = vadd.f32 0.0, %v961
  %963 = vdwg.mxu0
  %964 = vmatpush.msra.mxu0 0.0
  %965 = vmatpush.msra.mxu0 0.0
  %966 = vmatpush.msra.mxu0 0.0
  %967 = vmatpush.msra.mxu0 0.0
  %968 = vmatpush.msra.mxu0 0.0
  %969 = vmatpush.msra.mxu0 0.0
  %970 = vmatpush.msra.mxu0 0.0
  %971 = vmatpush.msra.mxu0 0.0
  %972 = vmatpush.msra.mxu0 0.0
  %973 = vmatpush.msra.mxu0 0.0
  %974 = vmatpush.msra.mxu0 0.0
  %975 = vmatpush.msra.mxu0 0.0
  %976 = vmatpush.msra.mxu0 0.0
  %977 = vmatpush.msra.mxu0 0.0
  %978 = vmatpush.msra.mxu0 %v688
  %979 = vmatpush.msra.mxu0 %v671
  %980 = vmatmul.f32.gmra.mxu0 %v696
  %v981 = vpop.f32.mrf.mxu0
  %v982 = vadd.f32 0.0, %v981
  %983 = vmatmul.f32.gmra.mxu0 %v699
  %v984 = vpop.f32.mrf.mxu0
  %v985 = vadd.f32 0.0, %v984
  %986 = vmatmul.f32.gmra.mxu0 %v702
  %v987 = vpop.f32.mrf.mxu0
  %v988 = vadd.f32 0.0, %v987
  %989 = vdwg.mxu0
  %990 = vmatpush.msra.mxu0 0.0
  %991 = vmatpush.msra.mxu0 0.0
  %992 = vmatpush.msra.mxu0 0.0
  %993 = vmatpush.msra.mxu0 0.0
  %994 = vmatpush.msra.mxu0 0.0
  %995 = vmatpush.msra.mxu0 0.0
  %996 = vmatpush.msra.mxu0 0.0
  %997 = vmatpush.msra.mxu0 0.0
  %998 = vmatpush.msra.mxu0 0.0
  %999 = vmatpush.msra.mxu0 0.0
  %1000 = vmatpush.msra.mxu0 0.0
  %1001 = vmatpush.msra.mxu0 0.0
  %1002 = vmatpush.msra.mxu0 0.0
  %1003 = vmatpush.msra.mxu0 0.0
  %1004 = vmatpush.msra.mxu0 %v689
  %1005 = vmatpush.msra.mxu0 %v672
  %1006 = vmatmul.f32.gmra.mxu0 %v696
  %v1007 = vpop.f32.mrf.mxu0
  %v1008 = vadd.f32 0.0, %v1007
  %1009 = vmatmul.f32.gmra.mxu0 %v699
  %v1010 = vpop.f32.mrf.mxu0
  %v1011 = vadd.f32 0.0, %v1010
  %1012 = vmatmul.f32.gmra.mxu0 %v702
  %v1013 = vpop.f32.mrf.mxu0
  %v1014 = vadd.f32 0.0, %v1013
  %1015 = vdwg.mxu0
  %1016 = vmatpush.msra.mxu0 0.0
  %1017 = vmatpush.msra.mxu0 0.0
  %1018 = vmatpush.msra.mxu0 0.0
  %1019 = vmatpush.msra.mxu0 0.0
  %1020 = vmatpush.msra.mxu0 0.0
  %1021 = vmatpush.msra.mxu0 0.0
  %1022 = vmatpush.msra.mxu0 0.0
  %1023 = vmatpush.msra.mxu0 0.0
  %1024 = vmatpush.msra.mxu0 0.0
  %1025 = vmatpush.msra.mxu0 0.0
  %1026 = vmatpush.msra.mxu0 0.0
  %1027 = vmatpush.msra.mxu0 0.0
  %1028 = vmatpush.msra.mxu0 0.0
  %1029 = vmatpush.msra.mxu0 0.0
  %1030 = vmatpush.msra.mxu0 %v690
  %1031 = vmatpush.msra.mxu0 %v673
  %1032 = vmatmul.f32.gmra.mxu0 %v696
  %v1033 = vpop.f32.mrf.mxu0
  %v1034 = vadd.f32 0.0, %v1033
  %1035 = vmatmul.f32.gmra.mxu0 %v699
  %v1036 = vpop.f32.mrf.mxu0
  %v1037 = vadd.f32 0.0, %v1036
  %1038 = vmatmul.f32.gmra.mxu0 %v702
  %v1039 = vpop.f32.mrf.mxu0
  %v1040 = vadd.f32 0.0, %v1039
  %1041 = vdwg.mxu0
  %1042 = vmatpush.msra.mxu0 0.0
  %1043 = vmatpush.msra.mxu0 0.0
  %1044 = vmatpush.msra.mxu0 0.0
  %1045 = vmatpush.msra.mxu0 0.0
  %1046 = vmatpush.msra.mxu0 0.0
  %1047 = vmatpush.msra.mxu0 0.0
  %1048 = vmatpush.msra.mxu0 0.0
  %1049 = vmatpush.msra.mxu0 0.0
  %1050 = vmatpush.msra.mxu0 0.0
  %1051 = vmatpush.msra.mxu0 0.0
  %1052 = vmatpush.msra.mxu0 0.0
  %1053 = vmatpush.msra.mxu0 0.0
  %1054 = vmatpush.msra.mxu0 0.0
  %1055 = vmatpush.msra.mxu0 0.0
  %1056 = vmatpush.msra.mxu0 %v691
  %1057 = vmatpush.msra.mxu0 %v674
  %1058 = vmatmul.f32.gmra.mxu0 %v696
  %v1059 = vpop.f32.mrf.mxu0
  %v1060 = vadd.f32 0.0, %v1059
  %1061 = vmatmul.f32.gmra.mxu0 %v699
  %v1062 = vpop.f32.mrf.mxu0
  %v1063 = vadd.f32 0.0, %v1062
  %1064 = vmatmul.f32.gmra.mxu0 %v702
  %v1065 = vpop.f32.mrf.mxu0
  %v1066 = vadd.f32 0.0, %v1065
  %1067 = vdwg.mxu0
  %1068 = vmatpush.msra.mxu0 0.0
  %1069 = vmatpush.msra.mxu0 0.0
  %1070 = vmatpush.msra.mxu0 0.0
  %1071 = vmatpush.msra.mxu0 0.0
  %1072 = vmatpush.msra.mxu0 0.0
  %1073 = vmatpush.msra.mxu0 0.0
  %1074 = vmatpush.msra.mxu0 0.0
  %1075 = vmatpush.msra.mxu0 0.0
  %1076 = vmatpush.msra.mxu0 0.0
  %1077 = vmatpush.msra.mxu0 0.0
  %1078 = vmatpush.msra.mxu0 0.0
  %1079 = vmatpush.msra.mxu0 0.0
  %1080 = vmatpush.msra.mxu0 0.0
  %1081 = vmatpush.msra.mxu0 0.0
  %1082 = vmatpush.msra.mxu0 %v692
  %1083 = vmatpush.msra.mxu0 %v675
  %1084 = vmatmul.f32.gmra.mxu0 %v696
  %v1085 = vpop.f32.mrf.mxu0
  %v1086 = vadd.f32 0.0, %v1085
  %1087 = vmatmul.f32.gmra.mxu0 %v699
  %v1088 = vpop.f32.mrf.mxu0
  %v1089 = vadd.f32 0.0, %v1088
  %1090 = vmatmul.f32.gmra.mxu0 %v702
  %v1091 = vpop.f32.mrf.mxu0
  %v1092 = vadd.f32 0.0, %v1091
  %1093 = vdwg.mxu0
  %1094 = vmatpush.msra.mxu0 0.0
  %1095 = vmatpush.msra.mxu0 0.0
  %1096 = vmatpush.msra.mxu0 0.0
  %1097 = vmatpush.msra.mxu0 0.0
  %1098 = vmatpush.msra.mxu0 0.0
  %1099 = vmatpush.msra.mxu0 0.0
  %1100 = vmatpush.msra.mxu0 0.0
  %1101 = vmatpush.msra.mxu0 0.0
  %1102 = vmatpush.msra.mxu0 0.0
  %1103 = vmatpush.msra.mxu0 0.0
  %1104 = vmatpush.msra.mxu0 0.0
  %1105 = vmatpush.msra.mxu0 0.0
  %1106 = vmatpush.msra.mxu0 0.0
  %1107 = vmatpush.msra.mxu0 0.0
  %1108 = vmatpush.msra.mxu0 %v693
  %1109 = vmatpush.msra.mxu0 %v676
  %1110 = vmatmul.f32.gmra.mxu0 %v696
  %v1111 = vpop.f32.mrf.mxu0
  %v1112 = vadd.f32 0.0, %v1111
  %1113 = vmatmul.f32.gmra.mxu0 %v699
  %v1114 = vpop.f32.mrf.mxu0
  %v1115 = vadd.f32 0.0, %v1114
  %1116 = vmatmul.f32.gmra.mxu0 %v702
  %v1117 = vpop.f32.mrf.mxu0
  %v1118 = vadd.f32 0.0, %v1117
  %1119 = vdwg.mxu0
  %1120 = vmatpush.msra.mxu0 0.0
  %1121 = vmatpush.msra.mxu0 0.0
  %1122 = vmatpush.msra.mxu0 0.0
  %1123 = vmatpush.msra.mxu0 0.0
  %1124 = vmatpush.msra.mxu0 0.0
  %1125 = vmatpush.msra.mxu0 0.0
  %1126 = vmatpush.msra.mxu0 0.0
  %1127 = vmatpush.msra.mxu0 0.0
  %1128 = vmatpush.msra.mxu0 0.0
  %1129 = vmatpush.msra.mxu0 0.0
  %1130 = vmatpush.msra.mxu0 0.0
  %1131 = vmatpush.msra.mxu0 0.0
  %1132 = vmatpush.msra.mxu0 0.0
  %1133 = vmatpush.msra.mxu0 0.0
  %1134 = vmatpush.msra.mxu0 %v694
  %1135 = vmatpush.msra.mxu0 %v677
  %1136 = vmatmul.f32.gmra.mxu0 %v696
  %v1137 = vpop.f32.mrf.mxu0
  %v1138 = vadd.f32 0.0, %v1137
  %1139 = vmatmul.f32.gmra.mxu0 %v699
  %v1140 = vpop.f32.mrf.mxu0
  %v1141 = vadd.f32 0.0, %v1140
  %1142 = vmatmul.f32.gmra.mxu0 %v702
  %v1143 = vpop.f32.mrf.mxu0
  %v1144 = vadd.f32 0.0, %v1143
  %1145 = vdwg.mxu0
  %v1146 = vpack.c.bf16 %v748, %v722
  %v1147 = vpack.c.bf16 %v800, %v774
  %v1148 = vpack.c.bf16 %v852, %v826
  %v1149 = vpack.c.bf16 %v904, %v878
  %v1150 = vpack.c.bf16 %v956, %v930
  %v1151 = vpack.c.bf16 %v1008, %v982
  %v1152 = vpack.c.bf16 %v1060, %v1034
  %v1153 = vpack.c.bf16 %v1112, %v1086
  %v1154 = vpack.c.bf16 %v1138, %v1138
  %v1155 = vpack.c.bf16 %v751, %v725
  %v1156 = vpack.c.bf16 %v803, %v777
  %v1157 = vpack.c.bf16 %v855, %v829
  %v1158 = vpack.c.bf16 %v907, %v881
  %v1159 = vpack.c.bf16 %v959, %v933
  %v1160 = vpack.c.bf16 %v1011, %v985
  %v1161 = vpack.c.bf16 %v1063, %v1037
  %v1162 = vpack.c.bf16 %v1115, %v1089
  %v1163 = vpack.c.bf16 %v1141, %v1141
  %v1164 = vpack.c.bf16 %v754, %v728
  %v1165 = vpack.c.bf16 %v806, %v780
  %v1166 = vpack.c.bf16 %v858, %v832
  %v1167 = vpack.c.bf16 %v910, %v884
  %v1168 = vpack.c.bf16 %v962, %v936
  %v1169 = vpack.c.bf16 %v1014, %v988
  %v1170 = vpack.c.bf16 %v1066, %v1040
  %v1171 = vpack.c.bf16 %v1118, %v1092
  %v1172 = vpack.c.bf16 %v1144, %v1144
  %1173 = vst [vmem:[%s18] sm:$0xff] %v1146
  %1174 = vst [vmem:[%s18 + $0x8] sm:$0xff] %v1147
  %1175 = vst [vmem:[%s18 + $0x10] sm:$0xff] %v1148
  %1176 = vst [vmem:[%s18 + $0x18] sm:$0xff] %v1149
  %1177 = vst [vmem:[%s18 + $0x20] sm:$0xff] %v1150
  %1178 = vst [vmem:[%s18 + $0x28] sm:$0xff] %v1151
  %1179 = vst [vmem:[%s18 + $0x30] sm:$0xff] %v1152
  %1180 = vst [vmem:[%s18 + $0x38] sm:$0xff] %v1153
  %1181 = vst [vmem:[%s18 + $0x40] sm:$0xf] %v1154
  %1182 = vst [vmem:[%s18 + $0x44] sm:$0xff] %v1155
  %1183 = vst [vmem:[%s18 + $0x4c] sm:$0xff] %v1156
  %1184 = vst [vmem:[%s18 + $0x54] sm:$0xff] %v1157
  %1185 = vst [vmem:[%s18 + $0x5c] sm:$0xff] %v1158
  %1186 = vst [vmem:[%s18 + $0x64] sm:$0xff] %v1159
  %1187 = vst [vmem:[%s18 + $0x6c] sm:$0xff] %v1160
  %1188 = vst [vmem:[%s18 + $0x74] sm:$0xff] %v1161
  %1189 = vst [vmem:[%s18 + $0x7c] sm:$0xff] %v1162
  %1190 = vst [vmem:[%s18 + $0x84] sm:$0xf] %v1163
  %1191 = vst [vmem:[%s18 + $0x88] sm:$0x33] %v1164
  %1192 = vst [vmem:[%s18 + $0x90] sm:$0x33] %v1165
  %1193 = vst [vmem:[%s18 + $0x98] sm:$0x33] %v1166
  %1194 = vst [vmem:[%s18 + $0xa0] sm:$0x33] %v1167
  %1195 = vst [vmem:[%s18 + $0xa8] sm:$0x33] %v1168
  %1196 = vst [vmem:[%s18 + $0xb0] sm:$0x33] %v1169
  %1197 = vst [vmem:[%s18 + $0xb8] sm:$0x33] %v1170
  %1198 = vst [vmem:[%s18 + $0xc0] sm:$0x33] %v1171
  %1199 = vst [vmem:[%s18 + $0xc8] sm:$0x3] %v1172
  // Predicated region
  $region66: #{detect_model_forward.6} parent=0 // pred_check
    _
  $region67: #{detect_model_forward.6} parent=0 // pred_check_branch
    %1201 = sbr.rel (0) target = $region69
  $region68: #{detect_model_forward.6} parent=0 // pred_region
    _
  $region69: #{detect_model_forward.6} parent=0 // pred_fallthru
    _
  // Predicated region
  $region70: #{detect_model_forward.6} parent=0 // pred_check
    _
  $region71: #{detect_model_forward.6} parent=0 // pred_check_branch
    %1203 = sbr.rel (0) target = $region73
  $region72: #{detect_model_forward.6} parent=0 // pred_region
    _
  $region73: #{detect_model_forward.6} parent=0 // pred_fallthru
    _
  // Predicated region
  $region74: #{detect_model_forward.6} parent=0 // pred_check
    _
  $region75: #{detect_model_forward.6} parent=0 // pred_check_branch
    %1205 = sbr.rel (0) target = $region77
  $region76: #{detect_model_forward.6} parent=0 // pred_region
    _
  $region77: #{detect_model_forward.6} parent=0 // pred_fallthru
    _
  // Predicated region
  $region78: #{detect_model_forward.6} parent=0 // pred_check
    _
  $region79: #{detect_model_forward.6} parent=0 // pred_check_branch
    %1207 = sbr.rel (0) target = $region81
  $region80: #{detect_model_forward.6} parent=0 // pred_region
    _
  $region81: #{detect_model_forward.6} parent=0 // pred_fallthru
    _
  // Predicated region
  $region82: #{detect_model_forward.6} parent=0 // pred_check
    _
  $region83: #{detect_model_forward.6} parent=0 // pred_check_branch
    %1209 = sbr.rel (0) target = $region85
  $region84: #{detect_model_forward.6} parent=0 // pred_region
    _
  $region85: #{detect_model_forward.6} parent=0 // pred_fallthru
    _
  // Predicated region
  $region86: #{detect_model_forward.6} parent=0 // pred_check
    _
  $region87: #{detect_model_forward.6} parent=0 // pred_check_branch
    %1211 = sbr.rel (0) target = $region89
  $region88: #{detect_model_forward.6} parent=0 // pred_region
    _
  $region89: #{detect_model_forward.6} parent=0 // pred_fallthru
    _

// kernel: detect_model_forward.9
$region0: #{detect_model_forward.9}
  #allocation0 [shape = 'u32[]', space=smem, size = 0x4, offset = 0x4, fixed_abs, tag = 'smem constant byte address 0x4 - core index']
  #allocation1 [shape = 'u32[72,128]{1,0:T(1,128)}', space=vmem, size = 0x9000, scoped, tag = 'internal scratch']
  #allocation2 [shape = 'f32[1,1]{1,0:T(1,128)S(1)}', space=vmem, size = 0x200, scoped, tag = 'scoped memory for detect_model_forward.9']
  %s0 = inlined_call_operand.vmem [shape: f32[4,96], index: 0, kind: input, shape index: {}]
  %s1 = inlined_call_operand.vmem [shape: f32[96,16], index: 1, kind: input, shape index: {}]
  %s2 = inlined_call_operand.vmem [shape: f32[96,16], index: 2, kind: input, shape index: {}]
  %s3 = inlined_call_operand.vmem [shape: f32[96,16], index: 3, kind: input, shape index: {}]
  %s4 = inlined_call_operand.vmem [shape: f32[16,16], index: 4, kind: input, shape index: {}]
  %s5 = inlined_call_operand.vmem [shape: f32[16,16], index: 5, kind: input, shape index: {}]
  %s6 = inlined_call_operand.vmem [shape: f32[16,16], index: 6, kind: input, shape index: {}]
  %s7 = inlined_call_operand.vmem [shape: f32[1,16], index: 7, kind: input, shape index: {}]
  %s8 = inlined_call_operand.vmem [shape: f32[1,16], index: 8, kind: input, shape index: {}]
  %s9 = inlined_call_operand.vmem [shape: f32[1,16], index: 9, kind: input, shape index: {}]
  %s10 = inlined_call_operand.vmem [shape: f32[1,16], index: 10, kind: input, shape index: {}]
  %s11 = inlined_call_operand.vmem [shape: f32[1,16], index: 11, kind: input, shape index: {}]
  %s12 = inlined_call_operand.vmem [shape: f32[1,16], index: 12, kind: input, shape index: {}]
  %s13 = inlined_call_operand.vmem [shape: f32[16,4], index: 13, kind: input, shape index: {}]
  %s14 = inlined_call_operand.vmem [shape: f32[1,4], index: 14, kind: input, shape index: {}]
  %s15 = inlined_call_operand.vmem [shape: f32[4,1], index: 15, kind: input, shape index: {}]
  %s16 = inlined_call_operand.<no memory space> [shape: f32[1,1], index: 16, kind: input, shape index: {}]
  %s17 = inlined_call_operand.vmem [shape: f32[4,1], index: 17, kind: output, shape index: {}]
  %s18 = sld [smem:[#allocation0]]
  $region78: #{detect_model_forward.9} parent=0
    _
  %s20 = ssub.s32 1, %s18
  %s21 = scalar_select 0, %s20, %s18
  %v22 = vstv %s16
  %23 = vst [vmem:[#allocation2] sm:$0x1] %v22
  // Predicated region
  $region2: #{detect_model_forward.9} parent=0 // pred_check
    _
  $region3: #{detect_model_forward.9} parent=0 // pred_check_branch
    %25 = sbr.rel (0) target = $region5
  $region4: #{detect_model_forward.9} parent=0 // pred_region
    _
  $region5: #{detect_model_forward.9} parent=0 // pred_fallthru
    _
  // Predicated region
  $region6: #{detect_model_forward.9} parent=0 // pred_check
    _
  $region7: #{detect_model_forward.9} parent=0 // pred_check_branch
    %27 = sbr.rel (0) target = $region9
  $region8: #{detect_model_forward.9} parent=0 // pred_region
    _
  $region9: #{detect_model_forward.9} parent=0 // pred_fallthru
    _
  // Predicated region
  $region10: #{detect_model_forward.9} parent=0 // pred_check
    _
  $region11: #{detect_model_forward.9} parent=0 // pred_check_branch
    %29 = sbr.rel (0) target = $region13
  $region12: #{detect_model_forward.9} parent=0 // pred_region
    _
  $region13: #{detect_model_forward.9} parent=0 // pred_fallthru
    _
  // Predicated region
  $region14: #{detect_model_forward.9} parent=0 // pred_check
    _
  $region15: #{detect_model_forward.9} parent=0 // pred_check_branch
    %31 = sbr.rel (0) target = $region17
  $region16: #{detect_model_forward.9} parent=0 // pred_region
    _
  $region17: #{detect_model_forward.9} parent=0 // pred_fallthru
    _
  // Predicated region
  $region18: #{detect_model_forward.9} parent=0 // pred_check
    _
  $region19: #{detect_model_forward.9} parent=0 // pred_check_branch
    %33 = sbr.rel (0) target = $region21
  $region20: #{detect_model_forward.9} parent=0 // pred_region
    _
  $region21: #{detect_model_forward.9} parent=0 // pred_fallthru
    _
  // Predicated region
  $region22: #{detect_model_forward.9} parent=0 // pred_check
    _
  $region23: #{detect_model_forward.9} parent=0 // pred_check_branch
    %35 = sbr.rel (0) target = $region25
  $region24: #{detect_model_forward.9} parent=0 // pred_region
    _
  $region25: #{detect_model_forward.9} parent=0 // pred_fallthru
    _
  // Predicated region
  $region26: #{detect_model_forward.9} parent=0 // pred_check
    _
  $region27: #{detect_model_forward.9} parent=0 // pred_check_branch
    %37 = sbr.rel (0) target = $region29
  $region28: #{detect_model_forward.9} parent=0 // pred_region
    _
  $region29: #{detect_model_forward.9} parent=0 // pred_fallthru
    _
  // Predicated region
  $region30: #{detect_model_forward.9} parent=0 // pred_check
    _
  $region31: #{detect_model_forward.9} parent=0 // pred_check_branch
    %39 = sbr.rel (0) target = $region33
  $region32: #{detect_model_forward.9} parent=0 // pred_region
    _
  $region33: #{detect_model_forward.9} parent=0 // pred_fallthru
    _
  // Predicated region
  $region34: #{detect_model_forward.9} parent=0 // pred_check
    _
  $region35: #{detect_model_forward.9} parent=0 // pred_check_branch
    %41 = sbr.rel (0) target = $region37
  $region36: #{detect_model_forward.9} parent=0 // pred_region
    _
  $region37: #{detect_model_forward.9} parent=0 // pred_fallthru
    _
  // Predicated region
  $region38: #{detect_model_forward.9} parent=0 // pred_check
    _
  $region39: #{detect_model_forward.9} parent=0 // pred_check_branch
    %43 = sbr.rel (0) target = $region41
  $region40: #{detect_model_forward.9} parent=0 // pred_region
    _
  $region41: #{detect_model_forward.9} parent=0 // pred_fallthru
    _
  // Predicated region
  $region42: #{detect_model_forward.9} parent=0 // pred_check
    _
  $region43: #{detect_model_forward.9} parent=0 // pred_check_branch
    %45 = sbr.rel (0) target = $region45
  $region44: #{detect_model_forward.9} parent=0 // pred_region
    _
  $region45: #{detect_model_forward.9} parent=0 // pred_fallthru
    _
  // Predicated region
  $region46: #{detect_model_forward.9} parent=0 // pred_check
    _
  $region47: #{detect_model_forward.9} parent=0 // pred_check_branch
    %47 = sbr.rel (0) target = $region49
  $region48: #{detect_model_forward.9} parent=0 // pred_region
    _
  $region49: #{detect_model_forward.9} parent=0 // pred_fallthru
    _
  // Predicated region
  $region50: #{detect_model_forward.9} parent=0 // pred_check
    _
  $region51: #{detect_model_forward.9} parent=0 // pred_check_branch
    %49 = sbr.rel (0) target = $region53
  $region52: #{detect_model_forward.9} parent=0 // pred_region
    _
  $region53: #{detect_model_forward.9} parent=0 // pred_fallthru
    _
  // Predicated region
  $region54: #{detect_model_forward.9} parent=0 // pred_check
    _
  $region55: #{detect_model_forward.9} parent=0 // pred_check_branch
    %51 = sbr.rel (0) target = $region57
  $region56: #{detect_model_forward.9} parent=0 // pred_region
    _
  $region57: #{detect_model_forward.9} parent=0 // pred_fallthru
    _
  // Predicated region
  $region58: #{detect_model_forward.9} parent=0 // pred_check
    _
  $region59: #{detect_model_forward.9} parent=0 // pred_check_branch
    %53 = sbr.rel (0) target = $region61
  $region60: #{detect_model_forward.9} parent=0 // pred_region
    _
  $region61: #{detect_model_forward.9} parent=0 // pred_fallthru
    _
  // Predicated region
  $region62: #{detect_model_forward.9} parent=0 // pred_check
    _
  $region63: #{detect_model_forward.9} parent=0 // pred_check_branch
    %55 = sbr.rel (0) target = $region65
  $region64: #{detect_model_forward.9} parent=0 // pred_region
    _
  $region65: #{detect_model_forward.9} parent=0 // pred_fallthru
    _
  // Predicated region
  $region66: #{detect_model_forward.9} parent=0 // pred_check
    _
  $region67: #{detect_model_forward.9} parent=0 // pred_check_branch
    %57 = sbr.rel (0) target = $region69
  $region68: #{detect_model_forward.9} parent=0 // pred_region
    _
  $region69: #{detect_model_forward.9} parent=0 // pred_fallthru
    _
  %v58 = vld [vmem:[%s0] sm:$0xf]
  %v59 = vld [vmem:[%s1] sm:$0xff]
  %v60 = vld [vmem:[%s1 + $0x8] sm:$0xff]
  %v61 = vld [vmem:[%s1 + $0x10] sm:$0xff]
  %v62 = vld [vmem:[%s1 + $0x18] sm:$0xff]
  %v63 = vld [vmem:[%s1 + $0x20] sm:$0xff]
  %v64 = vld [vmem:[%s1 + $0x28] sm:$0xff]
  %v65 = vld [vmem:[%s1 + $0x30] sm:$0xff]
  %v66 = vld [vmem:[%s1 + $0x38] sm:$0xff]
  %v67 = vld [vmem:[%s1 + $0x40] sm:$0xff]
  %v68 = vld [vmem:[%s1 + $0x48] sm:$0xff]
  %v69 = vld [vmem:[%s1 + $0x50] sm:$0xff]
  %v70 = vld [vmem:[%s1 + $0x58] sm:$0xff]
  %v71 = vld [vmem:[%s7] sm:$0x1]
  %v73 = vperm.slane %v71, 0
  %vm75 = vcmask 785408
  %v77 = vsel %vm75, %v58, 0
  %79 = vmatpush.msra.mxu0 0.0
  %80 = vmatpush.msra.mxu0 0.0
  %81 = vmatpush.msra.mxu0 0.0
  %82 = vmatpush.msra.mxu0 0.0
  %83 = vmatpush.msra.mxu0 %v70
  %84 = vmatpush.msra.mxu0 %v69
  %85 = vmatpush.msra.mxu0 %v68
  %86 = vmatpush.msra.mxu0 %v67
  %87 = vmatpush.msra.mxu0 %v66
  %88 = vmatpush.msra.mxu0 %v65
  %89 = vmatpush.msra.mxu0 %v64
  %90 = vmatpush.msra.mxu0 %v63
  %91 = vmatpush.msra.mxu0 %v62
  %92 = vmatpush.msra.mxu0 %v61
  %93 = vmatpush.msra.mxu0 %v60
  %94 = vmatpush.msra.mxu0 %v59
  %95 = vmatmul.f32.gmra.mxu0 %v77
  %v96 = vpop.f32.mrf.mxu0
  %v97 = vadd.f32 %v73, %v96
  %98 = vdwg.mxu0
  %v99 = vld [vmem:[%s2] sm:$0xff]
  %v100 = vld [vmem:[%s2 + $0x8] sm:$0xff]
  %v101 = vld [vmem:[%s2 + $0x10] sm:$0xff]
  %v102 = vld [vmem:[%s2 + $0x18] sm:$0xff]
  %v103 = vld [vmem:[%s2 + $0x20] sm:$0xff]
  %v104 = vld [vmem:[%s2 + $0x28] sm:$0xff]
  %v105 = vld [vmem:[%s2 + $0x30] sm:$0xff]
  %v106 = vld [vmem:[%s2 + $0x38] sm:$0xff]
  %v107 = vld [vmem:[%s2 + $0x40] sm:$0xff]
  %v108 = vld [vmem:[%s2 + $0x48] sm:$0xff]
  %v109 = vld [vmem:[%s2 + $0x50] sm:$0xff]
  %v110 = vld [vmem:[%s2 + $0x58] sm:$0xff]
  %v111 = vld [vmem:[%s8] sm:$0x1]
  %v113 = vperm.slane %v111, 0
  %115 = vmatpush.msra.mxu0 0.0
  %116 = vmatpush.msra.mxu0 0.0
  %117 = vmatpush.msra.mxu0 0.0
  %118 = vmatpush.msra.mxu0 0.0
  %119 = vmatpush.msra.mxu0 %v110
  %120 = vmatpush.msra.mxu0 %v109
  %121 = vmatpush.msra.mxu0 %v108
  %122 = vmatpush.msra.mxu0 %v107
  %123 = vmatpush.msra.mxu0 %v106
  %124 = vmatpush.msra.mxu0 %v105
  %125 = vmatpush.msra.mxu0 %v104
  %126 = vmatpush.msra.mxu0 %v103
  %127 = vmatpush.msra.mxu0 %v102
  %128 = vmatpush.msra.mxu0 %v101
  %129 = vmatpush.msra.mxu0 %v100
  %130 = vmatpush.msra.mxu0 %v99
  %131 = vmatmul.f32.gmra.mxu0 %v77
  %v132 = vpop.f32.mrf.mxu0
  %v133 = vadd.f32 %v113, %v132
  %134 = vdwg.mxu0
  %v135 = vld [vmem:[%s3] sm:$0xff]
  %v136 = vld [vmem:[%s3 + $0x8] sm:$0xff]
  %v137 = vld [vmem:[%s3 + $0x10] sm:$0xff]
  %v138 = vld [vmem:[%s3 + $0x18] sm:$0xff]
  %v139 = vld [vmem:[%s3 + $0x20] sm:$0xff]
  %v140 = vld [vmem:[%s3 + $0x28] sm:$0xff]
  %v141 = vld [vmem:[%s3 + $0x30] sm:$0xff]
  %v142 = vld [vmem:[%s3 + $0x38] sm:$0xff]
  %v143 = vld [vmem:[%s3 + $0x40] sm:$0xff]
  %v144 = vld [vmem:[%s3 + $0x48] sm:$0xff]
  %v145 = vld [vmem:[%s3 + $0x50] sm:$0xff]
  %v146 = vld [vmem:[%s3 + $0x58] sm:$0xff]
  %v147 = vld [vmem:[%s9] sm:$0x1]
  %v149 = vperm.slane %v147, 0
  %151 = vmatpush.msra.mxu0 0.0
  %152 = vmatpush.msra.mxu0 0.0
  %153 = vmatpush.msra.mxu0 0.0
  %154 = vmatpush.msra.mxu0 0.0
  %155 = vmatpush.msra.mxu0 %v146
  %156 = vmatpush.msra.mxu0 %v145
  %157 = vmatpush.msra.mxu0 %v144
  %158 = vmatpush.msra.mxu0 %v143
  %159 = vmatpush.msra.mxu0 %v142
  %160 = vmatpush.msra.mxu0 %v141
  %161 = vmatpush.msra.mxu0 %v140
  %162 = vmatpush.msra.mxu0 %v139
  %163 = vmatpush.msra.mxu0 %v138
  %164 = vmatpush.msra.mxu0 %v137
  %165 = vmatpush.msra.mxu0 %v136
  %166 = vmatpush.msra.mxu0 %v135
  %167 = vmatmul.f32.gmra.mxu0 %v77
  %v168 = vpop.f32.mrf.mxu0
  %v169 = vadd.f32 %v149, %v168
  %170 = vdwg.mxu0
  %v171 = vld [vmem:[%s4] sm:$0xff]
  %v172 = vld [vmem:[%s4 + $0x8] sm:$0xff]
  %v173 = vld [vmem:[%s5] sm:$0xff]
  %v174 = vld [vmem:[%s5 + $0x8] sm:$0xff]
  %v175 = vld [vmem:[%s6] sm:$0xff]
  %v176 = vld [vmem:[%s6 + $0x8] sm:$0xff]
  %v177 = vld [vmem:[%s10] sm:$0x1]
  %v178 = vld [vmem:[%s11] sm:$0x1]
  %v179 = vld [vmem:[%s12] sm:$0x1]
  %vm180 = vcmask 130048
  %v182 = vsel %vm180, 0.0, 0
  %184 = vmatpush.msra.mxu0 0.0
  %185 = vmatpush.msra.mxu0 0.0
  %186 = vmatpush.msra.mxu0 0.0
  %187 = vmatpush.msra.mxu0 0.0
  %188 = vmatpush.msra.mxu0 0.0
  %189 = vmatpush.msra.mxu0 0.0
  %190 = vmatpush.msra.mxu0 0.0
  %191 = vmatpush.msra.mxu0 0.0
  %192 = vmatpush.msra.mxu0 0.0
  %193 = vmatpush.msra.mxu0 0.0
  %194 = vmatpush.msra.mxu0 0.0
  %195 = vmatpush.msra.mxu0 0.0
  %196 = vmatpush.msra.mxu0 0.0
  %197 = vmatpush.msra.mxu0 0.0
  %198 = vmatpush.msra.mxu0 %v172
  %199 = vmatpush.msra.mxu0 %v171
  %200 = vmatmul.f32.gmra.mxu0 %v182
  %v201 = vpop.f32.mrf.mxu0
  %v202 = vadd.f32 %v177, %v201
  %203 = vdwg.mxu0
  %204 = vmatpush.msra.mxu0 0.0
  %205 = vmatpush.msra.mxu0 0.0
  %206 = vmatpush.msra.mxu0 0.0
  %207 = vmatpush.msra.mxu0 0.0
  %208 = vmatpush.msra.mxu0 0.0
  %209 = vmatpush.msra.mxu0 0.0
  %210 = vmatpush.msra.mxu0 0.0
  %211 = vmatpush.msra.mxu0 0.0
  %212 = vmatpush.msra.mxu0 0.0
  %213 = vmatpush.msra.mxu0 0.0
  %214 = vmatpush.msra.mxu0 0.0
  %215 = vmatpush.msra.mxu0 0.0
  %216 = vmatpush.msra.mxu0 0.0
  %217 = vmatpush.msra.mxu0 0.0
  %218 = vmatpush.msra.mxu0 %v174
  %219 = vmatpush.msra.mxu0 %v173
  %220 = vmatmul.f32.gmra.mxu0 %v182
  %v221 = vpop.f32.mrf.mxu0
  %v222 = vadd.f32 %v178, %v221
  %223 = vdwg.mxu0
  %224 = vmatpush.msra.mxu0 0.0
  %225 = vmatpush.msra.mxu0 0.0
  %226 = vmatpush.msra.mxu0 0.0
  %227 = vmatpush.msra.mxu0 0.0
  %228 = vmatpush.msra.mxu0 0.0
  %229 = vmatpush.msra.mxu0 0.0
  %230 = vmatpush.msra.mxu0 0.0
  %231 = vmatpush.msra.mxu0 0.0
  %232 = vmatpush.msra.mxu0 0.0
  %233 = vmatpush.msra.mxu0 0.0
  %234 = vmatpush.msra.mxu0 0.0
  %235 = vmatpush.msra.mxu0 0.0
  %236 = vmatpush.msra.mxu0 0.0
  %237 = vmatpush.msra.mxu0 0.0
  %238 = vmatpush.msra.mxu0 %v176
  %239 = vmatpush.msra.mxu0 %v175
  %240 = vmatmul.f32.gmra.mxu0 %v182
  %v241 = vpop.f32.mrf.mxu0
  %v242 = vadd.f32 %v179, %v241
  %243 = vdwg.mxu0
  %v244 = vadd.f32 %v97, %v202
  %v245 = vxor.u32 %v244, 2147483648
  %v246 = vmul.f32 %v245, 1.442695
  %v247 = vpow.pop %v246
  %v248 = vadd.f32 %v247, 1.0
  %v249 = vrcp.pop %v248
  %v250 = vmul.f32 %v248, %v249
  %v251 = vsub.f32 1.0, %v250
  %v252 = vmul.f32 %v249, %v251
  %v253 = vadd.f32 %v249, %v252
  %vm254 = vweird.f32 %v248
  %vm255 = vweird.f32 %v249
  %vm256 = vmor %vm254, %vm255
  %v257 = vsel %vm256, %v249, %v253
  %v258 = vand.u32 2147483647, %v248
  %vm259 = vcmp.eq.f32.partialorder %v258, 8.507059e+37
  %v260 = vand.u32 %v248, 2147483648
  %v261 = vor.u32 1.1754944e-38, %v260
  %v262 = vsel %vm259, %v261, %v257
  %v263 = vmul.f32 1.0, %v262
  %v264 = vadd.f32 %v133, %v222
  %v265 = vxor.u32 %v264, 2147483648
  %v266 = vmul.f32 %v265, 1.442695
  %v267 = vpow.pop %v266
  %v268 = vadd.f32 %v267, 1.0
  %v269 = vrcp.pop %v268
  %v270 = vmul.f32 %v268, %v269
  %v271 = vsub.f32 1.0, %v270
  %v272 = vmul.f32 %v269, %v271
  %v273 = vadd.f32 %v269, %v272
  %vm274 = vweird.f32 %v268
  %vm275 = vweird.f32 %v269
  %vm276 = vmor %vm274, %vm275
  %v277 = vsel %vm276, %v269, %v273
  %v278 = vand.u32 2147483647, %v268
  %vm279 = vcmp.eq.f32.partialorder %v278, 8.507059e+37
  %v280 = vand.u32 %v268, 2147483648
  %v281 = vor.u32 1.1754944e-38, %v280
  %v282 = vsel %vm279, %v281, %v277
  %v283 = vmul.f32 1.0, %v282
  %v284 = vmul.f32 %v263, %v242
  %v285 = vadd.f32 %v169, %v284
  %v286 = vtanh.pop %v285
  %v287 = vsub.f32 1.0, %v283
  %v288 = vmul.f32 %v287, %v286
  %v289 = vmul.f32 %v283, 0.0
  %v290 = vadd.f32 %v288, %v289
  %v292 = vsel %vm180, %v290, 0
  %294 = vmatpush.msra.mxu0 0.0
  %295 = vmatpush.msra.mxu0 0.0
  %296 = vmatpush.msra.mxu0 0.0
  %297 = vmatpush.msra.mxu0 0.0
  %298 = vmatpush.msra.mxu0 0.0
  %299 = vmatpush.msra.mxu0 0.0
  %300 = vmatpush.msra.mxu0 0.0
  %301 = vmatpush.msra.mxu0 0.0
  %302 = vmatpush.msra.mxu0 0.0
  %303 = vmatpush.msra.mxu0 0.0
  %304 = vmatpush.msra.mxu0 0.0
  %305 = vmatpush.msra.mxu0 0.0
  %306 = vmatpush.msra.mxu0 0.0
  %307 = vmatpush.msra.mxu0 0.0
  %308 = vmatpush.msra.mxu0 %v172
  %309 = vmatpush.msra.mxu0 %v171
  %310 = vmatmul.f32.gmra.mxu0 %v292
  %v311 = vpop.f32.mrf.mxu0
  %v312 = vadd.f32 %v177, %v311
  %313 = vdwg.mxu0
  %314 = vmatpush.msra.mxu0 0.0
  %315 = vmatpush.msra.mxu0 0.0
  %316 = vmatpush.msra.mxu0 0.0
  %317 = vmatpush.msra.mxu0 0.0
  %318 = vmatpush.msra.mxu0 0.0
  %319 = vmatpush.msra.mxu0 0.0
  %320 = vmatpush.msra.mxu0 0.0
  %321 = vmatpush.msra.mxu0 0.0
  %322 = vmatpush.msra.mxu0 0.0
  %323 = vmatpush.msra.mxu0 0.0
  %324 = vmatpush.msra.mxu0 0.0
  %325 = vmatpush.msra.mxu0 0.0
  %326 = vmatpush.msra.mxu0 0.0
  %327 = vmatpush.msra.mxu0 0.0
  %328 = vmatpush.msra.mxu0 %v174
  %329 = vmatpush.msra.mxu0 %v173
  %330 = vmatmul.f32.gmra.mxu0 %v292
  %v331 = vpop.f32.mrf.mxu0
  %v332 = vadd.f32 %v178, %v331
  %333 = vdwg.mxu0
  %334 = vmatpush.msra.mxu0 0.0
  %335 = vmatpush.msra.mxu0 0.0
  %336 = vmatpush.msra.mxu0 0.0
  %337 = vmatpush.msra.mxu0 0.0
  %338 = vmatpush.msra.mxu0 0.0
  %339 = vmatpush.msra.mxu0 0.0
  %340 = vmatpush.msra.mxu0 0.0
  %341 = vmatpush.msra.mxu0 0.0
  %342 = vmatpush.msra.mxu0 0.0
  %343 = vmatpush.msra.mxu0 0.0
  %344 = vmatpush.msra.mxu0 0.0
  %345 = vmatpush.msra.mxu0 0.0
  %346 = vmatpush.msra.mxu0 0.0
  %347 = vmatpush.msra.mxu0 0.0
  %348 = vmatpush.msra.mxu0 %v176
  %349 = vmatpush.msra.mxu0 %v175
  %350 = vmatmul.f32.gmra.mxu0 %v292
  %v351 = vpop.f32.mrf.mxu0
  %v352 = vadd.f32 %v179, %v351
  %353 = vdwg.mxu0
  %v355 = vrot.slane %v312, 7
  %v357 = vadd.f32 %v97, %v355
  %v358 = vxor.u32 %v357, 2147483648
  %v359 = vmul.f32 %v358, 1.442695
  %v360 = vpow.pop %v359
  %v361 = vadd.f32 %v360, 1.0
  %v362 = vrcp.pop %v361
  %v363 = vmul.f32 %v361, %v362
  %v364 = vsub.f32 1.0, %v363
  %v365 = vmul.f32 %v362, %v364
  %v366 = vadd.f32 %v362, %v365
  %vm367 = vweird.f32 %v361
  %vm368 = vweird.f32 %v362
  %vm369 = vmor %vm367, %vm368
  %v370 = vsel %vm369, %v362, %v366
  %v371 = vand.u32 2147483647, %v361
  %vm372 = vcmp.eq.f32.partialorder %v371, 8.507059e+37
  %v373 = vand.u32 %v361, 2147483648
  %v374 = vor.u32 1.1754944e-38, %v373
  %v375 = vsel %vm372, %v374, %v370
  %v376 = vmul.f32 1.0, %v375
  %v378 = vrot.slane %v332, 7
  %v380 = vadd.f32 %v133, %v378
  %v381 = vxor.u32 %v380, 2147483648
  %v382 = vmul.f32 %v381, 1.442695
  %v383 = vpow.pop %v382
  %v384 = vadd.f32 %v383, 1.0
  %v385 = vrcp.pop %v384
  %v386 = vmul.f32 %v384, %v385
  %v387 = vsub.f32 1.0, %v386
  %v388 = vmul.f32 %v385, %v387
  %v389 = vadd.f32 %v385, %v388
  %vm390 = vweird.f32 %v384
  %vm391 = vweird.f32 %v385
  %vm392 = vmor %vm390, %vm391
  %v393 = vsel %vm392, %v385, %v389
  %v394 = vand.u32 2147483647, %v384
  %vm395 = vcmp.eq.f32.partialorder %v394, 8.507059e+37
  %v396 = vand.u32 %v384, 2147483648
  %v397 = vor.u32 1.1754944e-38, %v396
  %v398 = vsel %vm395, %v397, %v393
  %v399 = vmul.f32 1.0, %v398
  %v401 = vrot.slane %v352, 7
  %v403 = vmul.f32 %v376, %v401
  %v404 = vadd.f32 %v169, %v403
  %v405 = vtanh.pop %v404
  %v406 = vsub.f32 1.0, %v399
  %v407 = vmul.f32 %v406, %v405
  %v408 = vrot.slane %v290, 7
  %v410 = vmul.f32 %v399, %v408
  %v411 = vadd.f32 %v407, %v410
  %v413 = vrot.slane %v411, 1
  %v414 = vsel %vm180, %v413, 0
  %416 = vmatpush.msra.mxu0 0.0
  %417 = vmatpush.msra.mxu0 0.0
  %418 = vmatpush.msra.mxu0 0.0
  %419 = vmatpush.msra.mxu0 0.0
  %420 = vmatpush.msra.mxu0 0.0
  %421 = vmatpush.msra.mxu0 0.0
  %422 = vmatpush.msra.mxu0 0.0
  %423 = vmatpush.msra.mxu0 0.0
  %424 = vmatpush.msra.mxu0 0.0
  %425 = vmatpush.msra.mxu0 0.0
  %426 = vmatpush.msra.mxu0 0.0
  %427 = vmatpush.msra.mxu0 0.0
  %428 = vmatpush.msra.mxu0 0.0
  %429 = vmatpush.msra.mxu0 0.0
  %430 = vmatpush.msra.mxu0 %v172
  %431 = vmatpush.msra.mxu0 %v171
  %432 = vmatmul.f32.gmra.mxu0 %v414
  %v433 = vpop.f32.mrf.mxu0
  %v434 = vadd.f32 %v177, %v433
  %435 = vdwg.mxu0
  %436 = vmatpush.msra.mxu0 0.0
  %437 = vmatpush.msra.mxu0 0.0
  %438 = vmatpush.msra.mxu0 0.0
  %439 = vmatpush.msra.mxu0 0.0
  %440 = vmatpush.msra.mxu0 0.0
  %441 = vmatpush.msra.mxu0 0.0
  %442 = vmatpush.msra.mxu0 0.0
  %443 = vmatpush.msra.mxu0 0.0
  %444 = vmatpush.msra.mxu0 0.0
  %445 = vmatpush.msra.mxu0 0.0
  %446 = vmatpush.msra.mxu0 0.0
  %447 = vmatpush.msra.mxu0 0.0
  %448 = vmatpush.msra.mxu0 0.0
  %449 = vmatpush.msra.mxu0 0.0
  %450 = vmatpush.msra.mxu0 %v174
  %451 = vmatpush.msra.mxu0 %v173
  %452 = vmatmul.f32.gmra.mxu0 %v414
  %v453 = vpop.f32.mrf.mxu0
  %v454 = vadd.f32 %v178, %v453
  %455 = vdwg.mxu0
  %456 = vmatpush.msra.mxu0 0.0
  %457 = vmatpush.msra.mxu0 0.0
  %458 = vmatpush.msra.mxu0 0.0
  %459 = vmatpush.msra.mxu0 0.0
  %460 = vmatpush.msra.mxu0 0.0
  %461 = vmatpush.msra.mxu0 0.0
  %462 = vmatpush.msra.mxu0 0.0
  %463 = vmatpush.msra.mxu0 0.0
  %464 = vmatpush.msra.mxu0 0.0
  %465 = vmatpush.msra.mxu0 0.0
  %466 = vmatpush.msra.mxu0 0.0
  %467 = vmatpush.msra.mxu0 0.0
  %468 = vmatpush.msra.mxu0 0.0
  %469 = vmatpush.msra.mxu0 0.0
  %470 = vmatpush.msra.mxu0 %v176
  %471 = vmatpush.msra.mxu0 %v175
  %472 = vmatmul.f32.gmra.mxu0 %v414
  %v473 = vpop.f32.mrf.mxu0
  %v474 = vadd.f32 %v179, %v473
  %475 = vdwg.mxu0
  %v477 = vrot.slane %v434, 6
  %v479 = vadd.f32 %v97, %v477
  %v480 = vxor.u32 %v479, 2147483648
  %v481 = vmul.f32 %v480, 1.442695
  %v482 = vpow.pop %v481
  %v483 = vadd.f32 %v482, 1.0
  %v484 = vrcp.pop %v483
  %v485 = vmul.f32 %v483, %v484
  %v486 = vsub.f32 1.0, %v485
  %v487 = vmul.f32 %v484, %v486
  %v488 = vadd.f32 %v484, %v487
  %vm489 = vweird.f32 %v483
  %vm490 = vweird.f32 %v484
  %vm491 = vmor %vm489, %vm490
  %v492 = vsel %vm491, %v484, %v488
  %v493 = vand.u32 2147483647, %v483
  %vm494 = vcmp.eq.f32.partialorder %v493, 8.507059e+37
  %v495 = vand.u32 %v483, 2147483648
  %v496 = vor.u32 1.1754944e-38, %v495
  %v497 = vsel %vm494, %v496, %v492
  %v498 = vmul.f32 1.0, %v497
  %v500 = vrot.slane %v454, 6
  %v502 = vadd.f32 %v133, %v500
  %v503 = vxor.u32 %v502, 2147483648
  %v504 = vmul.f32 %v503, 1.442695
  %v505 = vpow.pop %v504
  %v506 = vadd.f32 %v505, 1.0
  %v507 = vrcp.pop %v506
  %v508 = vmul.f32 %v506, %v507
  %v509 = vsub.f32 1.0, %v508
  %v510 = vmul.f32 %v507, %v509
  %v511 = vadd.f32 %v507, %v510
  %vm512 = vweird.f32 %v506
  %vm513 = vweird.f32 %v507
  %vm514 = vmor %vm512, %vm513
  %v515 = vsel %vm514, %v507, %v511
  %v516 = vand.u32 2147483647, %v506
  %vm517 = vcmp.eq.f32.partialorder %v516, 8.507059e+37
  %v518 = vand.u32 %v506, 2147483648
  %v519 = vor.u32 1.1754944e-38, %v518
  %v520 = vsel %vm517, %v519, %v515
  %v521 = vmul.f32 1.0, %v520
  %v523 = vrot.slane %v474, 6
  %v525 = vmul.f32 %v498, %v523
  %v526 = vadd.f32 %v169, %v525
  %v527 = vtanh.pop %v526
  %v528 = vsub.f32 1.0, %v521
  %v529 = vmul.f32 %v528, %v527
  %v530 = vrot.slane %v411, 7
  %v532 = vmul.f32 %v521, %v530
  %v533 = vadd.f32 %v529, %v532
  %v535 = vrot.slane %v533, 2
  %v536 = vsel %vm180, %v535, 0
  %538 = vmatpush.msra.mxu0 0.0
  %539 = vmatpush.msra.mxu0 0.0
  %540 = vmatpush.msra.mxu0 0.0
  %541 = vmatpush.msra.mxu0 0.0
  %542 = vmatpush.msra.mxu0 0.0
  %543 = vmatpush.msra.mxu0 0.0
  %544 = vmatpush.msra.mxu0 0.0
  %545 = vmatpush.msra.mxu0 0.0
  %546 = vmatpush.msra.mxu0 0.0
  %547 = vmatpush.msra.mxu0 0.0
  %548 = vmatpush.msra.mxu0 0.0
  %549 = vmatpush.msra.mxu0 0.0
  %550 = vmatpush.msra.mxu0 0.0
  %551 = vmatpush.msra.mxu0 0.0
  %552 = vmatpush.msra.mxu0 %v172
  %553 = vmatpush.msra.mxu0 %v171
  %554 = vmatmul.f32.gmra.mxu0 %v536
  %v555 = vpop.f32.mrf.mxu0
  %v556 = vadd.f32 %v177, %v555
  %557 = vdwg.mxu0
  %558 = vmatpush.msra.mxu0 0.0
  %559 = vmatpush.msra.mxu0 0.0
  %560 = vmatpush.msra.mxu0 0.0
  %561 = vmatpush.msra.mxu0 0.0
  %562 = vmatpush.msra.mxu0 0.0
  %563 = vmatpush.msra.mxu0 0.0
  %564 = vmatpush.msra.mxu0 0.0
  %565 = vmatpush.msra.mxu0 0.0
  %566 = vmatpush.msra.mxu0 0.0
  %567 = vmatpush.msra.mxu0 0.0
  %568 = vmatpush.msra.mxu0 0.0
  %569 = vmatpush.msra.mxu0 0.0
  %570 = vmatpush.msra.mxu0 0.0
  %571 = vmatpush.msra.mxu0 0.0
  %572 = vmatpush.msra.mxu0 %v174
  %573 = vmatpush.msra.mxu0 %v173
  %574 = vmatmul.f32.gmra.mxu0 %v536
  %v575 = vpop.f32.mrf.mxu0
  %v576 = vadd.f32 %v178, %v575
  %577 = vdwg.mxu0
  %578 = vmatpush.msra.mxu0 0.0
  %579 = vmatpush.msra.mxu0 0.0
  %580 = vmatpush.msra.mxu0 0.0
  %581 = vmatpush.msra.mxu0 0.0
  %582 = vmatpush.msra.mxu0 0.0
  %583 = vmatpush.msra.mxu0 0.0
  %584 = vmatpush.msra.mxu0 0.0
  %585 = vmatpush.msra.mxu0 0.0
  %586 = vmatpush.msra.mxu0 0.0
  %587 = vmatpush.msra.mxu0 0.0
  %588 = vmatpush.msra.mxu0 0.0
  %589 = vmatpush.msra.mxu0 0.0
  %590 = vmatpush.msra.mxu0 0.0
  %591 = vmatpush.msra.mxu0 0.0
  %592 = vmatpush.msra.mxu0 %v176
  %593 = vmatpush.msra.mxu0 %v175
  %594 = vmatmul.f32.gmra.mxu0 %v536
  %v595 = vpop.f32.mrf.mxu0
  %v596 = vadd.f32 %v179, %v595
  %597 = vdwg.mxu0
  %v599 = vrot.slane %v556, 5
  %v601 = vadd.f32 %v97, %v599
  %v602 = vxor.u32 %v601, 2147483648
  %v603 = vmul.f32 %v602, 1.442695
  %v604 = vpow.pop %v603
  %v605 = vadd.f32 %v604, 1.0
  %v606 = vrcp.pop %v605
  %v607 = vmul.f32 %v605, %v606
  %v608 = vsub.f32 1.0, %v607
  %v609 = vmul.f32 %v606, %v608
  %v610 = vadd.f32 %v606, %v609
  %vm611 = vweird.f32 %v605
  %vm612 = vweird.f32 %v606
  %vm613 = vmor %vm611, %vm612
  %v614 = vsel %vm613, %v606, %v610
  %v615 = vand.u32 2147483647, %v605
  %vm616 = vcmp.eq.f32.partialorder %v615, 8.507059e+37
  %v617 = vand.u32 %v605, 2147483648
  %v618 = vor.u32 1.1754944e-38, %v617
  %v619 = vsel %vm616, %v618, %v614
  %v620 = vmul.f32 1.0, %v619
  %v622 = vrot.slane %v576, 5
  %v624 = vadd.f32 %v133, %v622
  %v625 = vxor.u32 %v624, 2147483648
  %v626 = vmul.f32 %v625, 1.442695
  %v627 = vpow.pop %v626
  %v628 = vadd.f32 %v627, 1.0
  %v629 = vrcp.pop %v628
  %v630 = vmul.f32 %v628, %v629
  %v631 = vsub.f32 1.0, %v630
  %v632 = vmul.f32 %v629, %v631
  %v633 = vadd.f32 %v629, %v632
  %vm634 = vweird.f32 %v628
  %vm635 = vweird.f32 %v629
  %vm636 = vmor %vm634, %vm635
  %v637 = vsel %vm636, %v629, %v633
  %v638 = vand.u32 2147483647, %v628
  %vm639 = vcmp.eq.f32.partialorder %v638, 8.507059e+37
  %v640 = vand.u32 %v628, 2147483648
  %v641 = vor.u32 1.1754944e-38, %v640
  %v642 = vsel %vm639, %v641, %v637
  %v643 = vmul.f32 1.0, %v642
  %v645 = vrot.slane %v596, 5
  %v647 = vmul.f32 %v620, %v645
  %v648 = vadd.f32 %v169, %v647
  %v649 = vtanh.pop %v648
  %v650 = vsub.f32 1.0, %v643
  %v651 = vmul.f32 %v650, %v649
  %v652 = vrot.slane %v533, 7
  %v654 = vmul.f32 %v643, %v652
  %v655 = vadd.f32 %v651, %v654
  %vm656 = vcmask 1040384
  %v657 = vsel %vm656, %v290, %v411
  %vm658 = vcmask 1041408
  %v659 = vsel %vm658, %v657, %v533
  %vm660 = vcmask 1042432
  %v661 = vsel %vm660, %v659, %v655
  %v662 = vld [vmem:[%s13] sm:$0xff]
  %v663 = vld [vmem:[%s13 + $0x8] sm:$0xff]
  %v664 = vld [vmem:[%s14] sm:$0x1]
  %v666 = vperm.slane %v664, 0
  %v669 = vsel %vm180, %v661, 0
  %671 = vmatpush.msra.mxu0 0.0
  %672 = vmatpush.msra.mxu0 0.0
  %673 = vmatpush.msra.mxu0 0.0
  %674 = vmatpush.msra.mxu0 0.0
  %675 = vmatpush.msra.mxu0 0.0
  %676 = vmatpush.msra.mxu0 0.0
  %677 = vmatpush.msra.mxu0 0.0
  %678 = vmatpush.msra.mxu0 0.0
  %679 = vmatpush.msra.mxu0 0.0
  %680 = vmatpush.msra.mxu0 0.0
  %681 = vmatpush.msra.mxu0 0.0
  %682 = vmatpush.msra.mxu0 0.0
  %683 = vmatpush.msra.mxu0 0.0
  %684 = vmatpush.msra.mxu0 0.0
  %685 = vmatpush.msra.mxu0 %v663
  %686 = vmatpush.msra.mxu0 %v662
  %687 = vmatmul.f32.gmra.mxu0 %v669
  %v688 = vpop.f32.mrf.mxu0
  %v689 = vadd.f32 %v666, %v688
  %690 = vdwg.mxu0
  %v691 = vmax.f32 %v689, 0.0
  %v692 = vld [vmem:[%s15] sm:$0xf]
  %v693 = vld [vmem:[#allocation2] sm:$0x1]
  %v695 = vperm.slane %v693, 0
  %vm697 = vcmask 31744
  %v699 = vsel %vm697, %v691, 0
  %vm701 = vcmask 1043456
  %v703 = vsel %vm701, %v692, 0
  %705 = vmatpush.msra.mxu0 0.0
  %706 = vmatpush.msra.mxu0 0.0
  %707 = vmatpush.msra.mxu0 0.0
  %708 = vmatpush.msra.mxu0 0.0
  %709 = vmatpush.msra.mxu0 0.0
  %710 = vmatpush.msra.mxu0 0.0
  %711 = vmatpush.msra.mxu0 0.0
  %712 = vmatpush.msra.mxu0 0.0
  %713 = vmatpush.msra.mxu0 0.0
  %714 = vmatpush.msra.mxu0 0.0
  %715 = vmatpush.msra.mxu0 0.0
  %716 = vmatpush.msra.mxu0 0.0
  %717 = vmatpush.msra.mxu0 0.0
  %718 = vmatpush.msra.mxu0 0.0
  %719 = vmatpush.msra.mxu0 0.0
  %720 = vmatpush.msra.mxu0 %v703
  %721 = vmatmul.f32.gmra.mxu0 %v699
  %v722 = vpop.f32.mrf.mxu0
  %v723 = vadd.f32 %v695, %v722
  %724 = vdwg.mxu0
  %v725 = vmax.f32 %v723, 0.0
  %vm726 = vcmask 3072
  %727 = vst.msk [vmem:[%s17] sm:$0xf] %vm726, %v725
  // Predicated region
  $region70: #{detect_model_forward.9} parent=0 // pred_check
    _
  $region71: #{detect_model_forward.9} parent=0 // pred_check_branch
    %729 = sbr.rel (0) target = $region73
  $region72: #{detect_model_forward.9} parent=0 // pred_region
    _
  $region73: #{detect_model_forward.9} parent=0 // pred_fallthru
    _
  // Predicated region
  $region74: #{detect_model_forward.9} parent=0 // pred_check
    _
  $region75: #{detect_model_forward.9} parent=0 // pred_check_branch
    %731 = sbr.rel (0) target = $region77
  $region76: #{detect_model_forward.9} parent=0 // pred_region
    _
  $region77: #{detect_model_forward.9} parent=0 // pred_fallthru
    _

</llo_original>
